<compile_context>
chip_gen: v7x
topology: tpu7x:2x2x1
jax: 0.10.0
libtpu: 0.0.40
codegen_flags: <defaults>
</compile_context>

<pallas_src>
import functools

import jax
import jax.numpy as jnp
from jax.experimental import pallas as pl
from jax.experimental.pallas import tpu as pltpu


def dense_rank_kernel(x_ref, wconv_ref, bconv_ref,
                      wcls_ref, bcls_ref,
                      w1_ref, b1_ref, w2_ref, b2_ref, w3_ref, b3_ref,
                      label_ref, rank_ref):
    # Static shapes from the refs.
    tb, hp, wp, cin = x_ref.shape          # padded NHWC block: (TB, H+2, W+2, Cin)
    h, w = hp - 2, wp - 2
    hw = h * w
    cf = wconv_ref.shape[2]

    x = x_ref[...]                          # (TB, H+2, W+2, Cin), f32 or bf16

    # --- features: 3x3 'same' conv as 9 shifted-view matmuls, f32 accumulation ---
    acc = None
    for di in range(3):
        for dj in range(3):
            xs = x[:, di:di + h, dj:dj + w, :].reshape(tb * hw, cin)
            contrib = jnp.dot(xs, wconv_ref[di * 3 + dj],
                              preferred_element_type=jnp.float32)
            acc = contrib if acc is None else acc + contrib      # (TB*HW, Cf) f32

    f = jnp.maximum(acc + bconv_ref[...], 0.0)                   # conv bias + ReLU

    # --- adaptive_avg_pool2d((1,1)) + flatten: mean over H*W as sum * const ---
    pooled = jnp.sum(f.reshape(tb, hw, cf), axis=1) * (1.0 / hw)  # (TB, Cf) f32

    # --- label head: sigmoid(Linear(pooled)), numerically stable form ---
    zc = jnp.dot(pooled, wcls_ref[...],
                 preferred_element_type=jnp.float32) + bcls_ref[...]
    ec = jnp.exp(-jnp.abs(zc))
    inv = pl.reciprocal(1.0 + ec, approx=False)
    label_ref[0] = jnp.where(zc >= 0.0, inv, ec * inv)            # (TB, n_cls)

    # --- rank head: Lin-ReLU-Lin-ReLU-Lin, softmax over dim=1 ---
    hdd = jnp.maximum(
        jnp.dot(pooled, w1_ref[...], preferred_element_type=jnp.float32) + b1_ref[...],
        0.0)
    hdd = jnp.maximum(
        jnp.dot(hdd, w2_ref[...], preferred_element_type=jnp.float32) + b2_ref[...],
        0.0)
    z = jnp.dot(hdd, w3_ref[...], preferred_element_type=jnp.float32) + b3_ref[...]
    z = z - jnp.max(z, axis=1, keepdims=True)
    e = jnp.exp(z)
    rank_ref[0] = e * pl.reciprocal(jnp.sum(e, axis=1, keepdims=True), approx=False)


def _choose_tb(n, per_sample_bytes, max_tb=8, vmem_budget_bytes=8 * 1024 * 1024):
    """Largest divisor of n that keeps >=2 grid steps (v7x megacore) and fits budget."""
    cap = max(1, min(max_tb,
                     n if n < 2 else n // 2,
                     vmem_budget_bytes // max(1, per_sample_bytes)))
    for tb in range(int(cap), 0, -1):
        if n % tb == 0:
            return tb
    return 1


@functools.partial(jax.jit, static_argnames=("conv_input_dtype", "max_tb"))
def dense_rank_head(x_nchw, params, *, conv_input_dtype=jnp.float32, max_tb=8):
    """Forward pass.  x_nchw: (N, Cin, H, W) float32.  Returns (label, rank)."""
    wconv, bconv, wcls, bcls, w1, b1, w2, b2, w3, b3 = params
    n, cin, h, w = x_nchw.shape
    hw = h * w
    cf = wconv.shape[-1]
    n_cls = wcls.shape[1]
    n_rank = w3.shape[1]

    # Wrapper-side glue: NCHW -> NHWC + 'same' padding (no 9x im2col inflation).
    x_nhwc = jnp.transpose(x_nchw, (0, 2, 3, 1))
    x_pad = jnp.pad(x_nhwc, ((0, 0), (1, 1), (1, 1), (0, 0)))     # (N, H+2, W+2, Cin)
    x_pad = x_pad.astype(conv_input_dtype)
    wconv_k = wconv.reshape(9, cin, cf).astype(conv_input_dtype)  # (9, Cin, Cf)

    # VMEM-aware batch tile: double-buffered padded input + f32 conv activations.
    itemsize = jnp.dtype(conv_input_dtype).itemsize
    per_sample = 2 * (h + 2) * (w + 2) * cin * itemsize + 4 * hw * cf * 4
    tb = _choose_tb(n, per_sample, max_tb=max_tb)
    grid = (n // tb,)

    full = lambda shp: pl.BlockSpec(shp, lambda i: (0,) * len(shp))

    label, rank = pl.pallas_call(
        dense_rank_kernel,
        out_shape=(jax.ShapeDtypeStruct((n // tb, tb, n_cls), jnp.float32),
                   jax.ShapeDtypeStruct((n // tb, tb, n_rank), jnp.float32)),
        grid_spec=pltpu.PrefetchScalarGridSpec(
            num_scalar_prefetch=0,
            grid=grid,
            in_specs=[
                pl.BlockSpec((tb, h + 2, w + 2, cin), lambda i: (i, 0, 0, 0)),
                full(wconv_k.shape), full(bconv.shape),
                full(wcls.shape), full(bcls.shape),
                full(w1.shape), full(b1.shape),
                full(w2.shape), full(b2.shape),
                full(w3.shape), full(b3.shape),
            ],
            out_specs=[
                pl.BlockSpec((1, tb, n_cls), lambda i: (i, 0, 0)),
                pl.BlockSpec((1, tb, n_rank), lambda i: (i, 0, 0)),
            ],
        ),
        compiler_params=pltpu.CompilerParams(
            dimension_semantics=("parallel",),
            vmem_limit_bytes=32 * 1024 * 1024,   # sized against v7x scoped limit
        ),
    )(x_pad, wconv_k, bconv, wcls, bcls, w1, b1, w2, b2, w3, b3)

    return label.reshape(n, n_cls), rank.reshape(n, n_rank)


def _reference(x_nchw, params):
    """Pure-JAX f32 reference mirroring the PyTorch forward (independent conv path)."""
    wconv, bconv, wcls, bcls, w1, b1, w2, b2, w3, b3 = params
    x = jnp.transpose(x_nchw, (0, 2, 3, 1))                       # NHWC
    f = jax.lax.conv_general_dilated(
        x, wconv, window_strides=(1, 1), padding="SAME",
        dimension_numbers=("NHWC", "HWIO", "NHWC"))
    f = jnp.maximum(f + bconv.reshape(1, 1, 1, -1), 0.0)
    pooled = jnp.mean(f, axis=(1, 2))                             # (N, Cf)
    label = jax.nn.sigmoid(pooled @ wcls + bcls)
    h = jnp.maximum(pooled @ w1 + b1, 0.0)
    h = jnp.maximum(h @ w2 + b2, 0.0)
    rank = jax.nn.softmax(h @ w3 + b3, axis=1)
    return label, rank


def make_params(key, cin=4, cf=32, n_classes=8, rank_out=None):
    """Deterministic synthetic parameters (shapes per DenseRankHead.__init__)."""
    rank_out = rank_out or n_classes
    ks = jax.random.split(key, 10)
    s = 0.1
    wconv = s * jax.random.normal(ks[0], (3, 3, cin, cf), jnp.float32)   # conv, HWIO
    bconv = s * jax.random.normal(ks[1], (1, cf), jnp.float32)
    wcls = s * jax.random.normal(ks[2], (cf, n_classes), jnp.float32)    # classifier_label
    bcls = s * jax.random.normal(ks[3], (1, n_classes), jnp.float32)
    w1 = s * jax.random.normal(ks[4], (cf, cf), jnp.float32)             # rank_1
    b1 = s * jax.random.normal(ks[5], (1, cf), jnp.float32)
    w2 = s * jax.random.normal(ks[6], (cf, cf), jnp.float32)             # rank_2
    b2 = s * jax.random.normal(ks[7], (1, cf), jnp.float32)
    w3 = s * jax.random.normal(ks[8], (cf, rank_out), jnp.float32)       # rank_3
    b3 = s * jax.random.normal(ks[9], (1, rank_out), jnp.float32)
    return (wconv, bconv, wcls, bcls, w1, b1, w2, b2, w3, b3)


if __name__ == "__main__":
    key = jax.random.PRNGKey(0)
    kx, kp = jax.random.split(key)

    N, CIN, H, W = 2, 4, 16, 16
    x = jax.random.normal(kx, (N, CIN, H, W), jnp.float32)    # PyTorch-style NCHW input
    params = make_params(kp, cin=CIN, cf=32, n_classes=8, rank_out=None)

    # Default f32 path: strict check against reference.
    label_out, rank_out = dense_rank_head(x, params)
    jax.block_until_ready((label_out, rank_out))

    label_ref, rank_ref = _reference(x, params)
    assert label_out.shape == (N, 8) and rank_out.shape == (N, 8)
    assert jnp.allclose(label_out, label_ref, rtol=1e-4, atol=1e-5)
    assert jnp.allclose(rank_out, rank_ref, rtol=1e-4, atol=1e-5)
    assert jnp.allclose(jnp.sum(rank_out, axis=1), 1.0, atol=1e-5)

    # bf16 MXU path (v6e/v7x): same kernel, conv-matmul inputs in bf16, f32 accumulation.
    label_bf, rank_bf = dense_rank_head(x, params, conv_input_dtype=jnp.bfloat16)
    jax.block_until_ready((label_bf, rank_bf))
    assert jnp.allclose(label_bf, label_ref, rtol=5e-2, atol=5e-3)
    assert jnp.allclose(rank_bf, rank_ref, rtol=5e-2, atol=5e-3)

    print("KERNEL_OK")
</pallas_src>

<mosaic_0001>
module attributes {stable_mosaic.version = 11 : i64} {
  func.func @dense_rank_kernel(%arg0: i32, %arg1: memref<1x18x18x4xf32, #tpu.memory_space<vmem>>, %arg2: memref<9x4x32xf32, #tpu.memory_space<vmem>>, %arg3: memref<1x32xf32, #tpu.memory_space<vmem>>, %arg4: memref<32x8xf32, #tpu.memory_space<vmem>>, %arg5: memref<1x8xf32, #tpu.memory_space<vmem>>, %arg6: memref<32x32xf32, #tpu.memory_space<vmem>>, %arg7: memref<1x32xf32, #tpu.memory_space<vmem>>, %arg8: memref<32x32xf32, #tpu.memory_space<vmem>>, %arg9: memref<1x32xf32, #tpu.memory_space<vmem>>, %arg10: memref<32x8xf32, #tpu.memory_space<vmem>>, %arg11: memref<1x8xf32, #tpu.memory_space<vmem>>, %arg12: memref<1x1x8xf32, #tpu.memory_space<vmem>>, %arg13: memref<1x1x8xf32, #tpu.memory_space<vmem>>) attributes {dimension_semantics = [#tpu.dimension_semantics<parallel>], iteration_bounds = array<i64: 2>, scalar_prefetch = 0 : i64, scratch_operands = 0 : i64, tpu.core_type = #tpu.core_type<tc>, window_params = [{transform_indices = @transform_0, window_bounds = array<i64: 1, 18, 18, 4>}, {pipeline_mode = #tpu.pipeline_mode<synchronous>, transform_indices = @transform_1, window_bounds = array<i64: 9, 4, 32>}, {pipeline_mode = #tpu.pipeline_mode<synchronous>, transform_indices = @transform_2, window_bounds = array<i64: 1, 32>}, {pipeline_mode = #tpu.pipeline_mode<synchronous>, transform_indices = @transform_3, window_bounds = array<i64: 32, 8>}, {pipeline_mode = #tpu.pipeline_mode<synchronous>, transform_indices = @transform_4, window_bounds = array<i64: 1, 8>}, {pipeline_mode = #tpu.pipeline_mode<synchronous>, transform_indices = @transform_5, window_bounds = array<i64: 32, 32>}, {pipeline_mode = #tpu.pipeline_mode<synchronous>, transform_indices = @transform_6, window_bounds = array<i64: 1, 32>}, {pipeline_mode = #tpu.pipeline_mode<synchronous>, transform_indices = @transform_7, window_bounds = array<i64: 32, 32>}, {pipeline_mode = #tpu.pipeline_mode<synchronous>, transform_indices = @transform_8, window_bounds = array<i64: 1, 32>}, {pipeline_mode = #tpu.pipeline_mode<synchronous>, transform_indices = @transform_9, window_bounds = array<i64: 32, 8>}, {pipeline_mode = #tpu.pipeline_mode<synchronous>, transform_indices = @transform_10, window_bounds = array<i64: 1, 8>}, {transform_indices = @transform_11, window_bounds = array<i64: 1, 1, 8>}, {transform_indices = @transform_12, window_bounds = array<i64: 1, 1, 8>}]} {
    %c0 = arith.constant 0 : index
    %c0_0 = arith.constant 0 : index
    %c0_1 = arith.constant 0 : index
    %c0_2 = arith.constant 0 : index
    %0 = vector.load %arg1[%c0, %c0_0, %c0_1, %c0_2] : memref<1x18x18x4xf32, #tpu.memory_space<vmem>>, vector<1x18x18x4xf32>
    %1 = vector.extract_strided_slice %0 {offsets = [0, 0, 0, 0], sizes = [1, 16, 16, 4], strides = [1, 1, 1, 1]} : vector<1x18x18x4xf32> to vector<1x16x16x4xf32>
    %2 = vector.shape_cast %1 : vector<1x16x16x4xf32> to vector<256x4xf32>
    %c0_3 = arith.constant 0 : index
    %c0_4 = arith.constant 0 : index
    %c0_5 = arith.constant 0 : index
    %3 = vector.load %arg2[%c0_3, %c0_4, %c0_5] : memref<9x4x32xf32, #tpu.memory_space<vmem>>, vector<1x4x32xf32>
    %4 = vector.shape_cast %3 : vector<1x4x32xf32> to vector<4x32xf32>
    %cst = arith.constant dense<0.000000e+00> : vector<256x32xf32>
    %5 = tpu.matmul %2, %4, %cst {dimension_numbers = #tpu.dot_dimension_numbers<[1], [0], [0], [1], [0, 0, 1, 1], [], []>} : vector<256x4xf32>, vector<4x32xf32>, vector<256x32xf32> -> vector<256x32xf32>
    %6 = vector.extract_strided_slice %0 {offsets = [0, 0, 1, 0], sizes = [1, 16, 16, 4], strides = [1, 1, 1, 1]} : vector<1x18x18x4xf32> to vector<1x16x16x4xf32>
    %7 = vector.shape_cast %6 : vector<1x16x16x4xf32> to vector<256x4xf32>
    %c1 = arith.constant 1 : index
    %c0_6 = arith.constant 0 : index
    %c0_7 = arith.constant 0 : index
    %8 = vector.load %arg2[%c1, %c0_6, %c0_7] : memref<9x4x32xf32, #tpu.memory_space<vmem>>, vector<1x4x32xf32>
    %9 = vector.shape_cast %8 : vector<1x4x32xf32> to vector<4x32xf32>
    %cst_8 = arith.constant dense<0.000000e+00> : vector<256x32xf32>
    %10 = tpu.matmul %7, %9, %cst_8 {dimension_numbers = #tpu.dot_dimension_numbers<[1], [0], [0], [1], [0, 0, 1, 1], [], []>} : vector<256x4xf32>, vector<4x32xf32>, vector<256x32xf32> -> vector<256x32xf32>
    %11 = arith.addf %5, %10 : vector<256x32xf32>
    %12 = vector.extract_strided_slice %0 {offsets = [0, 0, 2, 0], sizes = [1, 16, 16, 4], strides = [1, 1, 1, 1]} : vector<1x18x18x4xf32> to vector<1x16x16x4xf32>
    %13 = vector.shape_cast %12 : vector<1x16x16x4xf32> to vector<256x4xf32>
    %c2 = arith.constant 2 : index
    %c0_9 = arith.constant 0 : index
    %c0_10 = arith.constant 0 : index
    %14 = vector.load %arg2[%c2, %c0_9, %c0_10] : memref<9x4x32xf32, #tpu.memory_space<vmem>>, vector<1x4x32xf32>
    %15 = vector.shape_cast %14 : vector<1x4x32xf32> to vector<4x32xf32>
    %cst_11 = arith.constant dense<0.000000e+00> : vector<256x32xf32>
    %16 = tpu.matmul %13, %15, %cst_11 {dimension_numbers = #tpu.dot_dimension_numbers<[1], [0], [0], [1], [0, 0, 1, 1], [], []>} : vector<256x4xf32>, vector<4x32xf32>, vector<256x32xf32> -> vector<256x32xf32>
    %17 = arith.addf %11, %16 : vector<256x32xf32>
    %18 = vector.extract_strided_slice %0 {offsets = [0, 1, 0, 0], sizes = [1, 16, 16, 4], strides = [1, 1, 1, 1]} : vector<1x18x18x4xf32> to vector<1x16x16x4xf32>
    %19 = vector.shape_cast %18 : vector<1x16x16x4xf32> to vector<256x4xf32>
    %c3 = arith.constant 3 : index
    %c0_12 = arith.constant 0 : index
    %c0_13 = arith.constant 0 : index
    %20 = vector.load %arg2[%c3, %c0_12, %c0_13] : memref<9x4x32xf32, #tpu.memory_space<vmem>>, vector<1x4x32xf32>
    %21 = vector.shape_cast %20 : vector<1x4x32xf32> to vector<4x32xf32>
    %cst_14 = arith.constant dense<0.000000e+00> : vector<256x32xf32>
    %22 = tpu.matmul %19, %21, %cst_14 {dimension_numbers = #tpu.dot_dimension_numbers<[1], [0], [0], [1], [0, 0, 1, 1], [], []>} : vector<256x4xf32>, vector<4x32xf32>, vector<256x32xf32> -> vector<256x32xf32>
    %23 = arith.addf %17, %22 : vector<256x32xf32>
    %24 = vector.extract_strided_slice %0 {offsets = [0, 1, 1, 0], sizes = [1, 16, 16, 4], strides = [1, 1, 1, 1]} : vector<1x18x18x4xf32> to vector<1x16x16x4xf32>
    %25 = vector.shape_cast %24 : vector<1x16x16x4xf32> to vector<256x4xf32>
    %c4 = arith.constant 4 : index
    %c0_15 = arith.constant 0 : index
    %c0_16 = arith.constant 0 : index
    %26 = vector.load %arg2[%c4, %c0_15, %c0_16] : memref<9x4x32xf32, #tpu.memory_space<vmem>>, vector<1x4x32xf32>
    %27 = vector.shape_cast %26 : vector<1x4x32xf32> to vector<4x32xf32>
    %cst_17 = arith.constant dense<0.000000e+00> : vector<256x32xf32>
    %28 = tpu.matmul %25, %27, %cst_17 {dimension_numbers = #tpu.dot_dimension_numbers<[1], [0], [0], [1], [0, 0, 1, 1], [], []>} : vector<256x4xf32>, vector<4x32xf32>, vector<256x32xf32> -> vector<256x32xf32>
    %29 = arith.addf %23, %28 : vector<256x32xf32>
    %30 = vector.extract_strided_slice %0 {offsets = [0, 1, 2, 0], sizes = [1, 16, 16, 4], strides = [1, 1, 1, 1]} : vector<1x18x18x4xf32> to vector<1x16x16x4xf32>
    %31 = vector.shape_cast %30 : vector<1x16x16x4xf32> to vector<256x4xf32>
    %c5 = arith.constant 5 : index
    %c0_18 = arith.constant 0 : index
    %c0_19 = arith.constant 0 : index
    %32 = vector.load %arg2[%c5, %c0_18, %c0_19] : memref<9x4x32xf32, #tpu.memory_space<vmem>>, vector<1x4x32xf32>
    %33 = vector.shape_cast %32 : vector<1x4x32xf32> to vector<4x32xf32>
    %cst_20 = arith.constant dense<0.000000e+00> : vector<256x32xf32>
    %34 = tpu.matmul %31, %33, %cst_20 {dimension_numbers = #tpu.dot_dimension_numbers<[1], [0], [0], [1], [0, 0, 1, 1], [], []>} : vector<256x4xf32>, vector<4x32xf32>, vector<256x32xf32> -> vector<256x32xf32>
    %35 = arith.addf %29, %34 : vector<256x32xf32>
    %36 = vector.extract_strided_slice %0 {offsets = [0, 2, 0, 0], sizes = [1, 16, 16, 4], strides = [1, 1, 1, 1]} : vector<1x18x18x4xf32> to vector<1x16x16x4xf32>
    %37 = vector.shape_cast %36 : vector<1x16x16x4xf32> to vector<256x4xf32>
    %c6 = arith.constant 6 : index
    %c0_21 = arith.constant 0 : index
    %c0_22 = arith.constant 0 : index
    %38 = vector.load %arg2[%c6, %c0_21, %c0_22] : memref<9x4x32xf32, #tpu.memory_space<vmem>>, vector<1x4x32xf32>
    %39 = vector.shape_cast %38 : vector<1x4x32xf32> to vector<4x32xf32>
    %cst_23 = arith.constant dense<0.000000e+00> : vector<256x32xf32>
    %40 = tpu.matmul %37, %39, %cst_23 {dimension_numbers = #tpu.dot_dimension_numbers<[1], [0], [0], [1], [0, 0, 1, 1], [], []>} : vector<256x4xf32>, vector<4x32xf32>, vector<256x32xf32> -> vector<256x32xf32>
    %41 = arith.addf %35, %40 : vector<256x32xf32>
    %42 = vector.extract_strided_slice %0 {offsets = [0, 2, 1, 0], sizes = [1, 16, 16, 4], strides = [1, 1, 1, 1]} : vector<1x18x18x4xf32> to vector<1x16x16x4xf32>
    %43 = vector.shape_cast %42 : vector<1x16x16x4xf32> to vector<256x4xf32>
    %c7 = arith.constant 7 : index
    %c0_24 = arith.constant 0 : index
    %c0_25 = arith.constant 0 : index
    %44 = vector.load %arg2[%c7, %c0_24, %c0_25] : memref<9x4x32xf32, #tpu.memory_space<vmem>>, vector<1x4x32xf32>
    %45 = vector.shape_cast %44 : vector<1x4x32xf32> to vector<4x32xf32>
    %cst_26 = arith.constant dense<0.000000e+00> : vector<256x32xf32>
    %46 = tpu.matmul %43, %45, %cst_26 {dimension_numbers = #tpu.dot_dimension_numbers<[1], [0], [0], [1], [0, 0, 1, 1], [], []>} : vector<256x4xf32>, vector<4x32xf32>, vector<256x32xf32> -> vector<256x32xf32>
    %47 = arith.addf %41, %46 : vector<256x32xf32>
    %48 = vector.extract_strided_slice %0 {offsets = [0, 2, 2, 0], sizes = [1, 16, 16, 4], strides = [1, 1, 1, 1]} : vector<1x18x18x4xf32> to vector<1x16x16x4xf32>
    %49 = vector.shape_cast %48 : vector<1x16x16x4xf32> to vector<256x4xf32>
    %c8 = arith.constant 8 : index
    %c0_27 = arith.constant 0 : index
    %c0_28 = arith.constant 0 : index
    %50 = vector.load %arg2[%c8, %c0_27, %c0_28] : memref<9x4x32xf32, #tpu.memory_space<vmem>>, vector<1x4x32xf32>
    %51 = vector.shape_cast %50 : vector<1x4x32xf32> to vector<4x32xf32>
    %cst_29 = arith.constant dense<0.000000e+00> : vector<256x32xf32>
    %52 = tpu.matmul %49, %51, %cst_29 {dimension_numbers = #tpu.dot_dimension_numbers<[1], [0], [0], [1], [0, 0, 1, 1], [], []>} : vector<256x4xf32>, vector<4x32xf32>, vector<256x32xf32> -> vector<256x32xf32>
    %53 = arith.addf %47, %52 : vector<256x32xf32>
    %c0_30 = arith.constant 0 : index
    %c0_31 = arith.constant 0 : index
    %54 = vector.load %arg3[%c0_30, %c0_31] : memref<1x32xf32, #tpu.memory_space<vmem>>, vector<1x32xf32>
    %55 = vector.broadcast %54 : vector<1x32xf32> to vector<256x32xf32>
    %56 = arith.addf %53, %55 : vector<256x32xf32>
    %cst_32 = arith.constant 0.000000e+00 : f32
    %57 = vector.broadcast %cst_32 : f32 to vector<256x32xf32>
    %58 = arith.maximumf %56, %57 : vector<256x32xf32>
    %59 = vector.shape_cast %58 : vector<256x32xf32> to vector<1x256x32xf32>
    %cst_33 = arith.constant dense<0.000000e+00> : vector<1x32xf32>
    %60 = vector.multi_reduction <add>, %59, %cst_33 [1] : vector<1x256x32xf32> to vector<1x32xf32>
    %cst_34 = arith.constant 3.906250e-03 : f32
    %61 = vector.broadcast %cst_34 : f32 to vector<1x32xf32>
    %62 = arith.mulf %60, %61 : vector<1x32xf32>
    %c0_35 = arith.constant 0 : index
    %c0_36 = arith.constant 0 : index
    %63 = vector.load %arg4[%c0_35, %c0_36] : memref<32x8xf32, #tpu.memory_space<vmem>>, vector<32x8xf32>
    %cst_37 = arith.constant dense<0.000000e+00> : vector<1x8xf32>
    %64 = tpu.matmul %62, %63, %cst_37 {dimension_numbers = #tpu.dot_dimension_numbers<[1], [0], [0], [1], [0, 0, 1, 1], [], []>} : vector<1x32xf32>, vector<32x8xf32>, vector<1x8xf32> -> vector<1x8xf32>
    %c0_38 = arith.constant 0 : index
    %c0_39 = arith.constant 0 : index
    %65 = vector.load %arg5[%c0_38, %c0_39] : memref<1x8xf32, #tpu.memory_space<vmem>>, vector<1x8xf32>
    %66 = arith.addf %64, %65 : vector<1x8xf32>
    %67 = math.absf %66 : vector<1x8xf32>
    %cst_40 = arith.constant 0.000000e+00 : f32
    %68 = vector.broadcast %cst_40 : f32 to vector<1x8xf32>
    %69 = arith.subf %68, %67 : vector<1x8xf32>
    %70 = math.exp %69 : vector<1x8xf32>
    %cst_41 = arith.constant 1.000000e+00 : f32
    %71 = vector.broadcast %cst_41 : f32 to vector<1x8xf32>
    %72 = arith.addf %71, %70 : vector<1x8xf32>
    %73 = tpu.reciprocal %72 : vector<1x8xf32> -> vector<1x8xf32>
    %cst_42 = arith.constant 0.000000e+00 : f32
    %74 = vector.broadcast %cst_42 : f32 to vector<1x8xf32>
    %75 = arith.cmpf oge, %66, %74 : vector<1x8xf32>
    %76 = arith.mulf %70, %73 : vector<1x8xf32>
    %77 = arith.select %75, %73, %76 : vector<1x8xi1>, vector<1x8xf32>
    %c0_43 = arith.constant 0 : index
    %c0_44 = arith.constant 0 : index
    %c0_45 = arith.constant 0 : index
    %78 = vector.load %arg12[%c0_43, %c0_44, %c0_45] : memref<1x1x8xf32, #tpu.memory_space<vmem>>, vector<1x1x8xf32>
    %79 = vector.shape_cast %78 : vector<1x1x8xf32> to vector<1x8xf32>
    %80 = vector.shape_cast %77 : vector<1x8xf32> to vector<1x1x8xf32>
    tpu.vector_store %arg12[%c0_43, %c0_44, %c0_45], %80 {strides = array<i32>} : memref<1x1x8xf32, #tpu.memory_space<vmem>>, vector<1x1x8xf32>,
    %c0_46 = arith.constant 0 : index
    %c0_47 = arith.constant 0 : index
    %81 = vector.load %arg6[%c0_46, %c0_47] : memref<32x32xf32, #tpu.memory_space<vmem>>, vector<32x32xf32>
    %cst_48 = arith.constant dense<0.000000e+00> : vector<1x32xf32>
    %82 = tpu.matmul %62, %81, %cst_48 {dimension_numbers = #tpu.dot_dimension_numbers<[1], [0], [0], [1], [0, 0, 1, 1], [], []>} : vector<1x32xf32>, vector<32x32xf32>, vector<1x32xf32> -> vector<1x32xf32>
    %c0_49 = arith.constant 0 : index
    %c0_50 = arith.constant 0 : index
    %83 = vector.load %arg7[%c0_49, %c0_50] : memref<1x32xf32, #tpu.memory_space<vmem>>, vector<1x32xf32>
    %84 = arith.addf %82, %83 : vector<1x32xf32>
    %cst_51 = arith.constant 0.000000e+00 : f32
    %85 = vector.broadcast %cst_51 : f32 to vector<1x32xf32>
    %86 = arith.maximumf %84, %85 : vector<1x32xf32>
    %c0_52 = arith.constant 0 : index
    %c0_53 = arith.constant 0 : index
    %87 = vector.load %arg8[%c0_52, %c0_53] : memref<32x32xf32, #tpu.memory_space<vmem>>, vector<32x32xf32>
    %cst_54 = arith.constant dense<0.000000e+00> : vector<1x32xf32>
    %88 = tpu.matmul %86, %87, %cst_54 {dimension_numbers = #tpu.dot_dimension_numbers<[1], [0], [0], [1], [0, 0, 1, 1], [], []>} : vector<1x32xf32>, vector<32x32xf32>, vector<1x32xf32> -> vector<1x32xf32>
    %c0_55 = arith.constant 0 : index
    %c0_56 = arith.constant 0 : index
    %89 = vector.load %arg9[%c0_55, %c0_56] : memref<1x32xf32, #tpu.memory_space<vmem>>, vector<1x32xf32>
    %90 = arith.addf %88, %89 : vector<1x32xf32>
    %cst_57 = arith.constant 0.000000e+00 : f32
    %91 = vector.broadcast %cst_57 : f32 to vector<1x32xf32>
    %92 = arith.maximumf %90, %91 : vector<1x32xf32>
    %c0_58 = arith.constant 0 : index
    %c0_59 = arith.constant 0 : index
    %93 = vector.load %arg10[%c0_58, %c0_59] : memref<32x8xf32, #tpu.memory_space<vmem>>, vector<32x8xf32>
    %cst_60 = arith.constant dense<0.000000e+00> : vector<1x8xf32>
    %94 = tpu.matmul %92, %93, %cst_60 {dimension_numbers = #tpu.dot_dimension_numbers<[1], [0], [0], [1], [0, 0, 1, 1], [], []>} : vector<1x32xf32>, vector<32x8xf32>, vector<1x8xf32> -> vector<1x8xf32>
    %c0_61 = arith.constant 0 : index
    %c0_62 = arith.constant 0 : index
    %95 = vector.load %arg11[%c0_61, %c0_62] : memref<1x8xf32, #tpu.memory_space<vmem>>, vector<1x8xf32>
    %96 = arith.addf %94, %95 : vector<1x8xf32>
    %cst_63 = arith.constant dense<0xFF800000> : vector<1xf32>
    %97 = vector.multi_reduction <maximumf>, %96, %cst_63 [1] : vector<1x8xf32> to vector<1xf32>
    %98 = vector.shape_cast %97 : vector<1xf32> to vector<1x1xf32>
    %99 = vector.broadcast %98 : vector<1x1xf32> to vector<1x8xf32>
    %100 = arith.subf %96, %99 : vector<1x8xf32>
    %101 = math.exp %100 : vector<1x8xf32>
    %cst_64 = arith.constant dense<0.000000e+00> : vector<1xf32>
    %102 = vector.multi_reduction <add>, %101, %cst_64 [1] : vector<1x8xf32> to vector<1xf32>
    %103 = vector.shape_cast %102 : vector<1xf32> to vector<1x1xf32>
    %104 = tpu.reciprocal %103 : vector<1x1xf32> -> vector<1x1xf32>
    %105 = vector.broadcast %104 : vector<1x1xf32> to vector<1x8xf32>
    %106 = arith.mulf %101, %105 : vector<1x8xf32>
    %c0_65 = arith.constant 0 : index
    %c0_66 = arith.constant 0 : index
    %c0_67 = arith.constant 0 : index
    %107 = vector.load %arg13[%c0_65, %c0_66, %c0_67] : memref<1x1x8xf32, #tpu.memory_space<vmem>>, vector<1x1x8xf32>
    %108 = vector.shape_cast %107 : vector<1x1x8xf32> to vector<1x8xf32>
    %109 = vector.shape_cast %106 : vector<1x8xf32> to vector<1x1x8xf32>
    tpu.vector_store %arg13[%c0_65, %c0_66, %c0_67], %109 {strides = array<i32>} : memref<1x1x8xf32, #tpu.memory_space<vmem>>, vector<1x1x8xf32>,
    return
  }
  func.func @transform_0(%arg0: i32) -> (i32, i32, i32, i32) {
    %c0_i32 = arith.constant 0 : i32
    %c0_i32_0 = arith.constant 0 : i32
    %c0_i32_1 = arith.constant 0 : i32
    %c0_i32_2 = arith.constant 0 : i32
    return %arg0, %c0_i32, %c0_i32_0, %c0_i32_1 : i32, i32, i32, i32
  }
  func.func @transform_1(%arg0: i32) -> (i32, i32, i32) {
    %c0_i32 = arith.constant 0 : i32
    %c0_i32_0 = arith.constant 0 : i32
    %c0_i32_1 = arith.constant 0 : i32
    %c0_i32_2 = arith.constant 0 : i32
    return %c0_i32, %c0_i32_0, %c0_i32_1 : i32, i32, i32
  }
  func.func @transform_2(%arg0: i32) -> (i32, i32) {
    %c0_i32 = arith.constant 0 : i32
    %c0_i32_0 = arith.constant 0 : i32
    %c0_i32_1 = arith.constant 0 : i32
    return %c0_i32, %c0_i32_0 : i32, i32
  }
  func.func @transform_3(%arg0: i32) -> (i32, i32) {
    %c0_i32 = arith.constant 0 : i32
    %c0_i32_0 = arith.constant 0 : i32
    %c0_i32_1 = arith.constant 0 : i32
    return %c0_i32, %c0_i32_0 : i32, i32
  }
  func.func @transform_4(%arg0: i32) -> (i32, i32) {
    %c0_i32 = arith.constant 0 : i32
    %c0_i32_0 = arith.constant 0 : i32
    %c0_i32_1 = arith.constant 0 : i32
    return %c0_i32, %c0_i32_0 : i32, i32
  }
  func.func @transform_5(%arg0: i32) -> (i32, i32) {
    %c0_i32 = arith.constant 0 : i32
    %c0_i32_0 = arith.constant 0 : i32
    %c0_i32_1 = arith.constant 0 : i32
    return %c0_i32, %c0_i32_0 : i32, i32
  }
  func.func @transform_6(%arg0: i32) -> (i32, i32) {
    %c0_i32 = arith.constant 0 : i32
    %c0_i32_0 = arith.constant 0 : i32
    %c0_i32_1 = arith.constant 0 : i32
    return %c0_i32, %c0_i32_0 : i32, i32
  }
  func.func @transform_7(%arg0: i32) -> (i32, i32) {
    %c0_i32 = arith.constant 0 : i32
    %c0_i32_0 = arith.constant 0 : i32
    %c0_i32_1 = arith.constant 0 : i32
    return %c0_i32, %c0_i32_0 : i32, i32
  }
  func.func @transform_8(%arg0: i32) -> (i32, i32) {
    %c0_i32 = arith.constant 0 : i32
    %c0_i32_0 = arith.constant 0 : i32
    %c0_i32_1 = arith.constant 0 : i32
    return %c0_i32, %c0_i32_0 : i32, i32
  }
  func.func @transform_9(%arg0: i32) -> (i32, i32) {
    %c0_i32 = arith.constant 0 : i32
    %c0_i32_0 = arith.constant 0 : i32
    %c0_i32_1 = arith.constant 0 : i32
    return %c0_i32, %c0_i32_0 : i32, i32
  }
  func.func @transform_10(%arg0: i32) -> (i32, i32) {
    %c0_i32 = arith.constant 0 : i32
    %c0_i32_0 = arith.constant 0 : i32
    %c0_i32_1 = arith.constant 0 : i32
    return %c0_i32, %c0_i32_0 : i32, i32
  }
  func.func @transform_11(%arg0: i32) -> (i32, i32, i32) {
    %c0_i32 = arith.constant 0 : i32
    %c0_i32_0 = arith.constant 0 : i32
    %c0_i32_1 = arith.constant 0 : i32
    return %arg0, %c0_i32, %c0_i32_0 : i32, i32, i32
  }
  func.func @transform_12(%arg0: i32) -> (i32, i32, i32) {
    %c0_i32 = arith.constant 0 : i32
    %c0_i32_0 = arith.constant 0 : i32
    %c0_i32_1 = arith.constant 0 : i32
    return %arg0, %c0_i32, %c0_i32_0 : i32, i32, i32
  }
}

</mosaic_0001>

<llo_original>
// kernel: dense_rank_head.1
$region0: #{dense_rank_head.1}
  #allocation0 [shape = 'u32[]', space=smem, size = 0x4, offset = 0x4, fixed_abs, tag = 'smem constant byte address 0x4 - core index']
  #allocation1 [shape = 'u32[144,128]{1,0:T(1,128)}', space=vmem, size = 0x12000, scoped, tag = 'internal scratch']
  %s0 = inlined_call_operand.vmem [shape: f32[2,18,18,4], index: 0, kind: input, shape index: {}]
  %s1 = inlined_call_operand.vmem [shape: f32[9,4,32], index: 1, kind: input, shape index: {}]
  %s2 = inlined_call_operand.vmem [shape: f32[1,32], index: 2, kind: input, shape index: {}]
  %s3 = inlined_call_operand.vmem [shape: f32[32,8], index: 3, kind: input, shape index: {}]
  %s4 = inlined_call_operand.vmem [shape: f32[1,8], index: 4, kind: input, shape index: {}]
  %s5 = inlined_call_operand.vmem [shape: f32[32,32], index: 5, kind: input, shape index: {}]
  %s6 = inlined_call_operand.vmem [shape: f32[1,32], index: 6, kind: input, shape index: {}]
  %s7 = inlined_call_operand.vmem [shape: f32[32,32], index: 7, kind: input, shape index: {}]
  %s8 = inlined_call_operand.vmem [shape: f32[1,32], index: 8, kind: input, shape index: {}]
  %s9 = inlined_call_operand.vmem [shape: f32[32,8], index: 9, kind: input, shape index: {}]
  %s10 = inlined_call_operand.vmem [shape: f32[1,8], index: 10, kind: input, shape index: {}]
  %s11 = inlined_call_operand.hbm [shape: f32[2,1,8], index: 11, kind: output, shape index: {0}]
  %s12 = inlined_call_operand.hbm [shape: f32[2,1,8], index: 12, kind: output, shape index: {1}]
  %13 = xla_tuple %s11, %s12
  %s14 = sld [smem:[#allocation0]]
  $region85: #{dense_rank_head.1} parent=0
    _
  %s16 = ssub.s32 1, %s14
  %s17 = scalar_select 0, %s16, %s14
  $region1: #{dense_rank_head.1} parent=0
    #allocation2 [shape = 'u8[1024]{0}', space=vmem, size = 0x400, scoped, tag = 'output window, operand 0']
    #allocation3 [shape = 's32[2]{0}', space=sflag, size = 0x8, scoped, tag = 'scoped memory for dense_rank_head.1']
    #allocation4 [shape = 'u8[1024]{0}', space=vmem, size = 0x400, scoped, tag = 'output window, operand 1']
    #allocation5 [shape = 's32[2]{0}', space=sflag, size = 0x8, scoped, tag = 'scoped memory for dense_rank_head.1']
    %18 = vsyncpa [#allocation3], 0
    %s19 = scalar_lea.sflag [#allocation3], 1
    %20 = vsyncpa %s19, 0
    %21 = vsyncpa [#allocation5], 0
    %s22 = scalar_lea.sflag [#allocation5], 1
    %23 = vsyncpa %s22, 0
    loop: start=0, step=1, limit=4
    $region2: #{dense_rank_head.1} parent=1 // loop_pre_header
      _
    $region3: #{dense_rank_head.1} parent=1 // loop_header
      %s25 = sphi 0, %s29
      %p26 = scmp.ge.s32.totalorder %s25, 4
      %s35 = sphi 0, %s37
      %s38 = sphi 0, %s35
      %s39 = sphi 0, %s38
      %s55 = sphi 0, %s39
      %s59 = sphi 0, %s59
      %s61 = sphi 0, %s59
      %s62 = sphi 0, %s61
      %s76 = sphi 0, %s62
      %s80 = sphi 0, %s80
      %s82 = sphi 0, %s80
      %s83 = sphi 0, %s82
      %s97 = sphi 0, %s83
      %s101 = sphi 0, %s101
      %s103 = sphi 0, %s101
      %s104 = sphi 0, %s103
      %s118 = sphi 0, %s104
      %s122 = sphi 0, %s122
      %s124 = sphi 0, %s122
      %s125 = sphi 0, %s124
      %s139 = sphi 0, %s125
      %s143 = sphi 0, %s143
      %s145 = sphi 0, %s143
      %s146 = sphi 0, %s145
      %s160 = sphi 0, %s146
      %s164 = sphi 0, %s164
      %s166 = sphi 0, %s164
      %s167 = sphi 0, %s166
      %s181 = sphi 0, %s167
      %s185 = sphi 0, %s185
      %s187 = sphi 0, %s185
      %s188 = sphi 0, %s187
      %s202 = sphi 0, %s188
      %s206 = sphi 0, %s206
      %s208 = sphi 0, %s206
      %s209 = sphi 0, %s208
      %s223 = sphi 0, %s209
      %s227 = sphi 0, %s227
      %s229 = sphi 0, %s227
      %s230 = sphi 0, %s229
      %s244 = sphi 0, %s230
      %s248 = sphi 0, %s248
      %s250 = sphi 0, %s248
      %s251 = sphi 0, %s250
      %s265 = sphi 0, %s251
      %s271 = sphi 0, %s273
      %s274 = sphi 0, %s271
      %s275 = sphi 0, %s274
      %s291 = sphi 0, %s275
      %s297 = sphi 0, %s299
      %s300 = sphi 0, %s297
      %s301 = sphi 0, %s300
      %s317 = sphi 0, %s301
    $region4: #{dense_rank_head.1} parent=1 // loop_header_branch
      %28 = sbr.rel (%p26) target = $region8
    $region5: #{dense_rank_head.1} parent=1 // loop_body
      %s30 = ssub.s32 %s25, 1
      %s31 = ssub.s32 %s25, 2
      %s32 = sadd.s32 %s25, 1
      %s33 = ssub.s32 %s25, %s32
      %p34 = scmp.eq.s32.totalorder %s33, 0
      %s36 = sadd.s32 %s35, 1
      %s37 = scalar_select %p34, %s35, %s36
      %p40 = pneg %p34
      %p41 = scmp.eq.s32.totalorder %s25, 1
      %p42 = por %p40, %p41
      %p43 = scmp.ne.s32.totalorder %s35, %s38
      %p44 = scmp.eq.s32.totalorder %s25, 0
      %p45 = por %p43, %p44
      %p46 = scmp.ne.s32.totalorder %s35, %s38
      %p47 = scmp.eq.s32.totalorder %s30, 1
      %p48 = por %p46, %p47
      %p49 = scmp.ne.s32.totalorder %s38, %s39
      %p50 = scmp.eq.s32.totalorder %s30, 0
      %p51 = por %p49, %p50
      %p52 = scmp.ne.s32.totalorder %s38, %s39
      %p53 = scmp.eq.s32.totalorder %s31, 1
      %p54 = por %p52, %p53
      %p56 = scmp.ne.s32.totalorder %s39, %s55
      %p57 = scmp.eq.s32.totalorder %s31, 0
      %p58 = por %p56, %p57
      %s60 = sadd.s32 %s59, 1
      %p63 = scmp.eq.s32.totalorder %s25, 1
      %p64 = scmp.ne.s32.totalorder %s59, %s61
      %p65 = scmp.eq.s32.totalorder %s25, 0
      %p66 = por %p64, %p65
      %p67 = scmp.ne.s32.totalorder %s59, %s61
      %p68 = scmp.eq.s32.totalorder %s30, 1
      %p69 = por %p67, %p68
      %p70 = scmp.ne.s32.totalorder %s61, %s62
      %p71 = scmp.eq.s32.totalorder %s30, 0
      %p72 = por %p70, %p71
      %p73 = scmp.ne.s32.totalorder %s61, %s62
      %p74 = scmp.eq.s32.totalorder %s31, 1
      %p75 = por %p73, %p74
      %p77 = scmp.ne.s32.totalorder %s62, %s76
      %p78 = scmp.eq.s32.totalorder %s31, 0
      %p79 = por %p77, %p78
      %s81 = sadd.s32 %s80, 1
      %p84 = scmp.eq.s32.totalorder %s25, 1
      %p85 = scmp.ne.s32.totalorder %s80, %s82
      %p86 = scmp.eq.s32.totalorder %s25, 0
      %p87 = por %p85, %p86
      %p88 = scmp.ne.s32.totalorder %s80, %s82
      %p89 = scmp.eq.s32.totalorder %s30, 1
      %p90 = por %p88, %p89
      %p91 = scmp.ne.s32.totalorder %s82, %s83
      %p92 = scmp.eq.s32.totalorder %s30, 0
      %p93 = por %p91, %p92
      %p94 = scmp.ne.s32.totalorder %s82, %s83
      %p95 = scmp.eq.s32.totalorder %s31, 1
      %p96 = por %p94, %p95
      %p98 = scmp.ne.s32.totalorder %s83, %s97
      %p99 = scmp.eq.s32.totalorder %s31, 0
      %p100 = por %p98, %p99
      %s102 = sadd.s32 %s101, 1
      %p105 = scmp.eq.s32.totalorder %s25, 1
      %p106 = scmp.ne.s32.totalorder %s101, %s103
      %p107 = scmp.eq.s32.totalorder %s25, 0
      %p108 = por %p106, %p107
      %p109 = scmp.ne.s32.totalorder %s101, %s103
      %p110 = scmp.eq.s32.totalorder %s30, 1
      %p111 = por %p109, %p110
      %p112 = scmp.ne.s32.totalorder %s103, %s104
      %p113 = scmp.eq.s32.totalorder %s30, 0
      %p114 = por %p112, %p113
      %p115 = scmp.ne.s32.totalorder %s103, %s104
      %p116 = scmp.eq.s32.totalorder %s31, 1
      %p117 = por %p115, %p116
      %p119 = scmp.ne.s32.totalorder %s104, %s118
      %p120 = scmp.eq.s32.totalorder %s31, 0
      %p121 = por %p119, %p120
      %s123 = sadd.s32 %s122, 1
      %p126 = scmp.eq.s32.totalorder %s25, 1
      %p127 = scmp.ne.s32.totalorder %s122, %s124
      %p128 = scmp.eq.s32.totalorder %s25, 0
      %p129 = por %p127, %p128
      %p130 = scmp.ne.s32.totalorder %s122, %s124
      %p131 = scmp.eq.s32.totalorder %s30, 1
      %p132 = por %p130, %p131
      %p133 = scmp.ne.s32.totalorder %s124, %s125
      %p134 = scmp.eq.s32.totalorder %s30, 0
      %p135 = por %p133, %p134
      %p136 = scmp.ne.s32.totalorder %s124, %s125
      %p137 = scmp.eq.s32.totalorder %s31, 1
      %p138 = por %p136, %p137
      %p140 = scmp.ne.s32.totalorder %s125, %s139
      %p141 = scmp.eq.s32.totalorder %s31, 0
      %p142 = por %p140, %p141
      %s144 = sadd.s32 %s143, 1
      %p147 = scmp.eq.s32.totalorder %s25, 1
      %p148 = scmp.ne.s32.totalorder %s143, %s145
      %p149 = scmp.eq.s32.totalorder %s25, 0
      %p150 = por %p148, %p149
      %p151 = scmp.ne.s32.totalorder %s143, %s145
      %p152 = scmp.eq.s32.totalorder %s30, 1
      %p153 = por %p151, %p152
      %p154 = scmp.ne.s32.totalorder %s145, %s146
      %p155 = scmp.eq.s32.totalorder %s30, 0
      %p156 = por %p154, %p155
      %p157 = scmp.ne.s32.totalorder %s145, %s146
      %p158 = scmp.eq.s32.totalorder %s31, 1
      %p159 = por %p157, %p158
      %p161 = scmp.ne.s32.totalorder %s146, %s160
      %p162 = scmp.eq.s32.totalorder %s31, 0
      %p163 = por %p161, %p162
      %s165 = sadd.s32 %s164, 1
      %p168 = scmp.eq.s32.totalorder %s25, 1
      %p169 = scmp.ne.s32.totalorder %s164, %s166
      %p170 = scmp.eq.s32.totalorder %s25, 0
      %p171 = por %p169, %p170
      %p172 = scmp.ne.s32.totalorder %s164, %s166
      %p173 = scmp.eq.s32.totalorder %s30, 1
      %p174 = por %p172, %p173
      %p175 = scmp.ne.s32.totalorder %s166, %s167
      %p176 = scmp.eq.s32.totalorder %s30, 0
      %p177 = por %p175, %p176
      %p178 = scmp.ne.s32.totalorder %s166, %s167
      %p179 = scmp.eq.s32.totalorder %s31, 1
      %p180 = por %p178, %p179
      %p182 = scmp.ne.s32.totalorder %s167, %s181
      %p183 = scmp.eq.s32.totalorder %s31, 0
      %p184 = por %p182, %p183
      %s186 = sadd.s32 %s185, 1
      %p189 = scmp.eq.s32.totalorder %s25, 1
      %p190 = scmp.ne.s32.totalorder %s185, %s187
      %p191 = scmp.eq.s32.totalorder %s25, 0
      %p192 = por %p190, %p191
      %p193 = scmp.ne.s32.totalorder %s185, %s187
      %p194 = scmp.eq.s32.totalorder %s30, 1
      %p195 = por %p193, %p194
      %p196 = scmp.ne.s32.totalorder %s187, %s188
      %p197 = scmp.eq.s32.totalorder %s30, 0
      %p198 = por %p196, %p197
      %p199 = scmp.ne.s32.totalorder %s187, %s188
      %p200 = scmp.eq.s32.totalorder %s31, 1
      %p201 = por %p199, %p200
      %p203 = scmp.ne.s32.totalorder %s188, %s202
      %p204 = scmp.eq.s32.totalorder %s31, 0
      %p205 = por %p203, %p204
      %s207 = sadd.s32 %s206, 1
      %p210 = scmp.eq.s32.totalorder %s25, 1
      %p211 = scmp.ne.s32.totalorder %s206, %s208
      %p212 = scmp.eq.s32.totalorder %s25, 0
      %p213 = por %p211, %p212
      %p214 = scmp.ne.s32.totalorder %s206, %s208
      %p215 = scmp.eq.s32.totalorder %s30, 1
      %p216 = por %p214, %p215
      %p217 = scmp.ne.s32.totalorder %s208, %s209
      %p218 = scmp.eq.s32.totalorder %s30, 0
      %p219 = por %p217, %p218
      %p220 = scmp.ne.s32.totalorder %s208, %s209
      %p221 = scmp.eq.s32.totalorder %s31, 1
      %p222 = por %p220, %p221
      %p224 = scmp.ne.s32.totalorder %s209, %s223
      %p225 = scmp.eq.s32.totalorder %s31, 0
      %p226 = por %p224, %p225
      %s228 = sadd.s32 %s227, 1
      %p231 = scmp.eq.s32.totalorder %s25, 1
      %p232 = scmp.ne.s32.totalorder %s227, %s229
      %p233 = scmp.eq.s32.totalorder %s25, 0
      %p234 = por %p232, %p233
      %p235 = scmp.ne.s32.totalorder %s227, %s229
      %p236 = scmp.eq.s32.totalorder %s30, 1
      %p237 = por %p235, %p236
      %p238 = scmp.ne.s32.totalorder %s229, %s230
      %p239 = scmp.eq.s32.totalorder %s30, 0
      %p240 = por %p238, %p239
      %p241 = scmp.ne.s32.totalorder %s229, %s230
      %p242 = scmp.eq.s32.totalorder %s31, 1
      %p243 = por %p241, %p242
      %p245 = scmp.ne.s32.totalorder %s230, %s244
      %p246 = scmp.eq.s32.totalorder %s31, 0
      %p247 = por %p245, %p246
      %s249 = sadd.s32 %s248, 1
      %p252 = scmp.eq.s32.totalorder %s25, 1
      %p253 = scmp.ne.s32.totalorder %s248, %s250
      %p254 = scmp.eq.s32.totalorder %s25, 0
      %p255 = por %p253, %p254
      %p256 = scmp.ne.s32.totalorder %s248, %s250
      %p257 = scmp.eq.s32.totalorder %s30, 1
      %p258 = por %p256, %p257
      %p259 = scmp.ne.s32.totalorder %s250, %s251
      %p260 = scmp.eq.s32.totalorder %s30, 0
      %p261 = por %p259, %p260
      %p262 = scmp.ne.s32.totalorder %s250, %s251
      %p263 = scmp.eq.s32.totalorder %s31, 1
      %p264 = por %p262, %p263
      %p266 = scmp.ne.s32.totalorder %s251, %s265
      %p267 = scmp.eq.s32.totalorder %s31, 0
      %p268 = por %p266, %p267
      %s269 = ssub.s32 %s25, %s32
      %p270 = scmp.eq.s32.totalorder %s269, 0
      %s272 = sadd.s32 %s271, 1
      %s273 = scalar_select %p270, %s271, %s272
      %p276 = pneg %p270
      %p277 = scmp.eq.s32.totalorder %s25, 1
      %p278 = por %p276, %p277
      %p279 = scmp.ne.s32.totalorder %s271, %s274
      %p280 = scmp.eq.s32.totalorder %s25, 0
      %p281 = por %p279, %p280
      %p282 = scmp.ne.s32.totalorder %s271, %s274
      %p283 = scmp.eq.s32.totalorder %s30, 1
      %p284 = por %p282, %p283
      %p285 = scmp.ne.s32.totalorder %s274, %s275
      %p286 = scmp.eq.s32.totalorder %s30, 0
      %p287 = por %p285, %p286
      %p288 = scmp.ne.s32.totalorder %s274, %s275
      %p289 = scmp.eq.s32.totalorder %s31, 1
      %p290 = por %p288, %p289
      %p292 = scmp.ne.s32.totalorder %s275, %s291
      %p293 = scmp.eq.s32.totalorder %s31, 0
      %p294 = por %p292, %p293
      %s295 = ssub.s32 %s25, %s32
      %p296 = scmp.eq.s32.totalorder %s295, 0
      %s298 = sadd.s32 %s297, 1
      %s299 = scalar_select %p296, %s297, %s298
      %p302 = pneg %p296
      %p303 = scmp.eq.s32.totalorder %s25, 1
      %p304 = por %p302, %p303
      %p305 = scmp.ne.s32.totalorder %s297, %s300
      %p306 = scmp.eq.s32.totalorder %s25, 0
      %p307 = por %p305, %p306
      %p308 = scmp.ne.s32.totalorder %s297, %s300
      %p309 = scmp.eq.s32.totalorder %s30, 1
      %p310 = por %p308, %p309
      %p311 = scmp.ne.s32.totalorder %s300, %s301
      %p312 = scmp.eq.s32.totalorder %s30, 0
      %p313 = por %p311, %p312
      %p314 = scmp.ne.s32.totalorder %s300, %s301
      %p315 = scmp.eq.s32.totalorder %s31, 1
      %p316 = por %p314, %p315
      %p318 = scmp.ne.s32.totalorder %s301, %s317
      %p319 = scmp.eq.s32.totalorder %s31, 0
      %p320 = por %p318, %p319
      %p321 = scmp.le.s32.totalorder 1, %s25
      %p322 = scmp.lt.s32.totalorder %s25, 3
      %p323 = pnand %p321, %p322
      %p324 = pneg %p323
      // Predicated region
      $region9: #{dense_rank_head.1} parent=5 // pred_check
        _
      $region10: #{dense_rank_head.1} parent=5 // pred_check_branch
        %326 = sbr.rel (%p323) target = $region12
      $region11: #{dense_rank_head.1} parent=5 // pred_region
        %s327 = ssub.s32 %s25, 1
        // Predicated region
        $region13: #{dense_rank_head.1} parent=11 // pred_check
          %p328 = pneg %p72
        $region14: #{dense_rank_head.1} parent=11 // pred_check_branch
          %330 = sbr.rel (%p328) target = $region16
        $region15: #{dense_rank_head.1} parent=11 // pred_region
          _
        $region16: #{dense_rank_head.1} parent=11 // pred_fallthru
          _
        // Predicated region
        $region17: #{dense_rank_head.1} parent=11 // pred_check
          %p331 = pneg %p93
        $region18: #{dense_rank_head.1} parent=11 // pred_check_branch
          %333 = sbr.rel (%p331) target = $region20
        $region19: #{dense_rank_head.1} parent=11 // pred_region
          _
        $region20: #{dense_rank_head.1} parent=11 // pred_fallthru
          _
        // Predicated region
        $region21: #{dense_rank_head.1} parent=11 // pred_check
          %p334 = pneg %p114
        $region22: #{dense_rank_head.1} parent=11 // pred_check_branch
          %336 = sbr.rel (%p334) target = $region24
        $region23: #{dense_rank_head.1} parent=11 // pred_region
          _
        $region24: #{dense_rank_head.1} parent=11 // pred_fallthru
          _
        // Predicated region
        $region25: #{dense_rank_head.1} parent=11 // pred_check
          %p337 = pneg %p135
        $region26: #{dense_rank_head.1} parent=11 // pred_check_branch
          %339 = sbr.rel (%p337) target = $region28
        $region27: #{dense_rank_head.1} parent=11 // pred_region
          _
        $region28: #{dense_rank_head.1} parent=11 // pred_fallthru
          _
        // Predicated region
        $region29: #{dense_rank_head.1} parent=11 // pred_check
          %p340 = pneg %p156
        $region30: #{dense_rank_head.1} parent=11 // pred_check_branch
          %342 = sbr.rel (%p340) target = $region32
        $region31: #{dense_rank_head.1} parent=11 // pred_region
          _
        $region32: #{dense_rank_head.1} parent=11 // pred_fallthru
          _
        // Predicated region
        $region33: #{dense_rank_head.1} parent=11 // pred_check
          %p343 = pneg %p177
        $region34: #{dense_rank_head.1} parent=11 // pred_check_branch
          %345 = sbr.rel (%p343) target = $region36
        $region35: #{dense_rank_head.1} parent=11 // pred_region
          _
        $region36: #{dense_rank_head.1} parent=11 // pred_fallthru
          _
        // Predicated region
        $region37: #{dense_rank_head.1} parent=11 // pred_check
          %p346 = pneg %p198
        $region38: #{dense_rank_head.1} parent=11 // pred_check_branch
          %348 = sbr.rel (%p346) target = $region40
        $region39: #{dense_rank_head.1} parent=11 // pred_region
          _
        $region40: #{dense_rank_head.1} parent=11 // pred_fallthru
          _
        // Predicated region
        $region41: #{dense_rank_head.1} parent=11 // pred_check
          %p349 = pneg %p219
        $region42: #{dense_rank_head.1} parent=11 // pred_check_branch
          %351 = sbr.rel (%p349) target = $region44
        $region43: #{dense_rank_head.1} parent=11 // pred_region
          _
        $region44: #{dense_rank_head.1} parent=11 // pred_fallthru
          _
        // Predicated region
        $region45: #{dense_rank_head.1} parent=11 // pred_check
          %p352 = pneg %p240
        $region46: #{dense_rank_head.1} parent=11 // pred_check_branch
          %354 = sbr.rel (%p352) target = $region48
        $region47: #{dense_rank_head.1} parent=11 // pred_region
          _
        $region48: #{dense_rank_head.1} parent=11 // pred_fallthru
          _
        // Predicated region
        $region49: #{dense_rank_head.1} parent=11 // pred_check
          %p355 = pneg %p261
        $region50: #{dense_rank_head.1} parent=11 // pred_check_branch
          %357 = sbr.rel (%p355) target = $region52
        $region51: #{dense_rank_head.1} parent=11 // pred_region
          _
        $region52: #{dense_rank_head.1} parent=11 // pred_fallthru
          _
      $region12: #{dense_rank_head.1} parent=5 // pred_fallthru
        _
      %p358 = scmp.lt.s32.totalorder %s25, 2
      // Predicated region
      $region53: #{dense_rank_head.1} parent=5 // pred_check
        %p359 = pneg %p358
      $region54: #{dense_rank_head.1} parent=5 // pred_check_branch
        %361 = sbr.rel (%p359) target = $region56
      $region55: #{dense_rank_head.1} parent=5 // pred_region
        // Predicated region
        $region57: #{dense_rank_head.1} parent=55 // pred_check
          %p362 = pneg %p45
        $region58: #{dense_rank_head.1} parent=55 // pred_check_branch
          %364 = sbr.rel (%p362) target = $region60
        $region59: #{dense_rank_head.1} parent=55 // pred_region
          %p365 = scmp.lt.s32.totalorder %s25, 1
          %s366 = scalar_select %p365, %s25, 1
          %s367 = smul.addr %s366, 54
          %s368 = smul.addr %s367, 8
          %s369 = scalar_lea.vmem %s0, %s368
        $region60: #{dense_rank_head.1} parent=55 // pred_fallthru
          _
      $region56: #{dense_rank_head.1} parent=5 // pred_fallthru
        _
      %p370 = scmp.le.s32.totalorder 1, %s25
      %p371 = scmp.lt.s32.totalorder %s25, 3
      %p372 = pnand %p370, %p371
      %p373 = pneg %p372
      // Predicated region
      $region61: #{dense_rank_head.1} parent=5 // pred_check
        _
      $region62: #{dense_rank_head.1} parent=5 // pred_check_branch
        %375 = sbr.rel (%p372) target = $region64
      $region63: #{dense_rank_head.1} parent=5 // pred_region
        %s376 = ssub.s32 %s25, 1
        %p377 = scmp.lt.s32.totalorder %s30, 1
        %s378 = scalar_select %p377, %s30, 1
        %s379 = smul.addr %s378, 54
        %s380 = smul.addr %s379, 8
        %s381 = scalar_lea.vmem %s0, %s380
        %p382 = pneg %p51
        %p383 = pneg %p48
        %p384 = pneg %p72
        %p385 = pneg %p69
        %p386 = pneg %p93
        %p387 = pneg %p90
        %p388 = pneg %p114
        %p389 = pneg %p111
        %p390 = pneg %p135
        %p391 = pneg %p132
        %p392 = pneg %p156
        %p393 = pneg %p153
        %p394 = pneg %p177
        %p395 = pneg %p174
        %p396 = pneg %p198
        %p397 = pneg %p195
        %p398 = pneg %p219
        %p399 = pneg %p216
        %p400 = pneg %p240
        %p401 = pneg %p237
        %p402 = pneg %p261
        %p403 = pneg %p258
        %p404 = pneg %p287
        %p405 = pneg %p284
        %s406 = sand.u32 %s274, 1
        %s407 = scalar_lea.sflag [#allocation3], %s406
        %s408 = sand.u32 %s274, 1
        %s409 = scalar_lea.vmem [#allocation2], %s408
        %p410 = pneg %p313
        %p411 = pneg %p310
        %s412 = sand.u32 %s300, 1
        %s413 = scalar_lea.sflag [#allocation5], %s412
        %s414 = sand.u32 %s300, 1
        %s415 = scalar_lea.vmem [#allocation4], %s414
        %p416 = scmp.lt.s32.totalorder %s30, 1
        %s417 = scalar_select %p416, %s30, 1
        %s418 = smul.addr %s417, 54
        %s419 = smul.addr %s418, 8
        %s420 = scalar_lea.vmem %s0, %s419
        %v421 = vld [vmem:[%s420] sm:$0xff]
        %v422 = vld [vmem:[%s420 + $0x8] sm:$0xff]
        %v423 = vld [vmem:[%s420 + $0x10] sm:$0x3]
        %v424 = vld [vmem:[%s420 + $0x18] sm:$0xff]
        %v425 = vld [vmem:[%s420 + $0x20] sm:$0xff]
        %v426 = vld [vmem:[%s420 + $0x28] sm:$0x3]
        %v427 = vld [vmem:[%s420 + $0x30] sm:$0xff]
        %v428 = vld [vmem:[%s420 + $0x38] sm:$0xff]
        %v429 = vld [vmem:[%s420 + $0x40] sm:$0x3]
        %v430 = vld [vmem:[%s420 + $0x48] sm:$0xff]
        %v431 = vld [vmem:[%s420 + $0x50] sm:$0xff]
        %v432 = vld [vmem:[%s420 + $0x58] sm:$0x3]
        %v433 = vld [vmem:[%s420 + $0x60] sm:$0xff]
        %v434 = vld [vmem:[%s420 + $0x68] sm:$0xff]
        %v435 = vld [vmem:[%s420 + $0x70] sm:$0x3]
        %v436 = vld [vmem:[%s420 + $0x78] sm:$0xff]
        %v437 = vld [vmem:[%s420 + $0x80] sm:$0xff]
        %v438 = vld [vmem:[%s420 + $0x88] sm:$0x3]
        %v439 = vld [vmem:[%s420 + $0x90] sm:$0xff]
        %v440 = vld [vmem:[%s420 + $0x98] sm:$0xff]
        %v441 = vld [vmem:[%s420 + $0xa0] sm:$0x3]
        %v442 = vld [vmem:[%s420 + $0xa8] sm:$0xff]
        %v443 = vld [vmem:[%s420 + $0xb0] sm:$0xff]
        %v444 = vld [vmem:[%s420 + $0xb8] sm:$0x3]
        %v445 = vld [vmem:[%s420 + $0xc0] sm:$0xff]
        %v446 = vld [vmem:[%s420 + $0xc8] sm:$0xff]
        %v447 = vld [vmem:[%s420 + $0xd0] sm:$0x3]
        %v448 = vld [vmem:[%s420 + $0xd8] sm:$0xff]
        %v449 = vld [vmem:[%s420 + $0xe0] sm:$0xff]
        %v450 = vld [vmem:[%s420 + $0xe8] sm:$0x3]
        %v451 = vld [vmem:[%s420 + $0xf0] sm:$0xff]
        %v452 = vld [vmem:[%s420 + $0xf8] sm:$0xff]
        %v453 = vld [vmem:[%s420 + $0x100] sm:$0x3]
        %v454 = vld [vmem:[%s420 + $0x108] sm:$0xff]
        %v455 = vld [vmem:[%s420 + $0x110] sm:$0xff]
        %v456 = vld [vmem:[%s420 + $0x118] sm:$0x3]
        %v457 = vld [vmem:[%s420 + $0x120] sm:$0xff]
        %v458 = vld [vmem:[%s420 + $0x128] sm:$0xff]
        %v459 = vld [vmem:[%s420 + $0x130] sm:$0x3]
        %v460 = vld [vmem:[%s420 + $0x138] sm:$0xff]
        %v461 = vld [vmem:[%s420 + $0x140] sm:$0xff]
        %v462 = vld [vmem:[%s420 + $0x148] sm:$0x3]
        %v463 = vld [vmem:[%s420 + $0x150] sm:$0xff]
        %v464 = vld [vmem:[%s420 + $0x158] sm:$0xff]
        %v465 = vld [vmem:[%s420 + $0x160] sm:$0x3]
        %v466 = vld [vmem:[%s420 + $0x168] sm:$0xff]
        %v467 = vld [vmem:[%s420 + $0x170] sm:$0xff]
        %v468 = vld [vmem:[%s420 + $0x178] sm:$0x3]
        %v469 = vld [vmem:[%s420 + $0x180] sm:$0xff]
        %v470 = vld [vmem:[%s420 + $0x188] sm:$0xff]
        %v471 = vld [vmem:[%s420 + $0x190] sm:$0x3]
        %v472 = vld [vmem:[%s420 + $0x198] sm:$0xff]
        %v473 = vld [vmem:[%s420 + $0x1a0] sm:$0xff]
        %v474 = vld [vmem:[%s420 + $0x1a8] sm:$0x3]
        %v475 = vld [vmem:[%s1] sm:$0xf]
        %vm524 = vcmask 1046528
        %v525 = vrot.slane %v421, 1
        %v526 = vrot.slane %v422, 1
        %v527 = vsel %vm524, %v525, %v526
        %v528 = vrot.slane %v423, 1
        %v529 = vsel %vm524, %v526, %v528
        %v530 = vrot.slane %v424, 1
        %v531 = vrot.slane %v425, 1
        %v532 = vsel %vm524, %v530, %v531
        %v533 = vrot.slane %v426, 1
        %v534 = vsel %vm524, %v531, %v533
        %v535 = vrot.slane %v427, 1
        %v536 = vrot.slane %v428, 1
        %v537 = vsel %vm524, %v535, %v536
        %v538 = vrot.slane %v429, 1
        %v539 = vsel %vm524, %v536, %v538
        %v540 = vrot.slane %v430, 1
        %v541 = vrot.slane %v431, 1
        %v542 = vsel %vm524, %v540, %v541
        %v543 = vrot.slane %v432, 1
        %v544 = vsel %vm524, %v541, %v543
        %v545 = vrot.slane %v433, 1
        %v546 = vrot.slane %v434, 1
        %v547 = vsel %vm524, %v545, %v546
        %v548 = vrot.slane %v435, 1
        %v549 = vsel %vm524, %v546, %v548
        %v550 = vrot.slane %v436, 1
        %v551 = vrot.slane %v437, 1
        %v552 = vsel %vm524, %v550, %v551
        %v553 = vrot.slane %v438, 1
        %v554 = vsel %vm524, %v551, %v553
        %v555 = vrot.slane %v439, 1
        %v556 = vrot.slane %v440, 1
        %v557 = vsel %vm524, %v555, %v556
        %v558 = vrot.slane %v441, 1
        %v559 = vsel %vm524, %v556, %v558
        %v560 = vrot.slane %v442, 1
        %v561 = vrot.slane %v443, 1
        %v562 = vsel %vm524, %v560, %v561
        %v563 = vrot.slane %v444, 1
        %v564 = vsel %vm524, %v561, %v563
        %v565 = vrot.slane %v445, 1
        %v566 = vrot.slane %v446, 1
        %v567 = vsel %vm524, %v565, %v566
        %v568 = vrot.slane %v447, 1
        %v569 = vsel %vm524, %v566, %v568
        %v570 = vrot.slane %v448, 1
        %v571 = vrot.slane %v449, 1
        %v572 = vsel %vm524, %v570, %v571
        %v573 = vrot.slane %v450, 1
        %v574 = vsel %vm524, %v571, %v573
        %v575 = vrot.slane %v451, 1
        %v576 = vrot.slane %v452, 1
        %v577 = vsel %vm524, %v575, %v576
        %v578 = vrot.slane %v453, 1
        %v579 = vsel %vm524, %v576, %v578
        %v580 = vrot.slane %v454, 1
        %v581 = vrot.slane %v455, 1
        %v582 = vsel %vm524, %v580, %v581
        %v583 = vrot.slane %v456, 1
        %v584 = vsel %vm524, %v581, %v583
        %v585 = vrot.slane %v457, 1
        %v586 = vrot.slane %v458, 1
        %v587 = vsel %vm524, %v585, %v586
        %v588 = vrot.slane %v459, 1
        %v589 = vsel %vm524, %v586, %v588
        %v590 = vrot.slane %v460, 1
        %v591 = vrot.slane %v461, 1
        %v592 = vsel %vm524, %v590, %v591
        %v593 = vrot.slane %v462, 1
        %v594 = vsel %vm524, %v591, %v593
        %v595 = vrot.slane %v463, 1
        %v596 = vrot.slane %v464, 1
        %v597 = vsel %vm524, %v595, %v596
        %v598 = vrot.slane %v465, 1
        %v599 = vsel %vm524, %v596, %v598
        %v600 = vrot.slane %v466, 1
        %v601 = vrot.slane %v467, 1
        %v602 = vsel %vm524, %v600, %v601
        %v603 = vrot.slane %v468, 1
        %v604 = vsel %vm524, %v601, %v603
        %s605 = scalar_lea.vmem %s1, 4
        %v606 = vld [vmem:[%s605] sm:$0xf]
        %vm607 = vcmask 31744
        %v608 = vsel %vm607, %v527, 0
        %v610 = vsel %vm607, %v529, 0
        %v612 = vsel %vm607, %v532, 0
        %v614 = vsel %vm607, %v534, 0
        %v616 = vsel %vm607, %v537, 0
        %v618 = vsel %vm607, %v539, 0
        %v620 = vsel %vm607, %v542, 0
        %v622 = vsel %vm607, %v544, 0
        %v624 = vsel %vm607, %v547, 0
        %v626 = vsel %vm607, %v549, 0
        %v628 = vsel %vm607, %v552, 0
        %v630 = vsel %vm607, %v554, 0
        %v632 = vsel %vm607, %v557, 0
        %v634 = vsel %vm607, %v559, 0
        %v636 = vsel %vm607, %v562, 0
        %v638 = vsel %vm607, %v564, 0
        %v640 = vsel %vm607, %v567, 0
        %v642 = vsel %vm607, %v569, 0
        %v644 = vsel %vm607, %v572, 0
        %v646 = vsel %vm607, %v574, 0
        %v648 = vsel %vm607, %v577, 0
        %v650 = vsel %vm607, %v579, 0
        %v652 = vsel %vm607, %v582, 0
        %v654 = vsel %vm607, %v584, 0
        %v656 = vsel %vm607, %v587, 0
        %v658 = vsel %vm607, %v589, 0
        %v660 = vsel %vm607, %v592, 0
        %v662 = vsel %vm607, %v594, 0
        %v664 = vsel %vm607, %v597, 0
        %v666 = vsel %vm607, %v599, 0
        %v668 = vsel %vm607, %v602, 0
        %v670 = vsel %vm607, %v604, 0
        %vm672 = vcmask 1043456
        %v674 = vsel %vm672, %v606, 0
        %676 = vmatprep.subr.mxu0 0.0
        %677 = vmatpush1.msra.mxu0 %v674
        %678 = vmatprep.subr.mxu0 0.0
        %679 = vmatpush1.msra.mxu0 0.0
        %680 = vmatprep.subr.mxu0 0.0
        %681 = vmatpush1.msra.mxu0 0.0
        %682 = vmatprep.subr.mxu0 0.0
        %683 = vmatpush1.msra.mxu0 0.0
        %684 = vmatprep.subr.mxu0 0.0
        %685 = vmatpush1.msra.mxu0 0.0
        %686 = vmatprep.subr.mxu0 0.0
        %687 = vmatpush1.msra.mxu0 0.0
        %688 = vmatprep.subr.mxu0 0.0
        %689 = vmatpush1.msra.mxu0 0.0
        %690 = vmatprep.subr.mxu0 0.0
        %691 = vmatpush1.msra.mxu0 0.0
        %692 = vmatprep.subr.mxu0 0.0
        %693 = vmatpush1.msra.mxu0 0.0
        %694 = vmatprep.subr.mxu0 0.0
        %695 = vmatpush1.msra.mxu0 0.0
        %696 = vmatprep.subr.mxu0 0.0
        %697 = vmatpush1.msra.mxu0 0.0
        %698 = vmatprep.subr.mxu0 0.0
        %699 = vmatpush1.msra.mxu0 0.0
        %700 = vmatprep.subr.mxu0 0.0
        %701 = vmatpush1.msra.mxu0 0.0
        %702 = vmatprep.subr.mxu0 0.0
        %703 = vmatpush1.msra.mxu0 0.0
        %704 = vmatprep.subr.mxu0 0.0
        %705 = vmatpush1.msra.mxu0 0.0
        %706 = vmatprep.subr.mxu0 0.0
        %707 = vmatpush1.msra.mxu0 0.0
        %708 = vmatprep.subr.mxu0 0.0
        %709 = vmatpush1.msra.mxu0 0.0
        %710 = vmatprep.subr.mxu0 0.0
        %711 = vmatpush1.msra.mxu0 0.0
        %712 = vmatprep.subr.mxu0 0.0
        %713 = vmatpush1.msra.mxu0 0.0
        %714 = vmatprep.subr.mxu0 0.0
        %715 = vmatpush1.msra.mxu0 0.0
        %716 = vmatprep.subr.mxu0 0.0
        %717 = vmatpush1.msra.mxu0 0.0
        %718 = vmatprep.subr.mxu0 0.0
        %719 = vmatpush1.msra.mxu0 0.0
        %720 = vmatprep.subr.mxu0 0.0
        %721 = vmatpush1.msra.mxu0 0.0
        %722 = vmatprep.subr.mxu0 0.0
        %723 = vmatpush1.msra.mxu0 0.0
        %724 = vmatprep.subr.mxu0 0.0
        %725 = vmatpush1.msra.mxu0 0.0
        %726 = vmatprep.subr.mxu0 0.0
        %727 = vmatpush1.msra.mxu0 0.0
        %728 = vmatprep.subr.mxu0 0.0
        %729 = vmatpush1.msra.mxu0 0.0
        %730 = vmatprep.subr.mxu0 0.0
        %731 = vmatpush1.msra.mxu0 0.0
        %732 = vmatprep.subr.mxu0 0.0
        %733 = vmatpush1.msra.mxu0 0.0
        %734 = vmatprep.subr.mxu0 0.0
        %735 = vmatpush1.msra.mxu0 0.0
        %736 = vmatprep.subr.mxu0 0.0
        %737 = vmatpush1.msra.mxu0 0.0
        %738 = vmatprep.subr.mxu0 0.0
        %739 = vmatpush1.msra.mxu0 0.0
        %740 = vmatprep.mubr.f32.mxu0 0.0
        %741 = vmatmul.mubr.f32.gmra.mrb[0].mxu0 %v608
        %v742 = vpop.f32.mrb[0].mxu0
        %v743 = vadd.f32 0.0, %v742
        %v744 = vpop.f32.mrb[0].mxu0
        %745 = vmatprep.mubr.f32.mxu0 0.0
        %746 = vmatmul.mubr.f32.gmra.mrb[0].mxu0 %v610
        %v747 = vpop.f32.mrb[0].mxu0
        %v748 = vadd.f32 0.0, %v747
        %v749 = vpop.f32.mrb[0].mxu0
        %750 = vmatprep.mubr.f32.mxu0 0.0
        %751 = vmatmul.mubr.f32.gmra.mrb[0].mxu0 %v612
        %v752 = vpop.f32.mrb[0].mxu0
        %v753 = vadd.f32 0.0, %v752
        %v754 = vpop.f32.mrb[0].mxu0
        %755 = vmatprep.mubr.f32.mxu0 0.0
        %756 = vmatmul.mubr.f32.gmra.mrb[0].mxu0 %v614
        %v757 = vpop.f32.mrb[0].mxu0
        %v758 = vadd.f32 0.0, %v757
        %v759 = vpop.f32.mrb[0].mxu0
        %760 = vmatprep.mubr.f32.mxu0 0.0
        %761 = vmatmul.mubr.f32.gmra.mrb[0].mxu0 %v616
        %v762 = vpop.f32.mrb[0].mxu0
        %v763 = vadd.f32 0.0, %v762
        %v764 = vpop.f32.mrb[0].mxu0
        %765 = vmatprep.mubr.f32.mxu0 0.0
        %766 = vmatmul.mubr.f32.gmra.mrb[0].mxu0 %v618
        %v767 = vpop.f32.mrb[0].mxu0
        %v768 = vadd.f32 0.0, %v767
        %v769 = vpop.f32.mrb[0].mxu0
        %770 = vmatprep.mubr.f32.mxu0 0.0
        %771 = vmatmul.mubr.f32.gmra.mrb[0].mxu0 %v620
        %v772 = vpop.f32.mrb[0].mxu0
        %v773 = vadd.f32 0.0, %v772
        %v774 = vpop.f32.mrb[0].mxu0
        %775 = vmatprep.mubr.f32.mxu0 0.0
        %776 = vmatmul.mubr.f32.gmra.mrb[0].mxu0 %v622
        %v777 = vpop.f32.mrb[0].mxu0
        %v778 = vadd.f32 0.0, %v777
        %v779 = vpop.f32.mrb[0].mxu0
        %780 = vmatprep.mubr.f32.mxu0 0.0
        %781 = vmatmul.mubr.f32.gmra.mrb[0].mxu0 %v624
        %v782 = vpop.f32.mrb[0].mxu0
        %v783 = vadd.f32 0.0, %v782
        %v784 = vpop.f32.mrb[0].mxu0
        %785 = vmatprep.mubr.f32.mxu0 0.0
        %786 = vmatmul.mubr.f32.gmra.mrb[0].mxu0 %v626
        %v787 = vpop.f32.mrb[0].mxu0
        %v788 = vadd.f32 0.0, %v787
        %v789 = vpop.f32.mrb[0].mxu0
        %790 = vmatprep.mubr.f32.mxu0 0.0
        %791 = vmatmul.mubr.f32.gmra.mrb[0].mxu0 %v628
        %v792 = vpop.f32.mrb[0].mxu0
        %v793 = vadd.f32 0.0, %v792
        %v794 = vpop.f32.mrb[0].mxu0
        %795 = vmatprep.mubr.f32.mxu0 0.0
        %796 = vmatmul.mubr.f32.gmra.mrb[0].mxu0 %v630
        %v797 = vpop.f32.mrb[0].mxu0
        %v798 = vadd.f32 0.0, %v797
        %v799 = vpop.f32.mrb[0].mxu0
        %800 = vmatprep.mubr.f32.mxu0 0.0
        %801 = vmatmul.mubr.f32.gmra.mrb[0].mxu0 %v632
        %v802 = vpop.f32.mrb[0].mxu0
        %v803 = vadd.f32 0.0, %v802
        %v804 = vpop.f32.mrb[0].mxu0
        %805 = vmatprep.mubr.f32.mxu0 0.0
        %806 = vmatmul.mubr.f32.gmra.mrb[0].mxu0 %v634
        %v807 = vpop.f32.mrb[0].mxu0
        %v808 = vadd.f32 0.0, %v807
        %v809 = vpop.f32.mrb[0].mxu0
        %810 = vmatprep.mubr.f32.mxu0 0.0
        %811 = vmatmul.mubr.f32.gmra.mrb[0].mxu0 %v636
        %v812 = vpop.f32.mrb[0].mxu0
        %v813 = vadd.f32 0.0, %v812
        %v814 = vpop.f32.mrb[0].mxu0
        %815 = vmatprep.mubr.f32.mxu0 0.0
        %816 = vmatmul.mubr.f32.gmra.mrb[0].mxu0 %v638
        %v817 = vpop.f32.mrb[0].mxu0
        %v818 = vadd.f32 0.0, %v817
        %v819 = vpop.f32.mrb[0].mxu0
        %820 = vmatprep.mubr.f32.mxu0 0.0
        %821 = vmatmul.mubr.f32.gmra.mrb[0].mxu0 %v640
        %v822 = vpop.f32.mrb[0].mxu0
        %v823 = vadd.f32 0.0, %v822
        %v824 = vpop.f32.mrb[0].mxu0
        %825 = vmatprep.mubr.f32.mxu0 0.0
        %826 = vmatmul.mubr.f32.gmra.mrb[0].mxu0 %v642
        %v827 = vpop.f32.mrb[0].mxu0
        %v828 = vadd.f32 0.0, %v827
        %v829 = vpop.f32.mrb[0].mxu0
        %830 = vmatprep.mubr.f32.mxu0 0.0
        %831 = vmatmul.mubr.f32.gmra.mrb[0].mxu0 %v644
        %v832 = vpop.f32.mrb[0].mxu0
        %v833 = vadd.f32 0.0, %v832
        %v834 = vpop.f32.mrb[0].mxu0
        %835 = vmatprep.mubr.f32.mxu0 0.0
        %836 = vmatmul.mubr.f32.gmra.mrb[0].mxu0 %v646
        %v837 = vpop.f32.mrb[0].mxu0
        %v838 = vadd.f32 0.0, %v837
        %v839 = vpop.f32.mrb[0].mxu0
        %840 = vmatprep.mubr.f32.mxu0 0.0
        %841 = vmatmul.mubr.f32.gmra.mrb[0].mxu0 %v648
        %v842 = vpop.f32.mrb[0].mxu0
        %v843 = vadd.f32 0.0, %v842
        %v844 = vpop.f32.mrb[0].mxu0
        %845 = vmatprep.mubr.f32.mxu0 0.0
        %846 = vmatmul.mubr.f32.gmra.mrb[0].mxu0 %v650
        %v847 = vpop.f32.mrb[0].mxu0
        %v848 = vadd.f32 0.0, %v847
        %v849 = vpop.f32.mrb[0].mxu0
        %850 = vmatprep.mubr.f32.mxu0 0.0
        %851 = vmatmul.mubr.f32.gmra.mrb[0].mxu0 %v652
        %v852 = vpop.f32.mrb[0].mxu0
        %v853 = vadd.f32 0.0, %v852
        %v854 = vpop.f32.mrb[0].mxu0
        %855 = vmatprep.mubr.f32.mxu0 0.0
        %856 = vmatmul.mubr.f32.gmra.mrb[0].mxu0 %v654
        %v857 = vpop.f32.mrb[0].mxu0
        %v858 = vadd.f32 0.0, %v857
        %v859 = vpop.f32.mrb[0].mxu0
        %860 = vmatprep.mubr.f32.mxu0 0.0
        %861 = vmatmul.mubr.f32.gmra.mrb[0].mxu0 %v656
        %v862 = vpop.f32.mrb[0].mxu0
        %v863 = vadd.f32 0.0, %v862
        %v864 = vpop.f32.mrb[0].mxu0
        %865 = vmatprep.mubr.f32.mxu0 0.0
        %866 = vmatmul.mubr.f32.gmra.mrb[0].mxu0 %v658
        %v867 = vpop.f32.mrb[0].mxu0
        %v868 = vadd.f32 0.0, %v867
        %v869 = vpop.f32.mrb[0].mxu0
        %870 = vmatprep.mubr.f32.mxu0 0.0
        %871 = vmatmul.mubr.f32.gmra.mrb[0].mxu0 %v660
        %v872 = vpop.f32.mrb[0].mxu0
        %v873 = vadd.f32 0.0, %v872
        %v874 = vpop.f32.mrb[0].mxu0
        %875 = vmatprep.mubr.f32.mxu0 0.0
        %876 = vmatmul.mubr.f32.gmra.mrb[0].mxu0 %v662
        %v877 = vpop.f32.mrb[0].mxu0
        %v878 = vadd.f32 0.0, %v877
        %v879 = vpop.f32.mrb[0].mxu0
        %880 = vmatprep.mubr.f32.mxu0 0.0
        %881 = vmatmul.mubr.f32.gmra.mrb[0].mxu0 %v664
        %v882 = vpop.f32.mrb[0].mxu0
        %v883 = vadd.f32 0.0, %v882
        %v884 = vpop.f32.mrb[0].mxu0
        %885 = vmatprep.mubr.f32.mxu0 0.0
        %886 = vmatmul.mubr.f32.gmra.mrb[0].mxu0 %v666
        %v887 = vpop.f32.mrb[0].mxu0
        %v888 = vadd.f32 0.0, %v887
        %v889 = vpop.f32.mrb[0].mxu0
        %890 = vmatprep.mubr.f32.mxu0 0.0
        %891 = vmatmul.mubr.f32.gmra.mrb[0].mxu0 %v668
        %v892 = vpop.f32.mrb[0].mxu0
        %v893 = vadd.f32 0.0, %v892
        %v894 = vpop.f32.mrb[0].mxu0
        %895 = vmatprep.mubr.f32.mxu0 0.0
        %896 = vmatmul.mubr.f32.gmra.mrb[0].mxu0 %v670
        %v897 = vpop.f32.mrb[0].mxu0
        %v898 = vadd.f32 0.0, %v897
        %v899 = vpop.f32.mrb[0].mxu0
        %900 = vdwg.mxu0
        %v901 = vsel %vm607, %v421, 0
        %v903 = vsel %vm607, %v422, 0
        %v905 = vsel %vm607, %v424, 0
        %v907 = vsel %vm607, %v425, 0
        %v909 = vsel %vm607, %v427, 0
        %v911 = vsel %vm607, %v428, 0
        %v913 = vsel %vm607, %v430, 0
        %v915 = vsel %vm607, %v431, 0
        %v917 = vsel %vm607, %v433, 0
        %v919 = vsel %vm607, %v434, 0
        %v921 = vsel %vm607, %v436, 0
        %v923 = vsel %vm607, %v437, 0
        %v925 = vsel %vm607, %v439, 0
        %v927 = vsel %vm607, %v440, 0
        %v929 = vsel %vm607, %v442, 0
        %v931 = vsel %vm607, %v443, 0
        %v933 = vsel %vm607, %v445, 0
        %v935 = vsel %vm607, %v446, 0
        %v937 = vsel %vm607, %v448, 0
        %v939 = vsel %vm607, %v449, 0
        %v941 = vsel %vm607, %v451, 0
        %v943 = vsel %vm607, %v452, 0
        %v945 = vsel %vm607, %v454, 0
        %v947 = vsel %vm607, %v455, 0
        %v949 = vsel %vm607, %v457, 0
        %v951 = vsel %vm607, %v458, 0
        %v953 = vsel %vm607, %v460, 0
        %v955 = vsel %vm607, %v461, 0
        %v957 = vsel %vm607, %v463, 0
        %v959 = vsel %vm607, %v464, 0
        %v961 = vsel %vm607, %v466, 0
        %v963 = vsel %vm607, %v467, 0
        %v966 = vsel %vm672, %v475, 0
        %968 = vmatprep.subr.mxu0 0.0
        %969 = vmatpush1.msra.mxu0 %v966
        %970 = vmatprep.subr.mxu0 0.0
        %971 = vmatpush1.msra.mxu0 0.0
        %972 = vmatprep.subr.mxu0 0.0
        %973 = vmatpush1.msra.mxu0 0.0
        %974 = vmatprep.subr.mxu0 0.0
        %975 = vmatpush1.msra.mxu0 0.0
        %976 = vmatprep.subr.mxu0 0.0
        %977 = vmatpush1.msra.mxu0 0.0
        %978 = vmatprep.subr.mxu0 0.0
        %979 = vmatpush1.msra.mxu0 0.0
        %980 = vmatprep.subr.mxu0 0.0
        %981 = vmatpush1.msra.mxu0 0.0
        %982 = vmatprep.subr.mxu0 0.0
        %983 = vmatpush1.msra.mxu0 0.0
        %984 = vmatprep.subr.mxu0 0.0
        %985 = vmatpush1.msra.mxu0 0.0
        %986 = vmatprep.subr.mxu0 0.0
        %987 = vmatpush1.msra.mxu0 0.0
        %988 = vmatprep.subr.mxu0 0.0
        %989 = vmatpush1.msra.mxu0 0.0
        %990 = vmatprep.subr.mxu0 0.0
        %991 = vmatpush1.msra.mxu0 0.0
        %992 = vmatprep.subr.mxu0 0.0
        %993 = vmatpush1.msra.mxu0 0.0
        %994 = vmatprep.subr.mxu0 0.0
        %995 = vmatpush1.msra.mxu0 0.0
        %996 = vmatprep.subr.mxu0 0.0
        %997 = vmatpush1.msra.mxu0 0.0
        %998 = vmatprep.subr.mxu0 0.0
        %999 = vmatpush1.msra.mxu0 0.0
        %1000 = vmatprep.subr.mxu0 0.0
        %1001 = vmatpush1.msra.mxu0 0.0
        %1002 = vmatprep.subr.mxu0 0.0
        %1003 = vmatpush1.msra.mxu0 0.0
        %1004 = vmatprep.subr.mxu0 0.0
        %1005 = vmatpush1.msra.mxu0 0.0
        %1006 = vmatprep.subr.mxu0 0.0
        %1007 = vmatpush1.msra.mxu0 0.0
        %1008 = vmatprep.subr.mxu0 0.0
        %1009 = vmatpush1.msra.mxu0 0.0
        %1010 = vmatprep.subr.mxu0 0.0
        %1011 = vmatpush1.msra.mxu0 0.0
        %1012 = vmatprep.subr.mxu0 0.0
        %1013 = vmatpush1.msra.mxu0 0.0
        %1014 = vmatprep.subr.mxu0 0.0
        %1015 = vmatpush1.msra.mxu0 0.0
        %1016 = vmatprep.subr.mxu0 0.0
        %1017 = vmatpush1.msra.mxu0 0.0
        %1018 = vmatprep.subr.mxu0 0.0
        %1019 = vmatpush1.msra.mxu0 0.0
        %1020 = vmatprep.subr.mxu0 0.0
        %1021 = vmatpush1.msra.mxu0 0.0
        %1022 = vmatprep.subr.mxu0 0.0
        %1023 = vmatpush1.msra.mxu0 0.0
        %1024 = vmatprep.subr.mxu0 0.0
        %1025 = vmatpush1.msra.mxu0 0.0
        %1026 = vmatprep.subr.mxu0 0.0
        %1027 = vmatpush1.msra.mxu0 0.0
        %1028 = vmatprep.subr.mxu0 0.0
        %1029 = vmatpush1.msra.mxu0 0.0
        %1030 = vmatprep.subr.mxu0 0.0
        %1031 = vmatpush1.msra.mxu0 0.0
        %1032 = vmatprep.mubr.f32.mxu0 0.0
        %1033 = vmatmul.mubr.f32.gmra.mrb[0].mxu0 %v901
        %v1034 = vpop.f32.mrb[0].mxu0
        %v1035 = vadd.f32 %v743, %v1034
        %v1036 = vpop.f32.mrb[0].mxu0
        %1037 = vmatprep.mubr.f32.mxu0 0.0
        %1038 = vmatmul.mubr.f32.gmra.mrb[0].mxu0 %v903
        %v1039 = vpop.f32.mrb[0].mxu0
        %v1040 = vadd.f32 %v748, %v1039
        %v1041 = vpop.f32.mrb[0].mxu0
        %1042 = vmatprep.mubr.f32.mxu0 0.0
        %1043 = vmatmul.mubr.f32.gmra.mrb[0].mxu0 %v905
        %v1044 = vpop.f32.mrb[0].mxu0
        %v1045 = vadd.f32 %v753, %v1044
        %v1046 = vpop.f32.mrb[0].mxu0
        %1047 = vmatprep.mubr.f32.mxu0 0.0
        %1048 = vmatmul.mubr.f32.gmra.mrb[0].mxu0 %v907
        %v1049 = vpop.f32.mrb[0].mxu0
        %v1050 = vadd.f32 %v758, %v1049
        %v1051 = vpop.f32.mrb[0].mxu0
        %1052 = vmatprep.mubr.f32.mxu0 0.0
        %1053 = vmatmul.mubr.f32.gmra.mrb[0].mxu0 %v909
        %v1054 = vpop.f32.mrb[0].mxu0
        %v1055 = vadd.f32 %v763, %v1054
        %v1056 = vpop.f32.mrb[0].mxu0
        %1057 = vmatprep.mubr.f32.mxu0 0.0
        %1058 = vmatmul.mubr.f32.gmra.mrb[0].mxu0 %v911
        %v1059 = vpop.f32.mrb[0].mxu0
        %v1060 = vadd.f32 %v768, %v1059
        %v1061 = vpop.f32.mrb[0].mxu0
        %1062 = vmatprep.mubr.f32.mxu0 0.0
        %1063 = vmatmul.mubr.f32.gmra.mrb[0].mxu0 %v913
        %v1064 = vpop.f32.mrb[0].mxu0
        %v1065 = vadd.f32 %v773, %v1064
        %v1066 = vpop.f32.mrb[0].mxu0
        %1067 = vmatprep.mubr.f32.mxu0 0.0
        %1068 = vmatmul.mubr.f32.gmra.mrb[0].mxu0 %v915
        %v1069 = vpop.f32.mrb[0].mxu0
        %v1070 = vadd.f32 %v778, %v1069
        %v1071 = vpop.f32.mrb[0].mxu0
        %1072 = vmatprep.mubr.f32.mxu0 0.0
        %1073 = vmatmul.mubr.f32.gmra.mrb[0].mxu0 %v917
        %v1074 = vpop.f32.mrb[0].mxu0
        %v1075 = vadd.f32 %v783, %v1074
        %v1076 = vpop.f32.mrb[0].mxu0
        %1077 = vmatprep.mubr.f32.mxu0 0.0
        %1078 = vmatmul.mubr.f32.gmra.mrb[0].mxu0 %v919
        %v1079 = vpop.f32.mrb[0].mxu0
        %v1080 = vadd.f32 %v788, %v1079
        %v1081 = vpop.f32.mrb[0].mxu0
        %1082 = vmatprep.mubr.f32.mxu0 0.0
        %1083 = vmatmul.mubr.f32.gmra.mrb[0].mxu0 %v921
        %v1084 = vpop.f32.mrb[0].mxu0
        %v1085 = vadd.f32 %v793, %v1084
        %v1086 = vpop.f32.mrb[0].mxu0
        %1087 = vmatprep.mubr.f32.mxu0 0.0
        %1088 = vmatmul.mubr.f32.gmra.mrb[0].mxu0 %v923
        %v1089 = vpop.f32.mrb[0].mxu0
        %v1090 = vadd.f32 %v798, %v1089
        %v1091 = vpop.f32.mrb[0].mxu0
        %1092 = vmatprep.mubr.f32.mxu0 0.0
        %1093 = vmatmul.mubr.f32.gmra.mrb[0].mxu0 %v925
        %v1094 = vpop.f32.mrb[0].mxu0
        %v1095 = vadd.f32 %v803, %v1094
        %v1096 = vpop.f32.mrb[0].mxu0
        %1097 = vmatprep.mubr.f32.mxu0 0.0
        %1098 = vmatmul.mubr.f32.gmra.mrb[0].mxu0 %v927
        %v1099 = vpop.f32.mrb[0].mxu0
        %v1100 = vadd.f32 %v808, %v1099
        %v1101 = vpop.f32.mrb[0].mxu0
        %1102 = vmatprep.mubr.f32.mxu0 0.0
        %1103 = vmatmul.mubr.f32.gmra.mrb[0].mxu0 %v929
        %v1104 = vpop.f32.mrb[0].mxu0
        %v1105 = vadd.f32 %v813, %v1104
        %v1106 = vpop.f32.mrb[0].mxu0
        %1107 = vmatprep.mubr.f32.mxu0 0.0
        %1108 = vmatmul.mubr.f32.gmra.mrb[0].mxu0 %v931
        %v1109 = vpop.f32.mrb[0].mxu0
        %v1110 = vadd.f32 %v818, %v1109
        %v1111 = vpop.f32.mrb[0].mxu0
        %1112 = vmatprep.mubr.f32.mxu0 0.0
        %1113 = vmatmul.mubr.f32.gmra.mrb[0].mxu0 %v933
        %v1114 = vpop.f32.mrb[0].mxu0
        %v1115 = vadd.f32 %v823, %v1114
        %v1116 = vpop.f32.mrb[0].mxu0
        %1117 = vmatprep.mubr.f32.mxu0 0.0
        %1118 = vmatmul.mubr.f32.gmra.mrb[0].mxu0 %v935
        %v1119 = vpop.f32.mrb[0].mxu0
        %v1120 = vadd.f32 %v828, %v1119
        %v1121 = vpop.f32.mrb[0].mxu0
        %1122 = vmatprep.mubr.f32.mxu0 0.0
        %1123 = vmatmul.mubr.f32.gmra.mrb[0].mxu0 %v937
        %v1124 = vpop.f32.mrb[0].mxu0
        %v1125 = vadd.f32 %v833, %v1124
        %v1126 = vpop.f32.mrb[0].mxu0
        %1127 = vmatprep.mubr.f32.mxu0 0.0
        %1128 = vmatmul.mubr.f32.gmra.mrb[0].mxu0 %v939
        %v1129 = vpop.f32.mrb[0].mxu0
        %v1130 = vadd.f32 %v838, %v1129
        %v1131 = vpop.f32.mrb[0].mxu0
        %1132 = vmatprep.mubr.f32.mxu0 0.0
        %1133 = vmatmul.mubr.f32.gmra.mrb[0].mxu0 %v941
        %v1134 = vpop.f32.mrb[0].mxu0
        %v1135 = vadd.f32 %v843, %v1134
        %v1136 = vpop.f32.mrb[0].mxu0
        %1137 = vmatprep.mubr.f32.mxu0 0.0
        %1138 = vmatmul.mubr.f32.gmra.mrb[0].mxu0 %v943
        %v1139 = vpop.f32.mrb[0].mxu0
        %v1140 = vadd.f32 %v848, %v1139
        %v1141 = vpop.f32.mrb[0].mxu0
        %1142 = vmatprep.mubr.f32.mxu0 0.0
        %1143 = vmatmul.mubr.f32.gmra.mrb[0].mxu0 %v945
        %v1144 = vpop.f32.mrb[0].mxu0
        %v1145 = vadd.f32 %v853, %v1144
        %v1146 = vpop.f32.mrb[0].mxu0
        %1147 = vmatprep.mubr.f32.mxu0 0.0
        %1148 = vmatmul.mubr.f32.gmra.mrb[0].mxu0 %v947
        %v1149 = vpop.f32.mrb[0].mxu0
        %v1150 = vadd.f32 %v858, %v1149
        %v1151 = vpop.f32.mrb[0].mxu0
        %1152 = vmatprep.mubr.f32.mxu0 0.0
        %1153 = vmatmul.mubr.f32.gmra.mrb[0].mxu0 %v949
        %v1154 = vpop.f32.mrb[0].mxu0
        %v1155 = vadd.f32 %v863, %v1154
        %v1156 = vpop.f32.mrb[0].mxu0
        %1157 = vmatprep.mubr.f32.mxu0 0.0
        %1158 = vmatmul.mubr.f32.gmra.mrb[0].mxu0 %v951
        %v1159 = vpop.f32.mrb[0].mxu0
        %v1160 = vadd.f32 %v868, %v1159
        %v1161 = vpop.f32.mrb[0].mxu0
        %1162 = vmatprep.mubr.f32.mxu0 0.0
        %1163 = vmatmul.mubr.f32.gmra.mrb[0].mxu0 %v953
        %v1164 = vpop.f32.mrb[0].mxu0
        %v1165 = vadd.f32 %v873, %v1164
        %v1166 = vpop.f32.mrb[0].mxu0
        %1167 = vmatprep.mubr.f32.mxu0 0.0
        %1168 = vmatmul.mubr.f32.gmra.mrb[0].mxu0 %v955
        %v1169 = vpop.f32.mrb[0].mxu0
        %v1170 = vadd.f32 %v878, %v1169
        %v1171 = vpop.f32.mrb[0].mxu0
        %1172 = vmatprep.mubr.f32.mxu0 0.0
        %1173 = vmatmul.mubr.f32.gmra.mrb[0].mxu0 %v957
        %v1174 = vpop.f32.mrb[0].mxu0
        %v1175 = vadd.f32 %v883, %v1174
        %v1176 = vpop.f32.mrb[0].mxu0
        %1177 = vmatprep.mubr.f32.mxu0 0.0
        %1178 = vmatmul.mubr.f32.gmra.mrb[0].mxu0 %v959
        %v1179 = vpop.f32.mrb[0].mxu0
        %v1180 = vadd.f32 %v888, %v1179
        %v1181 = vpop.f32.mrb[0].mxu0
        %1182 = vmatprep.mubr.f32.mxu0 0.0
        %1183 = vmatmul.mubr.f32.gmra.mrb[0].mxu0 %v961
        %v1184 = vpop.f32.mrb[0].mxu0
        %v1185 = vadd.f32 %v893, %v1184
        %v1186 = vpop.f32.mrb[0].mxu0
        %1187 = vmatprep.mubr.f32.mxu0 0.0
        %1188 = vmatmul.mubr.f32.gmra.mrb[0].mxu0 %v963
        %v1189 = vpop.f32.mrb[0].mxu0
        %v1190 = vadd.f32 %v898, %v1189
        %v1191 = vpop.f32.mrb[0].mxu0
        %1192 = vdwg.mxu0
        %vm1193 = vcmask 1045504
        %v1194 = vrot.slane %v421, 2
        %v1195 = vrot.slane %v422, 2
        %v1196 = vsel %vm1193, %v1194, %v1195
        %v1197 = vrot.slane %v423, 2
        %v1198 = vsel %vm1193, %v1195, %v1197
        %v1199 = vrot.slane %v424, 2
        %v1200 = vrot.slane %v425, 2
        %v1201 = vsel %vm1193, %v1199, %v1200
        %v1202 = vrot.slane %v426, 2
        %v1203 = vsel %vm1193, %v1200, %v1202
        %v1204 = vrot.slane %v427, 2
        %v1205 = vrot.slane %v428, 2
        %v1206 = vsel %vm1193, %v1204, %v1205
        %v1207 = vrot.slane %v429, 2
        %v1208 = vsel %vm1193, %v1205, %v1207
        %v1209 = vrot.slane %v430, 2
        %v1210 = vrot.slane %v431, 2
        %v1211 = vsel %vm1193, %v1209, %v1210
        %v1212 = vrot.slane %v432, 2
        %v1213 = vsel %vm1193, %v1210, %v1212
        %v1214 = vrot.slane %v433, 2
        %v1215 = vrot.slane %v434, 2
        %v1216 = vsel %vm1193, %v1214, %v1215
        %v1217 = vrot.slane %v435, 2
        %v1218 = vsel %vm1193, %v1215, %v1217
        %v1219 = vrot.slane %v436, 2
        %v1220 = vrot.slane %v437, 2
        %v1221 = vsel %vm1193, %v1219, %v1220
        %v1222 = vrot.slane %v438, 2
        %v1223 = vsel %vm1193, %v1220, %v1222
        %v1224 = vrot.slane %v439, 2
        %v1225 = vrot.slane %v440, 2
        %v1226 = vsel %vm1193, %v1224, %v1225
        %v1227 = vrot.slane %v441, 2
        %v1228 = vsel %vm1193, %v1225, %v1227
        %v1229 = vrot.slane %v442, 2
        %v1230 = vrot.slane %v443, 2
        %v1231 = vsel %vm1193, %v1229, %v1230
        %v1232 = vrot.slane %v444, 2
        %v1233 = vsel %vm1193, %v1230, %v1232
        %v1234 = vrot.slane %v445, 2
        %v1235 = vrot.slane %v446, 2
        %v1236 = vsel %vm1193, %v1234, %v1235
        %v1237 = vrot.slane %v447, 2
        %v1238 = vsel %vm1193, %v1235, %v1237
        %v1239 = vrot.slane %v448, 2
        %v1240 = vrot.slane %v449, 2
        %v1241 = vsel %vm1193, %v1239, %v1240
        %v1242 = vrot.slane %v450, 2
        %v1243 = vsel %vm1193, %v1240, %v1242
        %v1244 = vrot.slane %v451, 2
        %v1245 = vrot.slane %v452, 2
        %v1246 = vsel %vm1193, %v1244, %v1245
        %v1247 = vrot.slane %v453, 2
        %v1248 = vsel %vm1193, %v1245, %v1247
        %v1249 = vrot.slane %v454, 2
        %v1250 = vrot.slane %v455, 2
        %v1251 = vsel %vm1193, %v1249, %v1250
        %v1252 = vrot.slane %v456, 2
        %v1253 = vsel %vm1193, %v1250, %v1252
        %v1254 = vrot.slane %v457, 2
        %v1255 = vrot.slane %v458, 2
        %v1256 = vsel %vm1193, %v1254, %v1255
        %v1257 = vrot.slane %v459, 2
        %v1258 = vsel %vm1193, %v1255, %v1257
        %v1259 = vrot.slane %v460, 2
        %v1260 = vrot.slane %v461, 2
        %v1261 = vsel %vm1193, %v1259, %v1260
        %v1262 = vrot.slane %v462, 2
        %v1263 = vsel %vm1193, %v1260, %v1262
        %v1264 = vrot.slane %v463, 2
        %v1265 = vrot.slane %v464, 2
        %v1266 = vsel %vm1193, %v1264, %v1265
        %v1267 = vrot.slane %v465, 2
        %v1268 = vsel %vm1193, %v1265, %v1267
        %v1269 = vrot.slane %v466, 2
        %v1270 = vrot.slane %v467, 2
        %v1271 = vsel %vm1193, %v1269, %v1270
        %v1272 = vrot.slane %v468, 2
        %v1273 = vsel %vm1193, %v1270, %v1272
        %s1274 = scalar_lea.vmem %s1, 8
        %v1275 = vld [vmem:[%s1274] sm:$0xf]
        %v1276 = vsel %vm607, %v1196, 0
        %v1278 = vsel %vm607, %v1198, 0
        %v1280 = vsel %vm607, %v1201, 0
        %v1282 = vsel %vm607, %v1203, 0
        %v1284 = vsel %vm607, %v1206, 0
        %v1286 = vsel %vm607, %v1208, 0
        %v1288 = vsel %vm607, %v1211, 0
        %v1290 = vsel %vm607, %v1213, 0
        %v1292 = vsel %vm607, %v1216, 0
        %v1294 = vsel %vm607, %v1218, 0
        %v1296 = vsel %vm607, %v1221, 0
        %v1298 = vsel %vm607, %v1223, 0
        %v1300 = vsel %vm607, %v1226, 0
        %v1302 = vsel %vm607, %v1228, 0
        %v1304 = vsel %vm607, %v1231, 0
        %v1306 = vsel %vm607, %v1233, 0
        %v1308 = vsel %vm607, %v1236, 0
        %v1310 = vsel %vm607, %v1238, 0
        %v1312 = vsel %vm607, %v1241, 0
        %v1314 = vsel %vm607, %v1243, 0
        %v1316 = vsel %vm607, %v1246, 0
        %v1318 = vsel %vm607, %v1248, 0
        %v1320 = vsel %vm607, %v1251, 0
        %v1322 = vsel %vm607, %v1253, 0
        %v1324 = vsel %vm607, %v1256, 0
        %v1326 = vsel %vm607, %v1258, 0
        %v1328 = vsel %vm607, %v1261, 0
        %v1330 = vsel %vm607, %v1263, 0
        %v1332 = vsel %vm607, %v1266, 0
        %v1334 = vsel %vm607, %v1268, 0
        %v1336 = vsel %vm607, %v1271, 0
        %v1338 = vsel %vm607, %v1273, 0
        %v1341 = vsel %vm672, %v1275, 0
        %1343 = vmatprep.subr.mxu0 0.0
        %1344 = vmatpush1.msra.mxu0 %v1341
        %1345 = vmatprep.subr.mxu0 0.0
        %1346 = vmatpush1.msra.mxu0 0.0
        %1347 = vmatprep.subr.mxu0 0.0
        %1348 = vmatpush1.msra.mxu0 0.0
        %1349 = vmatprep.subr.mxu0 0.0
        %1350 = vmatpush1.msra.mxu0 0.0
        %1351 = vmatprep.subr.mxu0 0.0
        %1352 = vmatpush1.msra.mxu0 0.0
        %1353 = vmatprep.subr.mxu0 0.0
        %1354 = vmatpush1.msra.mxu0 0.0
        %1355 = vmatprep.subr.mxu0 0.0
        %1356 = vmatpush1.msra.mxu0 0.0
        %1357 = vmatprep.subr.mxu0 0.0
        %1358 = vmatpush1.msra.mxu0 0.0
        %1359 = vmatprep.subr.mxu0 0.0
        %1360 = vmatpush1.msra.mxu0 0.0
        %1361 = vmatprep.subr.mxu0 0.0
        %1362 = vmatpush1.msra.mxu0 0.0
        %1363 = vmatprep.subr.mxu0 0.0
        %1364 = vmatpush1.msra.mxu0 0.0
        %1365 = vmatprep.subr.mxu0 0.0
        %1366 = vmatpush1.msra.mxu0 0.0
        %1367 = vmatprep.subr.mxu0 0.0
        %1368 = vmatpush1.msra.mxu0 0.0
        %1369 = vmatprep.subr.mxu0 0.0
        %1370 = vmatpush1.msra.mxu0 0.0
        %1371 = vmatprep.subr.mxu0 0.0
        %1372 = vmatpush1.msra.mxu0 0.0
        %1373 = vmatprep.subr.mxu0 0.0
        %1374 = vmatpush1.msra.mxu0 0.0
        %1375 = vmatprep.subr.mxu0 0.0
        %1376 = vmatpush1.msra.mxu0 0.0
        %1377 = vmatprep.subr.mxu0 0.0
        %1378 = vmatpush1.msra.mxu0 0.0
        %1379 = vmatprep.subr.mxu0 0.0
        %1380 = vmatpush1.msra.mxu0 0.0
        %1381 = vmatprep.subr.mxu0 0.0
        %1382 = vmatpush1.msra.mxu0 0.0
        %1383 = vmatprep.subr.mxu0 0.0
        %1384 = vmatpush1.msra.mxu0 0.0
        %1385 = vmatprep.subr.mxu0 0.0
        %1386 = vmatpush1.msra.mxu0 0.0
        %1387 = vmatprep.subr.mxu0 0.0
        %1388 = vmatpush1.msra.mxu0 0.0
        %1389 = vmatprep.subr.mxu0 0.0
        %1390 = vmatpush1.msra.mxu0 0.0
        %1391 = vmatprep.subr.mxu0 0.0
        %1392 = vmatpush1.msra.mxu0 0.0
        %1393 = vmatprep.subr.mxu0 0.0
        %1394 = vmatpush1.msra.mxu0 0.0
        %1395 = vmatprep.subr.mxu0 0.0
        %1396 = vmatpush1.msra.mxu0 0.0
        %1397 = vmatprep.subr.mxu0 0.0
        %1398 = vmatpush1.msra.mxu0 0.0
        %1399 = vmatprep.subr.mxu0 0.0
        %1400 = vmatpush1.msra.mxu0 0.0
        %1401 = vmatprep.subr.mxu0 0.0
        %1402 = vmatpush1.msra.mxu0 0.0
        %1403 = vmatprep.subr.mxu0 0.0
        %1404 = vmatpush1.msra.mxu0 0.0
        %1405 = vmatprep.subr.mxu0 0.0
        %1406 = vmatpush1.msra.mxu0 0.0
        %1407 = vmatprep.mubr.f32.mxu0 0.0
        %1408 = vmatmul.mubr.f32.gmra.mrb[0].mxu0 %v1276
        %v1409 = vpop.f32.mrb[0].mxu0
        %v1410 = vadd.f32 0.0, %v1409
        %v1411 = vpop.f32.mrb[0].mxu0
        %1412 = vmatprep.mubr.f32.mxu0 0.0
        %1413 = vmatmul.mubr.f32.gmra.mrb[0].mxu0 %v1278
        %v1414 = vpop.f32.mrb[0].mxu0
        %v1415 = vadd.f32 0.0, %v1414
        %v1416 = vpop.f32.mrb[0].mxu0
        %1417 = vmatprep.mubr.f32.mxu0 0.0
        %1418 = vmatmul.mubr.f32.gmra.mrb[0].mxu0 %v1280
        %v1419 = vpop.f32.mrb[0].mxu0
        %v1420 = vadd.f32 0.0, %v1419
        %v1421 = vpop.f32.mrb[0].mxu0
        %1422 = vmatprep.mubr.f32.mxu0 0.0
        %1423 = vmatmul.mubr.f32.gmra.mrb[0].mxu0 %v1282
        %v1424 = vpop.f32.mrb[0].mxu0
        %v1425 = vadd.f32 0.0, %v1424
        %v1426 = vpop.f32.mrb[0].mxu0
        %1427 = vmatprep.mubr.f32.mxu0 0.0
        %1428 = vmatmul.mubr.f32.gmra.mrb[0].mxu0 %v1284
        %v1429 = vpop.f32.mrb[0].mxu0
        %v1430 = vadd.f32 0.0, %v1429
        %v1431 = vpop.f32.mrb[0].mxu0
        %1432 = vmatprep.mubr.f32.mxu0 0.0
        %1433 = vmatmul.mubr.f32.gmra.mrb[0].mxu0 %v1286
        %v1434 = vpop.f32.mrb[0].mxu0
        %v1435 = vadd.f32 0.0, %v1434
        %v1436 = vpop.f32.mrb[0].mxu0
        %1437 = vmatprep.mubr.f32.mxu0 0.0
        %1438 = vmatmul.mubr.f32.gmra.mrb[0].mxu0 %v1288
        %v1439 = vpop.f32.mrb[0].mxu0
        %v1440 = vadd.f32 0.0, %v1439
        %v1441 = vpop.f32.mrb[0].mxu0
        %1442 = vmatprep.mubr.f32.mxu0 0.0
        %1443 = vmatmul.mubr.f32.gmra.mrb[0].mxu0 %v1290
        %v1444 = vpop.f32.mrb[0].mxu0
        %v1445 = vadd.f32 0.0, %v1444
        %v1446 = vpop.f32.mrb[0].mxu0
        %1447 = vmatprep.mubr.f32.mxu0 0.0
        %1448 = vmatmul.mubr.f32.gmra.mrb[0].mxu0 %v1292
        %v1449 = vpop.f32.mrb[0].mxu0
        %v1450 = vadd.f32 0.0, %v1449
        %v1451 = vpop.f32.mrb[0].mxu0
        %1452 = vmatprep.mubr.f32.mxu0 0.0
        %1453 = vmatmul.mubr.f32.gmra.mrb[0].mxu0 %v1294
        %v1454 = vpop.f32.mrb[0].mxu0
        %v1455 = vadd.f32 0.0, %v1454
        %v1456 = vpop.f32.mrb[0].mxu0
        %1457 = vmatprep.mubr.f32.mxu0 0.0
        %1458 = vmatmul.mubr.f32.gmra.mrb[0].mxu0 %v1296
        %v1459 = vpop.f32.mrb[0].mxu0
        %v1460 = vadd.f32 0.0, %v1459
        %v1461 = vpop.f32.mrb[0].mxu0
        %1462 = vmatprep.mubr.f32.mxu0 0.0
        %1463 = vmatmul.mubr.f32.gmra.mrb[0].mxu0 %v1298
        %v1464 = vpop.f32.mrb[0].mxu0
        %v1465 = vadd.f32 0.0, %v1464
        %v1466 = vpop.f32.mrb[0].mxu0
        %1467 = vmatprep.mubr.f32.mxu0 0.0
        %1468 = vmatmul.mubr.f32.gmra.mrb[0].mxu0 %v1300
        %v1469 = vpop.f32.mrb[0].mxu0
        %v1470 = vadd.f32 0.0, %v1469
        %v1471 = vpop.f32.mrb[0].mxu0
        %1472 = vmatprep.mubr.f32.mxu0 0.0
        %1473 = vmatmul.mubr.f32.gmra.mrb[0].mxu0 %v1302
        %v1474 = vpop.f32.mrb[0].mxu0
        %v1475 = vadd.f32 0.0, %v1474
        %v1476 = vpop.f32.mrb[0].mxu0
        %1477 = vmatprep.mubr.f32.mxu0 0.0
        %1478 = vmatmul.mubr.f32.gmra.mrb[0].mxu0 %v1304
        %v1479 = vpop.f32.mrb[0].mxu0
        %v1480 = vadd.f32 0.0, %v1479
        %v1481 = vpop.f32.mrb[0].mxu0
        %1482 = vmatprep.mubr.f32.mxu0 0.0
        %1483 = vmatmul.mubr.f32.gmra.mrb[0].mxu0 %v1306
        %v1484 = vpop.f32.mrb[0].mxu0
        %v1485 = vadd.f32 0.0, %v1484
        %v1486 = vpop.f32.mrb[0].mxu0
        %1487 = vmatprep.mubr.f32.mxu0 0.0
        %1488 = vmatmul.mubr.f32.gmra.mrb[0].mxu0 %v1308
        %v1489 = vpop.f32.mrb[0].mxu0
        %v1490 = vadd.f32 0.0, %v1489
        %v1491 = vpop.f32.mrb[0].mxu0
        %1492 = vmatprep.mubr.f32.mxu0 0.0
        %1493 = vmatmul.mubr.f32.gmra.mrb[0].mxu0 %v1310
        %v1494 = vpop.f32.mrb[0].mxu0
        %v1495 = vadd.f32 0.0, %v1494
        %v1496 = vpop.f32.mrb[0].mxu0
        %1497 = vmatprep.mubr.f32.mxu0 0.0
        %1498 = vmatmul.mubr.f32.gmra.mrb[0].mxu0 %v1312
        %v1499 = vpop.f32.mrb[0].mxu0
        %v1500 = vadd.f32 0.0, %v1499
        %v1501 = vpop.f32.mrb[0].mxu0
        %1502 = vmatprep.mubr.f32.mxu0 0.0
        %1503 = vmatmul.mubr.f32.gmra.mrb[0].mxu0 %v1314
        %v1504 = vpop.f32.mrb[0].mxu0
        %v1505 = vadd.f32 0.0, %v1504
        %v1506 = vpop.f32.mrb[0].mxu0
        %1507 = vmatprep.mubr.f32.mxu0 0.0
        %1508 = vmatmul.mubr.f32.gmra.mrb[0].mxu0 %v1316
        %v1509 = vpop.f32.mrb[0].mxu0
        %v1510 = vadd.f32 0.0, %v1509
        %v1511 = vpop.f32.mrb[0].mxu0
        %1512 = vmatprep.mubr.f32.mxu0 0.0
        %1513 = vmatmul.mubr.f32.gmra.mrb[0].mxu0 %v1318
        %v1514 = vpop.f32.mrb[0].mxu0
        %v1515 = vadd.f32 0.0, %v1514
        %v1516 = vpop.f32.mrb[0].mxu0
        %1517 = vmatprep.mubr.f32.mxu0 0.0
        %1518 = vmatmul.mubr.f32.gmra.mrb[0].mxu0 %v1320
        %v1519 = vpop.f32.mrb[0].mxu0
        %v1520 = vadd.f32 0.0, %v1519
        %v1521 = vpop.f32.mrb[0].mxu0
        %1522 = vmatprep.mubr.f32.mxu0 0.0
        %1523 = vmatmul.mubr.f32.gmra.mrb[0].mxu0 %v1322
        %v1524 = vpop.f32.mrb[0].mxu0
        %v1525 = vadd.f32 0.0, %v1524
        %v1526 = vpop.f32.mrb[0].mxu0
        %1527 = vmatprep.mubr.f32.mxu0 0.0
        %1528 = vmatmul.mubr.f32.gmra.mrb[0].mxu0 %v1324
        %v1529 = vpop.f32.mrb[0].mxu0
        %v1530 = vadd.f32 0.0, %v1529
        %v1531 = vpop.f32.mrb[0].mxu0
        %1532 = vmatprep.mubr.f32.mxu0 0.0
        %1533 = vmatmul.mubr.f32.gmra.mrb[0].mxu0 %v1326
        %v1534 = vpop.f32.mrb[0].mxu0
        %v1535 = vadd.f32 0.0, %v1534
        %v1536 = vpop.f32.mrb[0].mxu0
        %1537 = vmatprep.mubr.f32.mxu0 0.0
        %1538 = vmatmul.mubr.f32.gmra.mrb[0].mxu0 %v1328
        %v1539 = vpop.f32.mrb[0].mxu0
        %v1540 = vadd.f32 0.0, %v1539
        %v1541 = vpop.f32.mrb[0].mxu0
        %1542 = vmatprep.mubr.f32.mxu0 0.0
        %1543 = vmatmul.mubr.f32.gmra.mrb[0].mxu0 %v1330
        %v1544 = vpop.f32.mrb[0].mxu0
        %v1545 = vadd.f32 0.0, %v1544
        %v1546 = vpop.f32.mrb[0].mxu0
        %1547 = vmatprep.mubr.f32.mxu0 0.0
        %1548 = vmatmul.mubr.f32.gmra.mrb[0].mxu0 %v1332
        %v1549 = vpop.f32.mrb[0].mxu0
        %v1550 = vadd.f32 0.0, %v1549
        %v1551 = vpop.f32.mrb[0].mxu0
        %1552 = vmatprep.mubr.f32.mxu0 0.0
        %1553 = vmatmul.mubr.f32.gmra.mrb[0].mxu0 %v1334
        %v1554 = vpop.f32.mrb[0].mxu0
        %v1555 = vadd.f32 0.0, %v1554
        %v1556 = vpop.f32.mrb[0].mxu0
        %1557 = vmatprep.mubr.f32.mxu0 0.0
        %1558 = vmatmul.mubr.f32.gmra.mrb[0].mxu0 %v1336
        %v1559 = vpop.f32.mrb[0].mxu0
        %v1560 = vadd.f32 0.0, %v1559
        %v1561 = vpop.f32.mrb[0].mxu0
        %1562 = vmatprep.mubr.f32.mxu0 0.0
        %1563 = vmatmul.mubr.f32.gmra.mrb[0].mxu0 %v1338
        %v1564 = vpop.f32.mrb[0].mxu0
        %v1565 = vadd.f32 0.0, %v1564
        %v1566 = vpop.f32.mrb[0].mxu0
        %1567 = vdwg.mxu0
        %v1568 = vadd.f32 %v1035, %v1410
        %v1569 = vadd.f32 %v1040, %v1415
        %v1570 = vadd.f32 %v1045, %v1420
        %v1571 = vadd.f32 %v1050, %v1425
        %v1572 = vadd.f32 %v1055, %v1430
        %v1573 = vadd.f32 %v1060, %v1435
        %v1574 = vadd.f32 %v1065, %v1440
        %v1575 = vadd.f32 %v1070, %v1445
        %v1576 = vadd.f32 %v1075, %v1450
        %v1577 = vadd.f32 %v1080, %v1455
        %v1578 = vadd.f32 %v1085, %v1460
        %v1579 = vadd.f32 %v1090, %v1465
        %v1580 = vadd.f32 %v1095, %v1470
        %v1581 = vadd.f32 %v1100, %v1475
        %v1582 = vadd.f32 %v1105, %v1480
        %v1583 = vadd.f32 %v1110, %v1485
        %v1584 = vadd.f32 %v1115, %v1490
        %v1585 = vadd.f32 %v1120, %v1495
        %v1586 = vadd.f32 %v1125, %v1500
        %v1587 = vadd.f32 %v1130, %v1505
        %v1588 = vadd.f32 %v1135, %v1510
        %v1589 = vadd.f32 %v1140, %v1515
        %v1590 = vadd.f32 %v1145, %v1520
        %v1591 = vadd.f32 %v1150, %v1525
        %v1592 = vadd.f32 %v1155, %v1530
        %v1593 = vadd.f32 %v1160, %v1535
        %v1594 = vadd.f32 %v1165, %v1540
        %v1595 = vadd.f32 %v1170, %v1545
        %v1596 = vadd.f32 %v1175, %v1550
        %v1597 = vadd.f32 %v1180, %v1555
        %v1598 = vadd.f32 %v1185, %v1560
        %v1599 = vadd.f32 %v1190, %v1565
        %s1600 = scalar_lea.vmem %s1, 12
        %v1601 = vld [vmem:[%s1600] sm:$0xf]
        %v1603 = vsel %vm607, %v469, 0
        %v1606 = vsel %vm607, %v470, 0
        %v1609 = vsel %vm672, %v1601, 0
        %1611 = vmatprep.subr.mxu0 0.0
        %1612 = vmatpush1.msra.mxu0 %v1609
        %1613 = vmatprep.subr.mxu0 0.0
        %1614 = vmatpush1.msra.mxu0 0.0
        %1615 = vmatprep.subr.mxu0 0.0
        %1616 = vmatpush1.msra.mxu0 0.0
        %1617 = vmatprep.subr.mxu0 0.0
        %1618 = vmatpush1.msra.mxu0 0.0
        %1619 = vmatprep.subr.mxu0 0.0
        %1620 = vmatpush1.msra.mxu0 0.0
        %1621 = vmatprep.subr.mxu0 0.0
        %1622 = vmatpush1.msra.mxu0 0.0
        %1623 = vmatprep.subr.mxu0 0.0
        %1624 = vmatpush1.msra.mxu0 0.0
        %1625 = vmatprep.subr.mxu0 0.0
        %1626 = vmatpush1.msra.mxu0 0.0
        %1627 = vmatprep.subr.mxu0 0.0
        %1628 = vmatpush1.msra.mxu0 0.0
        %1629 = vmatprep.subr.mxu0 0.0
        %1630 = vmatpush1.msra.mxu0 0.0
        %1631 = vmatprep.subr.mxu0 0.0
        %1632 = vmatpush1.msra.mxu0 0.0
        %1633 = vmatprep.subr.mxu0 0.0
        %1634 = vmatpush1.msra.mxu0 0.0
        %1635 = vmatprep.subr.mxu0 0.0
        %1636 = vmatpush1.msra.mxu0 0.0
        %1637 = vmatprep.subr.mxu0 0.0
        %1638 = vmatpush1.msra.mxu0 0.0
        %1639 = vmatprep.subr.mxu0 0.0
        %1640 = vmatpush1.msra.mxu0 0.0
        %1641 = vmatprep.subr.mxu0 0.0
        %1642 = vmatpush1.msra.mxu0 0.0
        %1643 = vmatprep.subr.mxu0 0.0
        %1644 = vmatpush1.msra.mxu0 0.0
        %1645 = vmatprep.subr.mxu0 0.0
        %1646 = vmatpush1.msra.mxu0 0.0
        %1647 = vmatprep.subr.mxu0 0.0
        %1648 = vmatpush1.msra.mxu0 0.0
        %1649 = vmatprep.subr.mxu0 0.0
        %1650 = vmatpush1.msra.mxu0 0.0
        %1651 = vmatprep.subr.mxu0 0.0
        %1652 = vmatpush1.msra.mxu0 0.0
        %1653 = vmatprep.subr.mxu0 0.0
        %1654 = vmatpush1.msra.mxu0 0.0
        %1655 = vmatprep.subr.mxu0 0.0
        %1656 = vmatpush1.msra.mxu0 0.0
        %1657 = vmatprep.subr.mxu0 0.0
        %1658 = vmatpush1.msra.mxu0 0.0
        %1659 = vmatprep.subr.mxu0 0.0
        %1660 = vmatpush1.msra.mxu0 0.0
        %1661 = vmatprep.subr.mxu0 0.0
        %1662 = vmatpush1.msra.mxu0 0.0
        %1663 = vmatprep.subr.mxu0 0.0
        %1664 = vmatpush1.msra.mxu0 0.0
        %1665 = vmatprep.subr.mxu0 0.0
        %1666 = vmatpush1.msra.mxu0 0.0
        %1667 = vmatprep.subr.mxu0 0.0
        %1668 = vmatpush1.msra.mxu0 0.0
        %1669 = vmatprep.subr.mxu0 0.0
        %1670 = vmatpush1.msra.mxu0 0.0
        %1671 = vmatprep.subr.mxu0 0.0
        %1672 = vmatpush1.msra.mxu0 0.0
        %1673 = vmatprep.subr.mxu0 0.0
        %1674 = vmatpush1.msra.mxu0 0.0
        %1675 = vmatprep.mubr.f32.mxu0 0.0
        %1676 = vmatmul.mubr.f32.gmra.mrb[0].mxu0 %v905
        %v1677 = vpop.f32.mrb[0].mxu0
        %v1678 = vadd.f32 0.0, %v1677
        %v1679 = vpop.f32.mrb[0].mxu0
        %1680 = vmatprep.mubr.f32.mxu0 0.0
        %1681 = vmatmul.mubr.f32.gmra.mrb[0].mxu0 %v907
        %v1682 = vpop.f32.mrb[0].mxu0
        %v1683 = vadd.f32 0.0, %v1682
        %v1684 = vpop.f32.mrb[0].mxu0
        %1685 = vmatprep.mubr.f32.mxu0 0.0
        %1686 = vmatmul.mubr.f32.gmra.mrb[0].mxu0 %v909
        %v1687 = vpop.f32.mrb[0].mxu0
        %v1688 = vadd.f32 0.0, %v1687
        %v1689 = vpop.f32.mrb[0].mxu0
        %1690 = vmatprep.mubr.f32.mxu0 0.0
        %1691 = vmatmul.mubr.f32.gmra.mrb[0].mxu0 %v911
        %v1692 = vpop.f32.mrb[0].mxu0
        %v1693 = vadd.f32 0.0, %v1692
        %v1694 = vpop.f32.mrb[0].mxu0
        %1695 = vmatprep.mubr.f32.mxu0 0.0
        %1696 = vmatmul.mubr.f32.gmra.mrb[0].mxu0 %v913
        %v1697 = vpop.f32.mrb[0].mxu0
        %v1698 = vadd.f32 0.0, %v1697
        %v1699 = vpop.f32.mrb[0].mxu0
        %1700 = vmatprep.mubr.f32.mxu0 0.0
        %1701 = vmatmul.mubr.f32.gmra.mrb[0].mxu0 %v915
        %v1702 = vpop.f32.mrb[0].mxu0
        %v1703 = vadd.f32 0.0, %v1702
        %v1704 = vpop.f32.mrb[0].mxu0
        %1705 = vmatprep.mubr.f32.mxu0 0.0
        %1706 = vmatmul.mubr.f32.gmra.mrb[0].mxu0 %v917
        %v1707 = vpop.f32.mrb[0].mxu0
        %v1708 = vadd.f32 0.0, %v1707
        %v1709 = vpop.f32.mrb[0].mxu0
        %1710 = vmatprep.mubr.f32.mxu0 0.0
        %1711 = vmatmul.mubr.f32.gmra.mrb[0].mxu0 %v919
        %v1712 = vpop.f32.mrb[0].mxu0
        %v1713 = vadd.f32 0.0, %v1712
        %v1714 = vpop.f32.mrb[0].mxu0
        %1715 = vmatprep.mubr.f32.mxu0 0.0
        %1716 = vmatmul.mubr.f32.gmra.mrb[0].mxu0 %v921
        %v1717 = vpop.f32.mrb[0].mxu0
        %v1718 = vadd.f32 0.0, %v1717
        %v1719 = vpop.f32.mrb[0].mxu0
        %1720 = vmatprep.mubr.f32.mxu0 0.0
        %1721 = vmatmul.mubr.f32.gmra.mrb[0].mxu0 %v923
        %v1722 = vpop.f32.mrb[0].mxu0
        %v1723 = vadd.f32 0.0, %v1722
        %v1724 = vpop.f32.mrb[0].mxu0
        %1725 = vmatprep.mubr.f32.mxu0 0.0
        %1726 = vmatmul.mubr.f32.gmra.mrb[0].mxu0 %v925
        %v1727 = vpop.f32.mrb[0].mxu0
        %v1728 = vadd.f32 0.0, %v1727
        %v1729 = vpop.f32.mrb[0].mxu0
        %1730 = vmatprep.mubr.f32.mxu0 0.0
        %1731 = vmatmul.mubr.f32.gmra.mrb[0].mxu0 %v927
        %v1732 = vpop.f32.mrb[0].mxu0
        %v1733 = vadd.f32 0.0, %v1732
        %v1734 = vpop.f32.mrb[0].mxu0
        %1735 = vmatprep.mubr.f32.mxu0 0.0
        %1736 = vmatmul.mubr.f32.gmra.mrb[0].mxu0 %v929
        %v1737 = vpop.f32.mrb[0].mxu0
        %v1738 = vadd.f32 0.0, %v1737
        %v1739 = vpop.f32.mrb[0].mxu0
        %1740 = vmatprep.mubr.f32.mxu0 0.0
        %1741 = vmatmul.mubr.f32.gmra.mrb[0].mxu0 %v931
        %v1742 = vpop.f32.mrb[0].mxu0
        %v1743 = vadd.f32 0.0, %v1742
        %v1744 = vpop.f32.mrb[0].mxu0
        %1745 = vmatprep.mubr.f32.mxu0 0.0
        %1746 = vmatmul.mubr.f32.gmra.mrb[0].mxu0 %v933
        %v1747 = vpop.f32.mrb[0].mxu0
        %v1748 = vadd.f32 0.0, %v1747
        %v1749 = vpop.f32.mrb[0].mxu0
        %1750 = vmatprep.mubr.f32.mxu0 0.0
        %1751 = vmatmul.mubr.f32.gmra.mrb[0].mxu0 %v935
        %v1752 = vpop.f32.mrb[0].mxu0
        %v1753 = vadd.f32 0.0, %v1752
        %v1754 = vpop.f32.mrb[0].mxu0
        %1755 = vmatprep.mubr.f32.mxu0 0.0
        %1756 = vmatmul.mubr.f32.gmra.mrb[0].mxu0 %v937
        %v1757 = vpop.f32.mrb[0].mxu0
        %v1758 = vadd.f32 0.0, %v1757
        %v1759 = vpop.f32.mrb[0].mxu0
        %1760 = vmatprep.mubr.f32.mxu0 0.0
        %1761 = vmatmul.mubr.f32.gmra.mrb[0].mxu0 %v939
        %v1762 = vpop.f32.mrb[0].mxu0
        %v1763 = vadd.f32 0.0, %v1762
        %v1764 = vpop.f32.mrb[0].mxu0
        %1765 = vmatprep.mubr.f32.mxu0 0.0
        %1766 = vmatmul.mubr.f32.gmra.mrb[0].mxu0 %v941
        %v1767 = vpop.f32.mrb[0].mxu0
        %v1768 = vadd.f32 0.0, %v1767
        %v1769 = vpop.f32.mrb[0].mxu0
        %1770 = vmatprep.mubr.f32.mxu0 0.0
        %1771 = vmatmul.mubr.f32.gmra.mrb[0].mxu0 %v943
        %v1772 = vpop.f32.mrb[0].mxu0
        %v1773 = vadd.f32 0.0, %v1772
        %v1774 = vpop.f32.mrb[0].mxu0
        %1775 = vmatprep.mubr.f32.mxu0 0.0
        %1776 = vmatmul.mubr.f32.gmra.mrb[0].mxu0 %v945
        %v1777 = vpop.f32.mrb[0].mxu0
        %v1778 = vadd.f32 0.0, %v1777
        %v1779 = vpop.f32.mrb[0].mxu0
        %1780 = vmatprep.mubr.f32.mxu0 0.0
        %1781 = vmatmul.mubr.f32.gmra.mrb[0].mxu0 %v947
        %v1782 = vpop.f32.mrb[0].mxu0
        %v1783 = vadd.f32 0.0, %v1782
        %v1784 = vpop.f32.mrb[0].mxu0
        %1785 = vmatprep.mubr.f32.mxu0 0.0
        %1786 = vmatmul.mubr.f32.gmra.mrb[0].mxu0 %v949
        %v1787 = vpop.f32.mrb[0].mxu0
        %v1788 = vadd.f32 0.0, %v1787
        %v1789 = vpop.f32.mrb[0].mxu0
        %1790 = vmatprep.mubr.f32.mxu0 0.0
        %1791 = vmatmul.mubr.f32.gmra.mrb[0].mxu0 %v951
        %v1792 = vpop.f32.mrb[0].mxu0
        %v1793 = vadd.f32 0.0, %v1792
        %v1794 = vpop.f32.mrb[0].mxu0
        %1795 = vmatprep.mubr.f32.mxu0 0.0
        %1796 = vmatmul.mubr.f32.gmra.mrb[0].mxu0 %v953
        %v1797 = vpop.f32.mrb[0].mxu0
        %v1798 = vadd.f32 0.0, %v1797
        %v1799 = vpop.f32.mrb[0].mxu0
        %1800 = vmatprep.mubr.f32.mxu0 0.0
        %1801 = vmatmul.mubr.f32.gmra.mrb[0].mxu0 %v955
        %v1802 = vpop.f32.mrb[0].mxu0
        %v1803 = vadd.f32 0.0, %v1802
        %v1804 = vpop.f32.mrb[0].mxu0
        %1805 = vmatprep.mubr.f32.mxu0 0.0
        %1806 = vmatmul.mubr.f32.gmra.mrb[0].mxu0 %v957
        %v1807 = vpop.f32.mrb[0].mxu0
        %v1808 = vadd.f32 0.0, %v1807
        %v1809 = vpop.f32.mrb[0].mxu0
        %1810 = vmatprep.mubr.f32.mxu0 0.0
        %1811 = vmatmul.mubr.f32.gmra.mrb[0].mxu0 %v959
        %v1812 = vpop.f32.mrb[0].mxu0
        %v1813 = vadd.f32 0.0, %v1812
        %v1814 = vpop.f32.mrb[0].mxu0
        %1815 = vmatprep.mubr.f32.mxu0 0.0
        %1816 = vmatmul.mubr.f32.gmra.mrb[0].mxu0 %v961
        %v1817 = vpop.f32.mrb[0].mxu0
        %v1818 = vadd.f32 0.0, %v1817
        %v1819 = vpop.f32.mrb[0].mxu0
        %1820 = vmatprep.mubr.f32.mxu0 0.0
        %1821 = vmatmul.mubr.f32.gmra.mrb[0].mxu0 %v963
        %v1822 = vpop.f32.mrb[0].mxu0
        %v1823 = vadd.f32 0.0, %v1822
        %v1824 = vpop.f32.mrb[0].mxu0
        %1825 = vmatprep.mubr.f32.mxu0 0.0
        %1826 = vmatmul.mubr.f32.gmra.mrb[0].mxu0 %v1603
        %v1827 = vpop.f32.mrb[0].mxu0
        %v1828 = vadd.f32 0.0, %v1827
        %v1829 = vpop.f32.mrb[0].mxu0
        %1830 = vmatprep.mubr.f32.mxu0 0.0
        %1831 = vmatmul.mubr.f32.gmra.mrb[0].mxu0 %v1606
        %v1832 = vpop.f32.mrb[0].mxu0
        %v1833 = vadd.f32 0.0, %v1832
        %v1834 = vpop.f32.mrb[0].mxu0
        %1835 = vdwg.mxu0
        %v1836 = vadd.f32 %v1568, %v1678
        %v1837 = vadd.f32 %v1569, %v1683
        %v1838 = vadd.f32 %v1570, %v1688
        %v1839 = vadd.f32 %v1571, %v1693
        %v1840 = vadd.f32 %v1572, %v1698
        %v1841 = vadd.f32 %v1573, %v1703
        %v1842 = vadd.f32 %v1574, %v1708
        %v1843 = vadd.f32 %v1575, %v1713
        %v1844 = vadd.f32 %v1576, %v1718
        %v1845 = vadd.f32 %v1577, %v1723
        %v1846 = vadd.f32 %v1578, %v1728
        %v1847 = vadd.f32 %v1579, %v1733
        %v1848 = vadd.f32 %v1580, %v1738
        %v1849 = vadd.f32 %v1581, %v1743
        %v1850 = vadd.f32 %v1582, %v1748
        %v1851 = vadd.f32 %v1583, %v1753
        %v1852 = vadd.f32 %v1584, %v1758
        %v1853 = vadd.f32 %v1585, %v1763
        %v1854 = vadd.f32 %v1586, %v1768
        %v1855 = vadd.f32 %v1587, %v1773
        %v1856 = vadd.f32 %v1588, %v1778
        %v1857 = vadd.f32 %v1589, %v1783
        %v1858 = vadd.f32 %v1590, %v1788
        %v1859 = vadd.f32 %v1591, %v1793
        %v1860 = vadd.f32 %v1592, %v1798
        %v1861 = vadd.f32 %v1593, %v1803
        %v1862 = vadd.f32 %v1594, %v1808
        %v1863 = vadd.f32 %v1595, %v1813
        %v1864 = vadd.f32 %v1596, %v1818
        %v1865 = vadd.f32 %v1597, %v1823
        %v1866 = vadd.f32 %v1598, %v1828
        %v1867 = vadd.f32 %v1599, %v1833
        %v1869 = vrot.slane %v469, 1
        %v1870 = vrot.slane %v470, 1
        %v1871 = vsel %vm524, %v1869, %v1870
        %v1872 = vrot.slane %v471, 1
        %v1873 = vsel %vm524, %v1870, %v1872
        %s1874 = scalar_lea.vmem %s1, 16
        %v1875 = vld [vmem:[%s1874] sm:$0xf]
        %v1876 = vsel %vm607, %v1871, 0
        %v1878 = vsel %vm607, %v1873, 0
        %v1881 = vsel %vm672, %v1875, 0
        %1883 = vmatprep.subr.mxu0 0.0
        %1884 = vmatpush1.msra.mxu0 %v1881
        %1885 = vmatprep.subr.mxu0 0.0
        %1886 = vmatpush1.msra.mxu0 0.0
        %1887 = vmatprep.subr.mxu0 0.0
        %1888 = vmatpush1.msra.mxu0 0.0
        %1889 = vmatprep.subr.mxu0 0.0
        %1890 = vmatpush1.msra.mxu0 0.0
        %1891 = vmatprep.subr.mxu0 0.0
        %1892 = vmatpush1.msra.mxu0 0.0
        %1893 = vmatprep.subr.mxu0 0.0
        %1894 = vmatpush1.msra.mxu0 0.0
        %1895 = vmatprep.subr.mxu0 0.0
        %1896 = vmatpush1.msra.mxu0 0.0
        %1897 = vmatprep.subr.mxu0 0.0
        %1898 = vmatpush1.msra.mxu0 0.0
        %1899 = vmatprep.subr.mxu0 0.0
        %1900 = vmatpush1.msra.mxu0 0.0
        %1901 = vmatprep.subr.mxu0 0.0
        %1902 = vmatpush1.msra.mxu0 0.0
        %1903 = vmatprep.subr.mxu0 0.0
        %1904 = vmatpush1.msra.mxu0 0.0
        %1905 = vmatprep.subr.mxu0 0.0
        %1906 = vmatpush1.msra.mxu0 0.0
        %1907 = vmatprep.subr.mxu0 0.0
        %1908 = vmatpush1.msra.mxu0 0.0
        %1909 = vmatprep.subr.mxu0 0.0
        %1910 = vmatpush1.msra.mxu0 0.0
        %1911 = vmatprep.subr.mxu0 0.0
        %1912 = vmatpush1.msra.mxu0 0.0
        %1913 = vmatprep.subr.mxu0 0.0
        %1914 = vmatpush1.msra.mxu0 0.0
        %1915 = vmatprep.subr.mxu0 0.0
        %1916 = vmatpush1.msra.mxu0 0.0
        %1917 = vmatprep.subr.mxu0 0.0
        %1918 = vmatpush1.msra.mxu0 0.0
        %1919 = vmatprep.subr.mxu0 0.0
        %1920 = vmatpush1.msra.mxu0 0.0
        %1921 = vmatprep.subr.mxu0 0.0
        %1922 = vmatpush1.msra.mxu0 0.0
        %1923 = vmatprep.subr.mxu0 0.0
        %1924 = vmatpush1.msra.mxu0 0.0
        %1925 = vmatprep.subr.mxu0 0.0
        %1926 = vmatpush1.msra.mxu0 0.0
        %1927 = vmatprep.subr.mxu0 0.0
        %1928 = vmatpush1.msra.mxu0 0.0
        %1929 = vmatprep.subr.mxu0 0.0
        %1930 = vmatpush1.msra.mxu0 0.0
        %1931 = vmatprep.subr.mxu0 0.0
        %1932 = vmatpush1.msra.mxu0 0.0
        %1933 = vmatprep.subr.mxu0 0.0
        %1934 = vmatpush1.msra.mxu0 0.0
        %1935 = vmatprep.subr.mxu0 0.0
        %1936 = vmatpush1.msra.mxu0 0.0
        %1937 = vmatprep.subr.mxu0 0.0
        %1938 = vmatpush1.msra.mxu0 0.0
        %1939 = vmatprep.subr.mxu0 0.0
        %1940 = vmatpush1.msra.mxu0 0.0
        %1941 = vmatprep.subr.mxu0 0.0
        %1942 = vmatpush1.msra.mxu0 0.0
        %1943 = vmatprep.subr.mxu0 0.0
        %1944 = vmatpush1.msra.mxu0 0.0
        %1945 = vmatprep.subr.mxu0 0.0
        %1946 = vmatpush1.msra.mxu0 0.0
        %1947 = vmatprep.mubr.f32.mxu0 0.0
        %1948 = vmatmul.mubr.f32.gmra.mrb[0].mxu0 %v612
        %v1949 = vpop.f32.mrb[0].mxu0
        %v1950 = vadd.f32 0.0, %v1949
        %v1951 = vpop.f32.mrb[0].mxu0
        %1952 = vmatprep.mubr.f32.mxu0 0.0
        %1953 = vmatmul.mubr.f32.gmra.mrb[0].mxu0 %v614
        %v1954 = vpop.f32.mrb[0].mxu0
        %v1955 = vadd.f32 0.0, %v1954
        %v1956 = vpop.f32.mrb[0].mxu0
        %1957 = vmatprep.mubr.f32.mxu0 0.0
        %1958 = vmatmul.mubr.f32.gmra.mrb[0].mxu0 %v616
        %v1959 = vpop.f32.mrb[0].mxu0
        %v1960 = vadd.f32 0.0, %v1959
        %v1961 = vpop.f32.mrb[0].mxu0
        %1962 = vmatprep.mubr.f32.mxu0 0.0
        %1963 = vmatmul.mubr.f32.gmra.mrb[0].mxu0 %v618
        %v1964 = vpop.f32.mrb[0].mxu0
        %v1965 = vadd.f32 0.0, %v1964
        %v1966 = vpop.f32.mrb[0].mxu0
        %1967 = vmatprep.mubr.f32.mxu0 0.0
        %1968 = vmatmul.mubr.f32.gmra.mrb[0].mxu0 %v620
        %v1969 = vpop.f32.mrb[0].mxu0
        %v1970 = vadd.f32 0.0, %v1969
        %v1971 = vpop.f32.mrb[0].mxu0
        %1972 = vmatprep.mubr.f32.mxu0 0.0
        %1973 = vmatmul.mubr.f32.gmra.mrb[0].mxu0 %v622
        %v1974 = vpop.f32.mrb[0].mxu0
        %v1975 = vadd.f32 0.0, %v1974
        %v1976 = vpop.f32.mrb[0].mxu0
        %1977 = vmatprep.mubr.f32.mxu0 0.0
        %1978 = vmatmul.mubr.f32.gmra.mrb[0].mxu0 %v624
        %v1979 = vpop.f32.mrb[0].mxu0
        %v1980 = vadd.f32 0.0, %v1979
        %v1981 = vpop.f32.mrb[0].mxu0
        %1982 = vmatprep.mubr.f32.mxu0 0.0
        %1983 = vmatmul.mubr.f32.gmra.mrb[0].mxu0 %v626
        %v1984 = vpop.f32.mrb[0].mxu0
        %v1985 = vadd.f32 0.0, %v1984
        %v1986 = vpop.f32.mrb[0].mxu0
        %1987 = vmatprep.mubr.f32.mxu0 0.0
        %1988 = vmatmul.mubr.f32.gmra.mrb[0].mxu0 %v628
        %v1989 = vpop.f32.mrb[0].mxu0
        %v1990 = vadd.f32 0.0, %v1989
        %v1991 = vpop.f32.mrb[0].mxu0
        %1992 = vmatprep.mubr.f32.mxu0 0.0
        %1993 = vmatmul.mubr.f32.gmra.mrb[0].mxu0 %v630
        %v1994 = vpop.f32.mrb[0].mxu0
        %v1995 = vadd.f32 0.0, %v1994
        %v1996 = vpop.f32.mrb[0].mxu0
        %1997 = vmatprep.mubr.f32.mxu0 0.0
        %1998 = vmatmul.mubr.f32.gmra.mrb[0].mxu0 %v632
        %v1999 = vpop.f32.mrb[0].mxu0
        %v2000 = vadd.f32 0.0, %v1999
        %v2001 = vpop.f32.mrb[0].mxu0
        %2002 = vmatprep.mubr.f32.mxu0 0.0
        %2003 = vmatmul.mubr.f32.gmra.mrb[0].mxu0 %v634
        %v2004 = vpop.f32.mrb[0].mxu0
        %v2005 = vadd.f32 0.0, %v2004
        %v2006 = vpop.f32.mrb[0].mxu0
        %2007 = vmatprep.mubr.f32.mxu0 0.0
        %2008 = vmatmul.mubr.f32.gmra.mrb[0].mxu0 %v636
        %v2009 = vpop.f32.mrb[0].mxu0
        %v2010 = vadd.f32 0.0, %v2009
        %v2011 = vpop.f32.mrb[0].mxu0
        %2012 = vmatprep.mubr.f32.mxu0 0.0
        %2013 = vmatmul.mubr.f32.gmra.mrb[0].mxu0 %v638
        %v2014 = vpop.f32.mrb[0].mxu0
        %v2015 = vadd.f32 0.0, %v2014
        %v2016 = vpop.f32.mrb[0].mxu0
        %2017 = vmatprep.mubr.f32.mxu0 0.0
        %2018 = vmatmul.mubr.f32.gmra.mrb[0].mxu0 %v640
        %v2019 = vpop.f32.mrb[0].mxu0
        %v2020 = vadd.f32 0.0, %v2019
        %v2021 = vpop.f32.mrb[0].mxu0
        %2022 = vmatprep.mubr.f32.mxu0 0.0
        %2023 = vmatmul.mubr.f32.gmra.mrb[0].mxu0 %v642
        %v2024 = vpop.f32.mrb[0].mxu0
        %v2025 = vadd.f32 0.0, %v2024
        %v2026 = vpop.f32.mrb[0].mxu0
        %2027 = vmatprep.mubr.f32.mxu0 0.0
        %2028 = vmatmul.mubr.f32.gmra.mrb[0].mxu0 %v644
        %v2029 = vpop.f32.mrb[0].mxu0
        %v2030 = vadd.f32 0.0, %v2029
        %v2031 = vpop.f32.mrb[0].mxu0
        %2032 = vmatprep.mubr.f32.mxu0 0.0
        %2033 = vmatmul.mubr.f32.gmra.mrb[0].mxu0 %v646
        %v2034 = vpop.f32.mrb[0].mxu0
        %v2035 = vadd.f32 0.0, %v2034
        %v2036 = vpop.f32.mrb[0].mxu0
        %2037 = vmatprep.mubr.f32.mxu0 0.0
        %2038 = vmatmul.mubr.f32.gmra.mrb[0].mxu0 %v648
        %v2039 = vpop.f32.mrb[0].mxu0
        %v2040 = vadd.f32 0.0, %v2039
        %v2041 = vpop.f32.mrb[0].mxu0
        %2042 = vmatprep.mubr.f32.mxu0 0.0
        %2043 = vmatmul.mubr.f32.gmra.mrb[0].mxu0 %v650
        %v2044 = vpop.f32.mrb[0].mxu0
        %v2045 = vadd.f32 0.0, %v2044
        %v2046 = vpop.f32.mrb[0].mxu0
        %2047 = vmatprep.mubr.f32.mxu0 0.0
        %2048 = vmatmul.mubr.f32.gmra.mrb[0].mxu0 %v652
        %v2049 = vpop.f32.mrb[0].mxu0
        %v2050 = vadd.f32 0.0, %v2049
        %v2051 = vpop.f32.mrb[0].mxu0
        %2052 = vmatprep.mubr.f32.mxu0 0.0
        %2053 = vmatmul.mubr.f32.gmra.mrb[0].mxu0 %v654
        %v2054 = vpop.f32.mrb[0].mxu0
        %v2055 = vadd.f32 0.0, %v2054
        %v2056 = vpop.f32.mrb[0].mxu0
        %2057 = vmatprep.mubr.f32.mxu0 0.0
        %2058 = vmatmul.mubr.f32.gmra.mrb[0].mxu0 %v656
        %v2059 = vpop.f32.mrb[0].mxu0
        %v2060 = vadd.f32 0.0, %v2059
        %v2061 = vpop.f32.mrb[0].mxu0
        %2062 = vmatprep.mubr.f32.mxu0 0.0
        %2063 = vmatmul.mubr.f32.gmra.mrb[0].mxu0 %v658
        %v2064 = vpop.f32.mrb[0].mxu0
        %v2065 = vadd.f32 0.0, %v2064
        %v2066 = vpop.f32.mrb[0].mxu0
        %2067 = vmatprep.mubr.f32.mxu0 0.0
        %2068 = vmatmul.mubr.f32.gmra.mrb[0].mxu0 %v660
        %v2069 = vpop.f32.mrb[0].mxu0
        %v2070 = vadd.f32 0.0, %v2069
        %v2071 = vpop.f32.mrb[0].mxu0
        %2072 = vmatprep.mubr.f32.mxu0 0.0
        %2073 = vmatmul.mubr.f32.gmra.mrb[0].mxu0 %v662
        %v2074 = vpop.f32.mrb[0].mxu0
        %v2075 = vadd.f32 0.0, %v2074
        %v2076 = vpop.f32.mrb[0].mxu0
        %2077 = vmatprep.mubr.f32.mxu0 0.0
        %2078 = vmatmul.mubr.f32.gmra.mrb[0].mxu0 %v664
        %v2079 = vpop.f32.mrb[0].mxu0
        %v2080 = vadd.f32 0.0, %v2079
        %v2081 = vpop.f32.mrb[0].mxu0
        %2082 = vmatprep.mubr.f32.mxu0 0.0
        %2083 = vmatmul.mubr.f32.gmra.mrb[0].mxu0 %v666
        %v2084 = vpop.f32.mrb[0].mxu0
        %v2085 = vadd.f32 0.0, %v2084
        %v2086 = vpop.f32.mrb[0].mxu0
        %2087 = vmatprep.mubr.f32.mxu0 0.0
        %2088 = vmatmul.mubr.f32.gmra.mrb[0].mxu0 %v668
        %v2089 = vpop.f32.mrb[0].mxu0
        %v2090 = vadd.f32 0.0, %v2089
        %v2091 = vpop.f32.mrb[0].mxu0
        %2092 = vmatprep.mubr.f32.mxu0 0.0
        %2093 = vmatmul.mubr.f32.gmra.mrb[0].mxu0 %v670
        %v2094 = vpop.f32.mrb[0].mxu0
        %v2095 = vadd.f32 0.0, %v2094
        %v2096 = vpop.f32.mrb[0].mxu0
        %2097 = vmatprep.mubr.f32.mxu0 0.0
        %2098 = vmatmul.mubr.f32.gmra.mrb[0].mxu0 %v1876
        %v2099 = vpop.f32.mrb[0].mxu0
        %v2100 = vadd.f32 0.0, %v2099
        %v2101 = vpop.f32.mrb[0].mxu0
        %2102 = vmatprep.mubr.f32.mxu0 0.0
        %2103 = vmatmul.mubr.f32.gmra.mrb[0].mxu0 %v1878
        %v2104 = vpop.f32.mrb[0].mxu0
        %v2105 = vadd.f32 0.0, %v2104
        %v2106 = vpop.f32.mrb[0].mxu0
        %2107 = vdwg.mxu0
        %v2108 = vadd.f32 %v1836, %v1950
        %v2109 = vadd.f32 %v1837, %v1955
        %v2110 = vadd.f32 %v1838, %v1960
        %v2111 = vadd.f32 %v1839, %v1965
        %v2112 = vadd.f32 %v1840, %v1970
        %v2113 = vadd.f32 %v1841, %v1975
        %v2114 = vadd.f32 %v1842, %v1980
        %v2115 = vadd.f32 %v1843, %v1985
        %v2116 = vadd.f32 %v1844, %v1990
        %v2117 = vadd.f32 %v1845, %v1995
        %v2118 = vadd.f32 %v1846, %v2000
        %v2119 = vadd.f32 %v1847, %v2005
        %v2120 = vadd.f32 %v1848, %v2010
        %v2121 = vadd.f32 %v1849, %v2015
        %v2122 = vadd.f32 %v1850, %v2020
        %v2123 = vadd.f32 %v1851, %v2025
        %v2124 = vadd.f32 %v1852, %v2030
        %v2125 = vadd.f32 %v1853, %v2035
        %v2126 = vadd.f32 %v1854, %v2040
        %v2127 = vadd.f32 %v1855, %v2045
        %v2128 = vadd.f32 %v1856, %v2050
        %v2129 = vadd.f32 %v1857, %v2055
        %v2130 = vadd.f32 %v1858, %v2060
        %v2131 = vadd.f32 %v1859, %v2065
        %v2132 = vadd.f32 %v1860, %v2070
        %v2133 = vadd.f32 %v1861, %v2075
        %v2134 = vadd.f32 %v1862, %v2080
        %v2135 = vadd.f32 %v1863, %v2085
        %v2136 = vadd.f32 %v1864, %v2090
        %v2137 = vadd.f32 %v1865, %v2095
        %v2138 = vadd.f32 %v1866, %v2100
        %v2139 = vadd.f32 %v1867, %v2105
        %v2140 = vrot.slane %v469, 2
        %v2141 = vrot.slane %v470, 2
        %v2142 = vsel %vm1193, %v2140, %v2141
        %v2143 = vrot.slane %v471, 2
        %v2144 = vsel %vm1193, %v2141, %v2143
        %s2145 = scalar_lea.vmem %s1, 20
        %v2146 = vld [vmem:[%s2145] sm:$0xf]
        %v2147 = vsel %vm607, %v2142, 0
        %v2149 = vsel %vm607, %v2144, 0
        %v2152 = vsel %vm672, %v2146, 0
        %2154 = vmatprep.subr.mxu0 0.0
        %2155 = vmatpush1.msra.mxu0 %v2152
        %2156 = vmatprep.subr.mxu0 0.0
        %2157 = vmatpush1.msra.mxu0 0.0
        %2158 = vmatprep.subr.mxu0 0.0
        %2159 = vmatpush1.msra.mxu0 0.0
        %2160 = vmatprep.subr.mxu0 0.0
        %2161 = vmatpush1.msra.mxu0 0.0
        %2162 = vmatprep.subr.mxu0 0.0
        %2163 = vmatpush1.msra.mxu0 0.0
        %2164 = vmatprep.subr.mxu0 0.0
        %2165 = vmatpush1.msra.mxu0 0.0
        %2166 = vmatprep.subr.mxu0 0.0
        %2167 = vmatpush1.msra.mxu0 0.0
        %2168 = vmatprep.subr.mxu0 0.0
        %2169 = vmatpush1.msra.mxu0 0.0
        %2170 = vmatprep.subr.mxu0 0.0
        %2171 = vmatpush1.msra.mxu0 0.0
        %2172 = vmatprep.subr.mxu0 0.0
        %2173 = vmatpush1.msra.mxu0 0.0
        %2174 = vmatprep.subr.mxu0 0.0
        %2175 = vmatpush1.msra.mxu0 0.0
        %2176 = vmatprep.subr.mxu0 0.0
        %2177 = vmatpush1.msra.mxu0 0.0
        %2178 = vmatprep.subr.mxu0 0.0
        %2179 = vmatpush1.msra.mxu0 0.0
        %2180 = vmatprep.subr.mxu0 0.0
        %2181 = vmatpush1.msra.mxu0 0.0
        %2182 = vmatprep.subr.mxu0 0.0
        %2183 = vmatpush1.msra.mxu0 0.0
        %2184 = vmatprep.subr.mxu0 0.0
        %2185 = vmatpush1.msra.mxu0 0.0
        %2186 = vmatprep.subr.mxu0 0.0
        %2187 = vmatpush1.msra.mxu0 0.0
        %2188 = vmatprep.subr.mxu0 0.0
        %2189 = vmatpush1.msra.mxu0 0.0
        %2190 = vmatprep.subr.mxu0 0.0
        %2191 = vmatpush1.msra.mxu0 0.0
        %2192 = vmatprep.subr.mxu0 0.0
        %2193 = vmatpush1.msra.mxu0 0.0
        %2194 = vmatprep.subr.mxu0 0.0
        %2195 = vmatpush1.msra.mxu0 0.0
        %2196 = vmatprep.subr.mxu0 0.0
        %2197 = vmatpush1.msra.mxu0 0.0
        %2198 = vmatprep.subr.mxu0 0.0
        %2199 = vmatpush1.msra.mxu0 0.0
        %2200 = vmatprep.subr.mxu0 0.0
        %2201 = vmatpush1.msra.mxu0 0.0
        %2202 = vmatprep.subr.mxu0 0.0
        %2203 = vmatpush1.msra.mxu0 0.0
        %2204 = vmatprep.subr.mxu0 0.0
        %2205 = vmatpush1.msra.mxu0 0.0
        %2206 = vmatprep.subr.mxu0 0.0
        %2207 = vmatpush1.msra.mxu0 0.0
        %2208 = vmatprep.subr.mxu0 0.0
        %2209 = vmatpush1.msra.mxu0 0.0
        %2210 = vmatprep.subr.mxu0 0.0
        %2211 = vmatpush1.msra.mxu0 0.0
        %2212 = vmatprep.subr.mxu0 0.0
        %2213 = vmatpush1.msra.mxu0 0.0
        %2214 = vmatprep.subr.mxu0 0.0
        %2215 = vmatpush1.msra.mxu0 0.0
        %2216 = vmatprep.subr.mxu0 0.0
        %2217 = vmatpush1.msra.mxu0 0.0
        %2218 = vmatprep.mubr.f32.mxu0 0.0
        %2219 = vmatmul.mubr.f32.gmra.mrb[0].mxu0 %v1280
        %v2220 = vpop.f32.mrb[0].mxu0
        %v2221 = vadd.f32 0.0, %v2220
        %v2222 = vpop.f32.mrb[0].mxu0
        %2223 = vmatprep.mubr.f32.mxu0 0.0
        %2224 = vmatmul.mubr.f32.gmra.mrb[0].mxu0 %v1282
        %v2225 = vpop.f32.mrb[0].mxu0
        %v2226 = vadd.f32 0.0, %v2225
        %v2227 = vpop.f32.mrb[0].mxu0
        %2228 = vmatprep.mubr.f32.mxu0 0.0
        %2229 = vmatmul.mubr.f32.gmra.mrb[0].mxu0 %v1284
        %v2230 = vpop.f32.mrb[0].mxu0
        %v2231 = vadd.f32 0.0, %v2230
        %v2232 = vpop.f32.mrb[0].mxu0
        %2233 = vmatprep.mubr.f32.mxu0 0.0
        %2234 = vmatmul.mubr.f32.gmra.mrb[0].mxu0 %v1286
        %v2235 = vpop.f32.mrb[0].mxu0
        %v2236 = vadd.f32 0.0, %v2235
        %v2237 = vpop.f32.mrb[0].mxu0
        %2238 = vmatprep.mubr.f32.mxu0 0.0
        %2239 = vmatmul.mubr.f32.gmra.mrb[0].mxu0 %v1288
        %v2240 = vpop.f32.mrb[0].mxu0
        %v2241 = vadd.f32 0.0, %v2240
        %v2242 = vpop.f32.mrb[0].mxu0
        %2243 = vmatprep.mubr.f32.mxu0 0.0
        %2244 = vmatmul.mubr.f32.gmra.mrb[0].mxu0 %v1290
        %v2245 = vpop.f32.mrb[0].mxu0
        %v2246 = vadd.f32 0.0, %v2245
        %v2247 = vpop.f32.mrb[0].mxu0
        %2248 = vmatprep.mubr.f32.mxu0 0.0
        %2249 = vmatmul.mubr.f32.gmra.mrb[0].mxu0 %v1292
        %v2250 = vpop.f32.mrb[0].mxu0
        %v2251 = vadd.f32 0.0, %v2250
        %v2252 = vpop.f32.mrb[0].mxu0
        %2253 = vmatprep.mubr.f32.mxu0 0.0
        %2254 = vmatmul.mubr.f32.gmra.mrb[0].mxu0 %v1294
        %v2255 = vpop.f32.mrb[0].mxu0
        %v2256 = vadd.f32 0.0, %v2255
        %v2257 = vpop.f32.mrb[0].mxu0
        %2258 = vmatprep.mubr.f32.mxu0 0.0
        %2259 = vmatmul.mubr.f32.gmra.mrb[0].mxu0 %v1296
        %v2260 = vpop.f32.mrb[0].mxu0
        %v2261 = vadd.f32 0.0, %v2260
        %v2262 = vpop.f32.mrb[0].mxu0
        %2263 = vmatprep.mubr.f32.mxu0 0.0
        %2264 = vmatmul.mubr.f32.gmra.mrb[0].mxu0 %v1298
        %v2265 = vpop.f32.mrb[0].mxu0
        %v2266 = vadd.f32 0.0, %v2265
        %v2267 = vpop.f32.mrb[0].mxu0
        %2268 = vmatprep.mubr.f32.mxu0 0.0
        %2269 = vmatmul.mubr.f32.gmra.mrb[0].mxu0 %v1300
        %v2270 = vpop.f32.mrb[0].mxu0
        %v2271 = vadd.f32 0.0, %v2270
        %v2272 = vpop.f32.mrb[0].mxu0
        %2273 = vmatprep.mubr.f32.mxu0 0.0
        %2274 = vmatmul.mubr.f32.gmra.mrb[0].mxu0 %v1302
        %v2275 = vpop.f32.mrb[0].mxu0
        %v2276 = vadd.f32 0.0, %v2275
        %v2277 = vpop.f32.mrb[0].mxu0
        %2278 = vmatprep.mubr.f32.mxu0 0.0
        %2279 = vmatmul.mubr.f32.gmra.mrb[0].mxu0 %v1304
        %v2280 = vpop.f32.mrb[0].mxu0
        %v2281 = vadd.f32 0.0, %v2280
        %v2282 = vpop.f32.mrb[0].mxu0
        %2283 = vmatprep.mubr.f32.mxu0 0.0
        %2284 = vmatmul.mubr.f32.gmra.mrb[0].mxu0 %v1306
        %v2285 = vpop.f32.mrb[0].mxu0
        %v2286 = vadd.f32 0.0, %v2285
        %v2287 = vpop.f32.mrb[0].mxu0
        %2288 = vmatprep.mubr.f32.mxu0 0.0
        %2289 = vmatmul.mubr.f32.gmra.mrb[0].mxu0 %v1308
        %v2290 = vpop.f32.mrb[0].mxu0
        %v2291 = vadd.f32 0.0, %v2290
        %v2292 = vpop.f32.mrb[0].mxu0
        %2293 = vmatprep.mubr.f32.mxu0 0.0
        %2294 = vmatmul.mubr.f32.gmra.mrb[0].mxu0 %v1310
        %v2295 = vpop.f32.mrb[0].mxu0
        %v2296 = vadd.f32 0.0, %v2295
        %v2297 = vpop.f32.mrb[0].mxu0
        %2298 = vmatprep.mubr.f32.mxu0 0.0
        %2299 = vmatmul.mubr.f32.gmra.mrb[0].mxu0 %v1312
        %v2300 = vpop.f32.mrb[0].mxu0
        %v2301 = vadd.f32 0.0, %v2300
        %v2302 = vpop.f32.mrb[0].mxu0
        %2303 = vmatprep.mubr.f32.mxu0 0.0
        %2304 = vmatmul.mubr.f32.gmra.mrb[0].mxu0 %v1314
        %v2305 = vpop.f32.mrb[0].mxu0
        %v2306 = vadd.f32 0.0, %v2305
        %v2307 = vpop.f32.mrb[0].mxu0
        %2308 = vmatprep.mubr.f32.mxu0 0.0
        %2309 = vmatmul.mubr.f32.gmra.mrb[0].mxu0 %v1316
        %v2310 = vpop.f32.mrb[0].mxu0
        %v2311 = vadd.f32 0.0, %v2310
        %v2312 = vpop.f32.mrb[0].mxu0
        %2313 = vmatprep.mubr.f32.mxu0 0.0
        %2314 = vmatmul.mubr.f32.gmra.mrb[0].mxu0 %v1318
        %v2315 = vpop.f32.mrb[0].mxu0
        %v2316 = vadd.f32 0.0, %v2315
        %v2317 = vpop.f32.mrb[0].mxu0
        %2318 = vmatprep.mubr.f32.mxu0 0.0
        %2319 = vmatmul.mubr.f32.gmra.mrb[0].mxu0 %v1320
        %v2320 = vpop.f32.mrb[0].mxu0
        %v2321 = vadd.f32 0.0, %v2320
        %v2322 = vpop.f32.mrb[0].mxu0
        %2323 = vmatprep.mubr.f32.mxu0 0.0
        %2324 = vmatmul.mubr.f32.gmra.mrb[0].mxu0 %v1322
        %v2325 = vpop.f32.mrb[0].mxu0
        %v2326 = vadd.f32 0.0, %v2325
        %v2327 = vpop.f32.mrb[0].mxu0
        %2328 = vmatprep.mubr.f32.mxu0 0.0
        %2329 = vmatmul.mubr.f32.gmra.mrb[0].mxu0 %v1324
        %v2330 = vpop.f32.mrb[0].mxu0
        %v2331 = vadd.f32 0.0, %v2330
        %v2332 = vpop.f32.mrb[0].mxu0
        %2333 = vmatprep.mubr.f32.mxu0 0.0
        %2334 = vmatmul.mubr.f32.gmra.mrb[0].mxu0 %v1326
        %v2335 = vpop.f32.mrb[0].mxu0
        %v2336 = vadd.f32 0.0, %v2335
        %v2337 = vpop.f32.mrb[0].mxu0
        %2338 = vmatprep.mubr.f32.mxu0 0.0
        %2339 = vmatmul.mubr.f32.gmra.mrb[0].mxu0 %v1328
        %v2340 = vpop.f32.mrb[0].mxu0
        %v2341 = vadd.f32 0.0, %v2340
        %v2342 = vpop.f32.mrb[0].mxu0
        %2343 = vmatprep.mubr.f32.mxu0 0.0
        %2344 = vmatmul.mubr.f32.gmra.mrb[0].mxu0 %v1330
        %v2345 = vpop.f32.mrb[0].mxu0
        %v2346 = vadd.f32 0.0, %v2345
        %v2347 = vpop.f32.mrb[0].mxu0
        %2348 = vmatprep.mubr.f32.mxu0 0.0
        %2349 = vmatmul.mubr.f32.gmra.mrb[0].mxu0 %v1332
        %v2350 = vpop.f32.mrb[0].mxu0
        %v2351 = vadd.f32 0.0, %v2350
        %v2352 = vpop.f32.mrb[0].mxu0
        %2353 = vmatprep.mubr.f32.mxu0 0.0
        %2354 = vmatmul.mubr.f32.gmra.mrb[0].mxu0 %v1334
        %v2355 = vpop.f32.mrb[0].mxu0
        %v2356 = vadd.f32 0.0, %v2355
        %v2357 = vpop.f32.mrb[0].mxu0
        %2358 = vmatprep.mubr.f32.mxu0 0.0
        %2359 = vmatmul.mubr.f32.gmra.mrb[0].mxu0 %v1336
        %v2360 = vpop.f32.mrb[0].mxu0
        %v2361 = vadd.f32 0.0, %v2360
        %v2362 = vpop.f32.mrb[0].mxu0
        %2363 = vmatprep.mubr.f32.mxu0 0.0
        %2364 = vmatmul.mubr.f32.gmra.mrb[0].mxu0 %v1338
        %v2365 = vpop.f32.mrb[0].mxu0
        %v2366 = vadd.f32 0.0, %v2365
        %v2367 = vpop.f32.mrb[0].mxu0
        %2368 = vmatprep.mubr.f32.mxu0 0.0
        %2369 = vmatmul.mubr.f32.gmra.mrb[0].mxu0 %v2147
        %v2370 = vpop.f32.mrb[0].mxu0
        %v2371 = vadd.f32 0.0, %v2370
        %v2372 = vpop.f32.mrb[0].mxu0
        %2373 = vmatprep.mubr.f32.mxu0 0.0
        %2374 = vmatmul.mubr.f32.gmra.mrb[0].mxu0 %v2149
        %v2375 = vpop.f32.mrb[0].mxu0
        %v2376 = vadd.f32 0.0, %v2375
        %v2377 = vpop.f32.mrb[0].mxu0
        %2378 = vdwg.mxu0
        %v2379 = vadd.f32 %v2108, %v2221
        %v2380 = vadd.f32 %v2109, %v2226
        %v2381 = vadd.f32 %v2110, %v2231
        %v2382 = vadd.f32 %v2111, %v2236
        %v2383 = vadd.f32 %v2112, %v2241
        %v2384 = vadd.f32 %v2113, %v2246
        %v2385 = vadd.f32 %v2114, %v2251
        %v2386 = vadd.f32 %v2115, %v2256
        %v2387 = vadd.f32 %v2116, %v2261
        %v2388 = vadd.f32 %v2117, %v2266
        %v2389 = vadd.f32 %v2118, %v2271
        %v2390 = vadd.f32 %v2119, %v2276
        %v2391 = vadd.f32 %v2120, %v2281
        %v2392 = vadd.f32 %v2121, %v2286
        %v2393 = vadd.f32 %v2122, %v2291
        %v2394 = vadd.f32 %v2123, %v2296
        %v2395 = vadd.f32 %v2124, %v2301
        %v2396 = vadd.f32 %v2125, %v2306
        %v2397 = vadd.f32 %v2126, %v2311
        %v2398 = vadd.f32 %v2127, %v2316
        %v2399 = vadd.f32 %v2128, %v2321
        %v2400 = vadd.f32 %v2129, %v2326
        %v2401 = vadd.f32 %v2130, %v2331
        %v2402 = vadd.f32 %v2131, %v2336
        %v2403 = vadd.f32 %v2132, %v2341
        %v2404 = vadd.f32 %v2133, %v2346
        %v2405 = vadd.f32 %v2134, %v2351
        %v2406 = vadd.f32 %v2135, %v2356
        %v2407 = vadd.f32 %v2136, %v2361
        %v2408 = vadd.f32 %v2137, %v2366
        %v2409 = vadd.f32 %v2138, %v2371
        %v2410 = vadd.f32 %v2139, %v2376
        %s2411 = scalar_lea.vmem %s1, 24
        %v2412 = vld [vmem:[%s2411] sm:$0xf]
        %v2414 = vsel %vm607, %v472, 0
        %v2417 = vsel %vm607, %v473, 0
        %v2420 = vsel %vm672, %v2412, 0
        %2422 = vmatprep.subr.mxu0 0.0
        %2423 = vmatpush1.msra.mxu0 %v2420
        %2424 = vmatprep.subr.mxu0 0.0
        %2425 = vmatpush1.msra.mxu0 0.0
        %2426 = vmatprep.subr.mxu0 0.0
        %2427 = vmatpush1.msra.mxu0 0.0
        %2428 = vmatprep.subr.mxu0 0.0
        %2429 = vmatpush1.msra.mxu0 0.0
        %2430 = vmatprep.subr.mxu0 0.0
        %2431 = vmatpush1.msra.mxu0 0.0
        %2432 = vmatprep.subr.mxu0 0.0
        %2433 = vmatpush1.msra.mxu0 0.0
        %2434 = vmatprep.subr.mxu0 0.0
        %2435 = vmatpush1.msra.mxu0 0.0
        %2436 = vmatprep.subr.mxu0 0.0
        %2437 = vmatpush1.msra.mxu0 0.0
        %2438 = vmatprep.subr.mxu0 0.0
        %2439 = vmatpush1.msra.mxu0 0.0
        %2440 = vmatprep.subr.mxu0 0.0
        %2441 = vmatpush1.msra.mxu0 0.0
        %2442 = vmatprep.subr.mxu0 0.0
        %2443 = vmatpush1.msra.mxu0 0.0
        %2444 = vmatprep.subr.mxu0 0.0
        %2445 = vmatpush1.msra.mxu0 0.0
        %2446 = vmatprep.subr.mxu0 0.0
        %2447 = vmatpush1.msra.mxu0 0.0
        %2448 = vmatprep.subr.mxu0 0.0
        %2449 = vmatpush1.msra.mxu0 0.0
        %2450 = vmatprep.subr.mxu0 0.0
        %2451 = vmatpush1.msra.mxu0 0.0
        %2452 = vmatprep.subr.mxu0 0.0
        %2453 = vmatpush1.msra.mxu0 0.0
        %2454 = vmatprep.subr.mxu0 0.0
        %2455 = vmatpush1.msra.mxu0 0.0
        %2456 = vmatprep.subr.mxu0 0.0
        %2457 = vmatpush1.msra.mxu0 0.0
        %2458 = vmatprep.subr.mxu0 0.0
        %2459 = vmatpush1.msra.mxu0 0.0
        %2460 = vmatprep.subr.mxu0 0.0
        %2461 = vmatpush1.msra.mxu0 0.0
        %2462 = vmatprep.subr.mxu0 0.0
        %2463 = vmatpush1.msra.mxu0 0.0
        %2464 = vmatprep.subr.mxu0 0.0
        %2465 = vmatpush1.msra.mxu0 0.0
        %2466 = vmatprep.subr.mxu0 0.0
        %2467 = vmatpush1.msra.mxu0 0.0
        %2468 = vmatprep.subr.mxu0 0.0
        %2469 = vmatpush1.msra.mxu0 0.0
        %2470 = vmatprep.subr.mxu0 0.0
        %2471 = vmatpush1.msra.mxu0 0.0
        %2472 = vmatprep.subr.mxu0 0.0
        %2473 = vmatpush1.msra.mxu0 0.0
        %2474 = vmatprep.subr.mxu0 0.0
        %2475 = vmatpush1.msra.mxu0 0.0
        %2476 = vmatprep.subr.mxu0 0.0
        %2477 = vmatpush1.msra.mxu0 0.0
        %2478 = vmatprep.subr.mxu0 0.0
        %2479 = vmatpush1.msra.mxu0 0.0
        %2480 = vmatprep.subr.mxu0 0.0
        %2481 = vmatpush1.msra.mxu0 0.0
        %2482 = vmatprep.subr.mxu0 0.0
        %2483 = vmatpush1.msra.mxu0 0.0
        %2484 = vmatprep.subr.mxu0 0.0
        %2485 = vmatpush1.msra.mxu0 0.0
        %2486 = vmatprep.mubr.f32.mxu0 0.0
        %2487 = vmatmul.mubr.f32.gmra.mrb[0].mxu0 %v909
        %v2488 = vpop.f32.mrb[0].mxu0
        %v2489 = vadd.f32 0.0, %v2488
        %v2490 = vpop.f32.mrb[0].mxu0
        %2491 = vmatprep.mubr.f32.mxu0 0.0
        %2492 = vmatmul.mubr.f32.gmra.mrb[0].mxu0 %v911
        %v2493 = vpop.f32.mrb[0].mxu0
        %v2494 = vadd.f32 0.0, %v2493
        %v2495 = vpop.f32.mrb[0].mxu0
        %2496 = vmatprep.mubr.f32.mxu0 0.0
        %2497 = vmatmul.mubr.f32.gmra.mrb[0].mxu0 %v913
        %v2498 = vpop.f32.mrb[0].mxu0
        %v2499 = vadd.f32 0.0, %v2498
        %v2500 = vpop.f32.mrb[0].mxu0
        %2501 = vmatprep.mubr.f32.mxu0 0.0
        %2502 = vmatmul.mubr.f32.gmra.mrb[0].mxu0 %v915
        %v2503 = vpop.f32.mrb[0].mxu0
        %v2504 = vadd.f32 0.0, %v2503
        %v2505 = vpop.f32.mrb[0].mxu0
        %2506 = vmatprep.mubr.f32.mxu0 0.0
        %2507 = vmatmul.mubr.f32.gmra.mrb[0].mxu0 %v917
        %v2508 = vpop.f32.mrb[0].mxu0
        %v2509 = vadd.f32 0.0, %v2508
        %v2510 = vpop.f32.mrb[0].mxu0
        %2511 = vmatprep.mubr.f32.mxu0 0.0
        %2512 = vmatmul.mubr.f32.gmra.mrb[0].mxu0 %v919
        %v2513 = vpop.f32.mrb[0].mxu0
        %v2514 = vadd.f32 0.0, %v2513
        %v2515 = vpop.f32.mrb[0].mxu0
        %2516 = vmatprep.mubr.f32.mxu0 0.0
        %2517 = vmatmul.mubr.f32.gmra.mrb[0].mxu0 %v921
        %v2518 = vpop.f32.mrb[0].mxu0
        %v2519 = vadd.f32 0.0, %v2518
        %v2520 = vpop.f32.mrb[0].mxu0
        %2521 = vmatprep.mubr.f32.mxu0 0.0
        %2522 = vmatmul.mubr.f32.gmra.mrb[0].mxu0 %v923
        %v2523 = vpop.f32.mrb[0].mxu0
        %v2524 = vadd.f32 0.0, %v2523
        %v2525 = vpop.f32.mrb[0].mxu0
        %2526 = vmatprep.mubr.f32.mxu0 0.0
        %2527 = vmatmul.mubr.f32.gmra.mrb[0].mxu0 %v925
        %v2528 = vpop.f32.mrb[0].mxu0
        %v2529 = vadd.f32 0.0, %v2528
        %v2530 = vpop.f32.mrb[0].mxu0
        %2531 = vmatprep.mubr.f32.mxu0 0.0
        %2532 = vmatmul.mubr.f32.gmra.mrb[0].mxu0 %v927
        %v2533 = vpop.f32.mrb[0].mxu0
        %v2534 = vadd.f32 0.0, %v2533
        %v2535 = vpop.f32.mrb[0].mxu0
        %2536 = vmatprep.mubr.f32.mxu0 0.0
        %2537 = vmatmul.mubr.f32.gmra.mrb[0].mxu0 %v929
        %v2538 = vpop.f32.mrb[0].mxu0
        %v2539 = vadd.f32 0.0, %v2538
        %v2540 = vpop.f32.mrb[0].mxu0
        %2541 = vmatprep.mubr.f32.mxu0 0.0
        %2542 = vmatmul.mubr.f32.gmra.mrb[0].mxu0 %v931
        %v2543 = vpop.f32.mrb[0].mxu0
        %v2544 = vadd.f32 0.0, %v2543
        %v2545 = vpop.f32.mrb[0].mxu0
        %2546 = vmatprep.mubr.f32.mxu0 0.0
        %2547 = vmatmul.mubr.f32.gmra.mrb[0].mxu0 %v933
        %v2548 = vpop.f32.mrb[0].mxu0
        %v2549 = vadd.f32 0.0, %v2548
        %v2550 = vpop.f32.mrb[0].mxu0
        %2551 = vmatprep.mubr.f32.mxu0 0.0
        %2552 = vmatmul.mubr.f32.gmra.mrb[0].mxu0 %v935
        %v2553 = vpop.f32.mrb[0].mxu0
        %v2554 = vadd.f32 0.0, %v2553
        %v2555 = vpop.f32.mrb[0].mxu0
        %2556 = vmatprep.mubr.f32.mxu0 0.0
        %2557 = vmatmul.mubr.f32.gmra.mrb[0].mxu0 %v937
        %v2558 = vpop.f32.mrb[0].mxu0
        %v2559 = vadd.f32 0.0, %v2558
        %v2560 = vpop.f32.mrb[0].mxu0
        %2561 = vmatprep.mubr.f32.mxu0 0.0
        %2562 = vmatmul.mubr.f32.gmra.mrb[0].mxu0 %v939
        %v2563 = vpop.f32.mrb[0].mxu0
        %v2564 = vadd.f32 0.0, %v2563
        %v2565 = vpop.f32.mrb[0].mxu0
        %2566 = vmatprep.mubr.f32.mxu0 0.0
        %2567 = vmatmul.mubr.f32.gmra.mrb[0].mxu0 %v941
        %v2568 = vpop.f32.mrb[0].mxu0
        %v2569 = vadd.f32 0.0, %v2568
        %v2570 = vpop.f32.mrb[0].mxu0
        %2571 = vmatprep.mubr.f32.mxu0 0.0
        %2572 = vmatmul.mubr.f32.gmra.mrb[0].mxu0 %v943
        %v2573 = vpop.f32.mrb[0].mxu0
        %v2574 = vadd.f32 0.0, %v2573
        %v2575 = vpop.f32.mrb[0].mxu0
        %2576 = vmatprep.mubr.f32.mxu0 0.0
        %2577 = vmatmul.mubr.f32.gmra.mrb[0].mxu0 %v945
        %v2578 = vpop.f32.mrb[0].mxu0
        %v2579 = vadd.f32 0.0, %v2578
        %v2580 = vpop.f32.mrb[0].mxu0
        %2581 = vmatprep.mubr.f32.mxu0 0.0
        %2582 = vmatmul.mubr.f32.gmra.mrb[0].mxu0 %v947
        %v2583 = vpop.f32.mrb[0].mxu0
        %v2584 = vadd.f32 0.0, %v2583
        %v2585 = vpop.f32.mrb[0].mxu0
        %2586 = vmatprep.mubr.f32.mxu0 0.0
        %2587 = vmatmul.mubr.f32.gmra.mrb[0].mxu0 %v949
        %v2588 = vpop.f32.mrb[0].mxu0
        %v2589 = vadd.f32 0.0, %v2588
        %v2590 = vpop.f32.mrb[0].mxu0
        %2591 = vmatprep.mubr.f32.mxu0 0.0
        %2592 = vmatmul.mubr.f32.gmra.mrb[0].mxu0 %v951
        %v2593 = vpop.f32.mrb[0].mxu0
        %v2594 = vadd.f32 0.0, %v2593
        %v2595 = vpop.f32.mrb[0].mxu0
        %2596 = vmatprep.mubr.f32.mxu0 0.0
        %2597 = vmatmul.mubr.f32.gmra.mrb[0].mxu0 %v953
        %v2598 = vpop.f32.mrb[0].mxu0
        %v2599 = vadd.f32 0.0, %v2598
        %v2600 = vpop.f32.mrb[0].mxu0
        %2601 = vmatprep.mubr.f32.mxu0 0.0
        %2602 = vmatmul.mubr.f32.gmra.mrb[0].mxu0 %v955
        %v2603 = vpop.f32.mrb[0].mxu0
        %v2604 = vadd.f32 0.0, %v2603
        %v2605 = vpop.f32.mrb[0].mxu0
        %2606 = vmatprep.mubr.f32.mxu0 0.0
        %2607 = vmatmul.mubr.f32.gmra.mrb[0].mxu0 %v957
        %v2608 = vpop.f32.mrb[0].mxu0
        %v2609 = vadd.f32 0.0, %v2608
        %v2610 = vpop.f32.mrb[0].mxu0
        %2611 = vmatprep.mubr.f32.mxu0 0.0
        %2612 = vmatmul.mubr.f32.gmra.mrb[0].mxu0 %v959
        %v2613 = vpop.f32.mrb[0].mxu0
        %v2614 = vadd.f32 0.0, %v2613
        %v2615 = vpop.f32.mrb[0].mxu0
        %2616 = vmatprep.mubr.f32.mxu0 0.0
        %2617 = vmatmul.mubr.f32.gmra.mrb[0].mxu0 %v961
        %v2618 = vpop.f32.mrb[0].mxu0
        %v2619 = vadd.f32 0.0, %v2618
        %v2620 = vpop.f32.mrb[0].mxu0
        %2621 = vmatprep.mubr.f32.mxu0 0.0
        %2622 = vmatmul.mubr.f32.gmra.mrb[0].mxu0 %v963
        %v2623 = vpop.f32.mrb[0].mxu0
        %v2624 = vadd.f32 0.0, %v2623
        %v2625 = vpop.f32.mrb[0].mxu0
        %2626 = vmatprep.mubr.f32.mxu0 0.0
        %2627 = vmatmul.mubr.f32.gmra.mrb[0].mxu0 %v1603
        %v2628 = vpop.f32.mrb[0].mxu0
        %v2629 = vadd.f32 0.0, %v2628
        %v2630 = vpop.f32.mrb[0].mxu0
        %2631 = vmatprep.mubr.f32.mxu0 0.0
        %2632 = vmatmul.mubr.f32.gmra.mrb[0].mxu0 %v1606
        %v2633 = vpop.f32.mrb[0].mxu0
        %v2634 = vadd.f32 0.0, %v2633
        %v2635 = vpop.f32.mrb[0].mxu0
        %2636 = vmatprep.mubr.f32.mxu0 0.0
        %2637 = vmatmul.mubr.f32.gmra.mrb[0].mxu0 %v2414
        %v2638 = vpop.f32.mrb[0].mxu0
        %v2639 = vadd.f32 0.0, %v2638
        %v2640 = vpop.f32.mrb[0].mxu0
        %2641 = vmatprep.mubr.f32.mxu0 0.0
        %2642 = vmatmul.mubr.f32.gmra.mrb[0].mxu0 %v2417
        %v2643 = vpop.f32.mrb[0].mxu0
        %v2644 = vadd.f32 0.0, %v2643
        %v2645 = vpop.f32.mrb[0].mxu0
        %2646 = vdwg.mxu0
        %v2647 = vadd.f32 %v2379, %v2489
        %v2648 = vadd.f32 %v2380, %v2494
        %v2649 = vadd.f32 %v2381, %v2499
        %v2650 = vadd.f32 %v2382, %v2504
        %v2651 = vadd.f32 %v2383, %v2509
        %v2652 = vadd.f32 %v2384, %v2514
        %v2653 = vadd.f32 %v2385, %v2519
        %v2654 = vadd.f32 %v2386, %v2524
        %v2655 = vadd.f32 %v2387, %v2529
        %v2656 = vadd.f32 %v2388, %v2534
        %v2657 = vadd.f32 %v2389, %v2539
        %v2658 = vadd.f32 %v2390, %v2544
        %v2659 = vadd.f32 %v2391, %v2549
        %v2660 = vadd.f32 %v2392, %v2554
        %v2661 = vadd.f32 %v2393, %v2559
        %v2662 = vadd.f32 %v2394, %v2564
        %v2663 = vadd.f32 %v2395, %v2569
        %v2664 = vadd.f32 %v2396, %v2574
        %v2665 = vadd.f32 %v2397, %v2579
        %v2666 = vadd.f32 %v2398, %v2584
        %v2667 = vadd.f32 %v2399, %v2589
        %v2668 = vadd.f32 %v2400, %v2594
        %v2669 = vadd.f32 %v2401, %v2599
        %v2670 = vadd.f32 %v2402, %v2604
        %v2671 = vadd.f32 %v2403, %v2609
        %v2672 = vadd.f32 %v2404, %v2614
        %v2673 = vadd.f32 %v2405, %v2619
        %v2674 = vadd.f32 %v2406, %v2624
        %v2675 = vadd.f32 %v2407, %v2629
        %v2676 = vadd.f32 %v2408, %v2634
        %v2677 = vadd.f32 %v2409, %v2639
        %v2678 = vadd.f32 %v2410, %v2644
        %v2680 = vrot.slane %v472, 1
        %v2681 = vrot.slane %v473, 1
        %v2682 = vsel %vm524, %v2680, %v2681
        %v2683 = vrot.slane %v474, 1
        %v2684 = vsel %vm524, %v2681, %v2683
        %s2685 = scalar_lea.vmem %s1, 28
        %v2686 = vld [vmem:[%s2685] sm:$0xf]
        %v2687 = vsel %vm607, %v2682, 0
        %v2689 = vsel %vm607, %v2684, 0
        %v2692 = vsel %vm672, %v2686, 0
        %2694 = vmatprep.subr.mxu0 0.0
        %2695 = vmatpush1.msra.mxu0 %v2692
        %2696 = vmatprep.subr.mxu0 0.0
        %2697 = vmatpush1.msra.mxu0 0.0
        %2698 = vmatprep.subr.mxu0 0.0
        %2699 = vmatpush1.msra.mxu0 0.0
        %2700 = vmatprep.subr.mxu0 0.0
        %2701 = vmatpush1.msra.mxu0 0.0
        %2702 = vmatprep.subr.mxu0 0.0
        %2703 = vmatpush1.msra.mxu0 0.0
        %2704 = vmatprep.subr.mxu0 0.0
        %2705 = vmatpush1.msra.mxu0 0.0
        %2706 = vmatprep.subr.mxu0 0.0
        %2707 = vmatpush1.msra.mxu0 0.0
        %2708 = vmatprep.subr.mxu0 0.0
        %2709 = vmatpush1.msra.mxu0 0.0
        %2710 = vmatprep.subr.mxu0 0.0
        %2711 = vmatpush1.msra.mxu0 0.0
        %2712 = vmatprep.subr.mxu0 0.0
        %2713 = vmatpush1.msra.mxu0 0.0
        %2714 = vmatprep.subr.mxu0 0.0
        %2715 = vmatpush1.msra.mxu0 0.0
        %2716 = vmatprep.subr.mxu0 0.0
        %2717 = vmatpush1.msra.mxu0 0.0
        %2718 = vmatprep.subr.mxu0 0.0
        %2719 = vmatpush1.msra.mxu0 0.0
        %2720 = vmatprep.subr.mxu0 0.0
        %2721 = vmatpush1.msra.mxu0 0.0
        %2722 = vmatprep.subr.mxu0 0.0
        %2723 = vmatpush1.msra.mxu0 0.0
        %2724 = vmatprep.subr.mxu0 0.0
        %2725 = vmatpush1.msra.mxu0 0.0
        %2726 = vmatprep.subr.mxu0 0.0
        %2727 = vmatpush1.msra.mxu0 0.0
        %2728 = vmatprep.subr.mxu0 0.0
        %2729 = vmatpush1.msra.mxu0 0.0
        %2730 = vmatprep.subr.mxu0 0.0
        %2731 = vmatpush1.msra.mxu0 0.0
        %2732 = vmatprep.subr.mxu0 0.0
        %2733 = vmatpush1.msra.mxu0 0.0
        %2734 = vmatprep.subr.mxu0 0.0
        %2735 = vmatpush1.msra.mxu0 0.0
        %2736 = vmatprep.subr.mxu0 0.0
        %2737 = vmatpush1.msra.mxu0 0.0
        %2738 = vmatprep.subr.mxu0 0.0
        %2739 = vmatpush1.msra.mxu0 0.0
        %2740 = vmatprep.subr.mxu0 0.0
        %2741 = vmatpush1.msra.mxu0 0.0
        %2742 = vmatprep.subr.mxu0 0.0
        %2743 = vmatpush1.msra.mxu0 0.0
        %2744 = vmatprep.subr.mxu0 0.0
        %2745 = vmatpush1.msra.mxu0 0.0
        %2746 = vmatprep.subr.mxu0 0.0
        %2747 = vmatpush1.msra.mxu0 0.0
        %2748 = vmatprep.subr.mxu0 0.0
        %2749 = vmatpush1.msra.mxu0 0.0
        %2750 = vmatprep.subr.mxu0 0.0
        %2751 = vmatpush1.msra.mxu0 0.0
        %2752 = vmatprep.subr.mxu0 0.0
        %2753 = vmatpush1.msra.mxu0 0.0
        %2754 = vmatprep.subr.mxu0 0.0
        %2755 = vmatpush1.msra.mxu0 0.0
        %2756 = vmatprep.subr.mxu0 0.0
        %2757 = vmatpush1.msra.mxu0 0.0
        %2758 = vmatprep.mubr.f32.mxu0 0.0
        %2759 = vmatmul.mubr.f32.gmra.mrb[0].mxu0 %v616
        %v2760 = vpop.f32.mrb[0].mxu0
        %v2761 = vadd.f32 0.0, %v2760
        %v2762 = vpop.f32.mrb[0].mxu0
        %2763 = vmatprep.mubr.f32.mxu0 0.0
        %2764 = vmatmul.mubr.f32.gmra.mrb[0].mxu0 %v618
        %v2765 = vpop.f32.mrb[0].mxu0
        %v2766 = vadd.f32 0.0, %v2765
        %v2767 = vpop.f32.mrb[0].mxu0
        %2768 = vmatprep.mubr.f32.mxu0 0.0
        %2769 = vmatmul.mubr.f32.gmra.mrb[0].mxu0 %v620
        %v2770 = vpop.f32.mrb[0].mxu0
        %v2771 = vadd.f32 0.0, %v2770
        %v2772 = vpop.f32.mrb[0].mxu0
        %2773 = vmatprep.mubr.f32.mxu0 0.0
        %2774 = vmatmul.mubr.f32.gmra.mrb[0].mxu0 %v622
        %v2775 = vpop.f32.mrb[0].mxu0
        %v2776 = vadd.f32 0.0, %v2775
        %v2777 = vpop.f32.mrb[0].mxu0
        %2778 = vmatprep.mubr.f32.mxu0 0.0
        %2779 = vmatmul.mubr.f32.gmra.mrb[0].mxu0 %v624
        %v2780 = vpop.f32.mrb[0].mxu0
        %v2781 = vadd.f32 0.0, %v2780
        %v2782 = vpop.f32.mrb[0].mxu0
        %2783 = vmatprep.mubr.f32.mxu0 0.0
        %2784 = vmatmul.mubr.f32.gmra.mrb[0].mxu0 %v626
        %v2785 = vpop.f32.mrb[0].mxu0
        %v2786 = vadd.f32 0.0, %v2785
        %v2787 = vpop.f32.mrb[0].mxu0
        %2788 = vmatprep.mubr.f32.mxu0 0.0
        %2789 = vmatmul.mubr.f32.gmra.mrb[0].mxu0 %v628
        %v2790 = vpop.f32.mrb[0].mxu0
        %v2791 = vadd.f32 0.0, %v2790
        %v2792 = vpop.f32.mrb[0].mxu0
        %2793 = vmatprep.mubr.f32.mxu0 0.0
        %2794 = vmatmul.mubr.f32.gmra.mrb[0].mxu0 %v630
        %v2795 = vpop.f32.mrb[0].mxu0
        %v2796 = vadd.f32 0.0, %v2795
        %v2797 = vpop.f32.mrb[0].mxu0
        %2798 = vmatprep.mubr.f32.mxu0 0.0
        %2799 = vmatmul.mubr.f32.gmra.mrb[0].mxu0 %v632
        %v2800 = vpop.f32.mrb[0].mxu0
        %v2801 = vadd.f32 0.0, %v2800
        %v2802 = vpop.f32.mrb[0].mxu0
        %2803 = vmatprep.mubr.f32.mxu0 0.0
        %2804 = vmatmul.mubr.f32.gmra.mrb[0].mxu0 %v634
        %v2805 = vpop.f32.mrb[0].mxu0
        %v2806 = vadd.f32 0.0, %v2805
        %v2807 = vpop.f32.mrb[0].mxu0
        %2808 = vmatprep.mubr.f32.mxu0 0.0
        %2809 = vmatmul.mubr.f32.gmra.mrb[0].mxu0 %v636
        %v2810 = vpop.f32.mrb[0].mxu0
        %v2811 = vadd.f32 0.0, %v2810
        %v2812 = vpop.f32.mrb[0].mxu0
        %2813 = vmatprep.mubr.f32.mxu0 0.0
        %2814 = vmatmul.mubr.f32.gmra.mrb[0].mxu0 %v638
        %v2815 = vpop.f32.mrb[0].mxu0
        %v2816 = vadd.f32 0.0, %v2815
        %v2817 = vpop.f32.mrb[0].mxu0
        %2818 = vmatprep.mubr.f32.mxu0 0.0
        %2819 = vmatmul.mubr.f32.gmra.mrb[0].mxu0 %v640
        %v2820 = vpop.f32.mrb[0].mxu0
        %v2821 = vadd.f32 0.0, %v2820
        %v2822 = vpop.f32.mrb[0].mxu0
        %2823 = vmatprep.mubr.f32.mxu0 0.0
        %2824 = vmatmul.mubr.f32.gmra.mrb[0].mxu0 %v642
        %v2825 = vpop.f32.mrb[0].mxu0
        %v2826 = vadd.f32 0.0, %v2825
        %v2827 = vpop.f32.mrb[0].mxu0
        %2828 = vmatprep.mubr.f32.mxu0 0.0
        %2829 = vmatmul.mubr.f32.gmra.mrb[0].mxu0 %v644
        %v2830 = vpop.f32.mrb[0].mxu0
        %v2831 = vadd.f32 0.0, %v2830
        %v2832 = vpop.f32.mrb[0].mxu0
        %2833 = vmatprep.mubr.f32.mxu0 0.0
        %2834 = vmatmul.mubr.f32.gmra.mrb[0].mxu0 %v646
        %v2835 = vpop.f32.mrb[0].mxu0
        %v2836 = vadd.f32 0.0, %v2835
        %v2837 = vpop.f32.mrb[0].mxu0
        %2838 = vmatprep.mubr.f32.mxu0 0.0
        %2839 = vmatmul.mubr.f32.gmra.mrb[0].mxu0 %v648
        %v2840 = vpop.f32.mrb[0].mxu0
        %v2841 = vadd.f32 0.0, %v2840
        %v2842 = vpop.f32.mrb[0].mxu0
        %2843 = vmatprep.mubr.f32.mxu0 0.0
        %2844 = vmatmul.mubr.f32.gmra.mrb[0].mxu0 %v650
        %v2845 = vpop.f32.mrb[0].mxu0
        %v2846 = vadd.f32 0.0, %v2845
        %v2847 = vpop.f32.mrb[0].mxu0
        %2848 = vmatprep.mubr.f32.mxu0 0.0
        %2849 = vmatmul.mubr.f32.gmra.mrb[0].mxu0 %v652
        %v2850 = vpop.f32.mrb[0].mxu0
        %v2851 = vadd.f32 0.0, %v2850
        %v2852 = vpop.f32.mrb[0].mxu0
        %2853 = vmatprep.mubr.f32.mxu0 0.0
        %2854 = vmatmul.mubr.f32.gmra.mrb[0].mxu0 %v654
        %v2855 = vpop.f32.mrb[0].mxu0
        %v2856 = vadd.f32 0.0, %v2855
        %v2857 = vpop.f32.mrb[0].mxu0
        %2858 = vmatprep.mubr.f32.mxu0 0.0
        %2859 = vmatmul.mubr.f32.gmra.mrb[0].mxu0 %v656
        %v2860 = vpop.f32.mrb[0].mxu0
        %v2861 = vadd.f32 0.0, %v2860
        %v2862 = vpop.f32.mrb[0].mxu0
        %2863 = vmatprep.mubr.f32.mxu0 0.0
        %2864 = vmatmul.mubr.f32.gmra.mrb[0].mxu0 %v658
        %v2865 = vpop.f32.mrb[0].mxu0
        %v2866 = vadd.f32 0.0, %v2865
        %v2867 = vpop.f32.mrb[0].mxu0
        %2868 = vmatprep.mubr.f32.mxu0 0.0
        %2869 = vmatmul.mubr.f32.gmra.mrb[0].mxu0 %v660
        %v2870 = vpop.f32.mrb[0].mxu0
        %v2871 = vadd.f32 0.0, %v2870
        %v2872 = vpop.f32.mrb[0].mxu0
        %2873 = vmatprep.mubr.f32.mxu0 0.0
        %2874 = vmatmul.mubr.f32.gmra.mrb[0].mxu0 %v662
        %v2875 = vpop.f32.mrb[0].mxu0
        %v2876 = vadd.f32 0.0, %v2875
        %v2877 = vpop.f32.mrb[0].mxu0
        %2878 = vmatprep.mubr.f32.mxu0 0.0
        %2879 = vmatmul.mubr.f32.gmra.mrb[0].mxu0 %v664
        %v2880 = vpop.f32.mrb[0].mxu0
        %v2881 = vadd.f32 0.0, %v2880
        %v2882 = vpop.f32.mrb[0].mxu0
        %2883 = vmatprep.mubr.f32.mxu0 0.0
        %2884 = vmatmul.mubr.f32.gmra.mrb[0].mxu0 %v666
        %v2885 = vpop.f32.mrb[0].mxu0
        %v2886 = vadd.f32 0.0, %v2885
        %v2887 = vpop.f32.mrb[0].mxu0
        %2888 = vmatprep.mubr.f32.mxu0 0.0
        %2889 = vmatmul.mubr.f32.gmra.mrb[0].mxu0 %v668
        %v2890 = vpop.f32.mrb[0].mxu0
        %v2891 = vadd.f32 0.0, %v2890
        %v2892 = vpop.f32.mrb[0].mxu0
        %2893 = vmatprep.mubr.f32.mxu0 0.0
        %2894 = vmatmul.mubr.f32.gmra.mrb[0].mxu0 %v670
        %v2895 = vpop.f32.mrb[0].mxu0
        %v2896 = vadd.f32 0.0, %v2895
        %v2897 = vpop.f32.mrb[0].mxu0
        %2898 = vmatprep.mubr.f32.mxu0 0.0
        %2899 = vmatmul.mubr.f32.gmra.mrb[0].mxu0 %v1876
        %v2900 = vpop.f32.mrb[0].mxu0
        %v2901 = vadd.f32 0.0, %v2900
        %v2902 = vpop.f32.mrb[0].mxu0
        %2903 = vmatprep.mubr.f32.mxu0 0.0
        %2904 = vmatmul.mubr.f32.gmra.mrb[0].mxu0 %v1878
        %v2905 = vpop.f32.mrb[0].mxu0
        %v2906 = vadd.f32 0.0, %v2905
        %v2907 = vpop.f32.mrb[0].mxu0
        %2908 = vmatprep.mubr.f32.mxu0 0.0
        %2909 = vmatmul.mubr.f32.gmra.mrb[0].mxu0 %v2687
        %v2910 = vpop.f32.mrb[0].mxu0
        %v2911 = vadd.f32 0.0, %v2910
        %v2912 = vpop.f32.mrb[0].mxu0
        %2913 = vmatprep.mubr.f32.mxu0 0.0
        %2914 = vmatmul.mubr.f32.gmra.mrb[0].mxu0 %v2689
        %v2915 = vpop.f32.mrb[0].mxu0
        %v2916 = vadd.f32 0.0, %v2915
        %v2917 = vpop.f32.mrb[0].mxu0
        %2918 = vdwg.mxu0
        %v2919 = vadd.f32 %v2647, %v2761
        %v2920 = vadd.f32 %v2648, %v2766
        %v2921 = vadd.f32 %v2649, %v2771
        %v2922 = vadd.f32 %v2650, %v2776
        %v2923 = vadd.f32 %v2651, %v2781
        %v2924 = vadd.f32 %v2652, %v2786
        %v2925 = vadd.f32 %v2653, %v2791
        %v2926 = vadd.f32 %v2654, %v2796
        %v2927 = vadd.f32 %v2655, %v2801
        %v2928 = vadd.f32 %v2656, %v2806
        %v2929 = vadd.f32 %v2657, %v2811
        %v2930 = vadd.f32 %v2658, %v2816
        %v2931 = vadd.f32 %v2659, %v2821
        %v2932 = vadd.f32 %v2660, %v2826
        %v2933 = vadd.f32 %v2661, %v2831
        %v2934 = vadd.f32 %v2662, %v2836
        %v2935 = vadd.f32 %v2663, %v2841
        %v2936 = vadd.f32 %v2664, %v2846
        %v2937 = vadd.f32 %v2665, %v2851
        %v2938 = vadd.f32 %v2666, %v2856
        %v2939 = vadd.f32 %v2667, %v2861
        %v2940 = vadd.f32 %v2668, %v2866
        %v2941 = vadd.f32 %v2669, %v2871
        %v2942 = vadd.f32 %v2670, %v2876
        %v2943 = vadd.f32 %v2671, %v2881
        %v2944 = vadd.f32 %v2672, %v2886
        %v2945 = vadd.f32 %v2673, %v2891
        %v2946 = vadd.f32 %v2674, %v2896
        %v2947 = vadd.f32 %v2675, %v2901
        %v2948 = vadd.f32 %v2676, %v2906
        %v2949 = vadd.f32 %v2677, %v2911
        %v2950 = vadd.f32 %v2678, %v2916
        %v2951 = vrot.slane %v472, 2
        %v2952 = vrot.slane %v473, 2
        %v2953 = vsel %vm1193, %v2951, %v2952
        %v2954 = vrot.slane %v474, 2
        %v2955 = vsel %vm1193, %v2952, %v2954
        %s2956 = scalar_lea.vmem %s1, 32
        %v2957 = vld [vmem:[%s2956] sm:$0xf]
        %v2958 = vsel %vm607, %v2953, 0
        %v2960 = vsel %vm607, %v2955, 0
        %v2963 = vsel %vm672, %v2957, 0
        %2965 = vmatprep.subr.mxu0 0.0
        %2966 = vmatpush1.msra.mxu0 %v2963
        %2967 = vmatprep.subr.mxu0 0.0
        %2968 = vmatpush1.msra.mxu0 0.0
        %2969 = vmatprep.subr.mxu0 0.0
        %2970 = vmatpush1.msra.mxu0 0.0
        %2971 = vmatprep.subr.mxu0 0.0
        %2972 = vmatpush1.msra.mxu0 0.0
        %2973 = vmatprep.subr.mxu0 0.0
        %2974 = vmatpush1.msra.mxu0 0.0
        %2975 = vmatprep.subr.mxu0 0.0
        %2976 = vmatpush1.msra.mxu0 0.0
        %2977 = vmatprep.subr.mxu0 0.0
        %2978 = vmatpush1.msra.mxu0 0.0
        %2979 = vmatprep.subr.mxu0 0.0
        %2980 = vmatpush1.msra.mxu0 0.0
        %2981 = vmatprep.subr.mxu0 0.0
        %2982 = vmatpush1.msra.mxu0 0.0
        %2983 = vmatprep.subr.mxu0 0.0
        %2984 = vmatpush1.msra.mxu0 0.0
        %2985 = vmatprep.subr.mxu0 0.0
        %2986 = vmatpush1.msra.mxu0 0.0
        %2987 = vmatprep.subr.mxu0 0.0
        %2988 = vmatpush1.msra.mxu0 0.0
        %2989 = vmatprep.subr.mxu0 0.0
        %2990 = vmatpush1.msra.mxu0 0.0
        %2991 = vmatprep.subr.mxu0 0.0
        %2992 = vmatpush1.msra.mxu0 0.0
        %2993 = vmatprep.subr.mxu0 0.0
        %2994 = vmatpush1.msra.mxu0 0.0
        %2995 = vmatprep.subr.mxu0 0.0
        %2996 = vmatpush1.msra.mxu0 0.0
        %2997 = vmatprep.subr.mxu0 0.0
        %2998 = vmatpush1.msra.mxu0 0.0
        %2999 = vmatprep.subr.mxu0 0.0
        %3000 = vmatpush1.msra.mxu0 0.0
        %3001 = vmatprep.subr.mxu0 0.0
        %3002 = vmatpush1.msra.mxu0 0.0
        %3003 = vmatprep.subr.mxu0 0.0
        %3004 = vmatpush1.msra.mxu0 0.0
        %3005 = vmatprep.subr.mxu0 0.0
        %3006 = vmatpush1.msra.mxu0 0.0
        %3007 = vmatprep.subr.mxu0 0.0
        %3008 = vmatpush1.msra.mxu0 0.0
        %3009 = vmatprep.subr.mxu0 0.0
        %3010 = vmatpush1.msra.mxu0 0.0
        %3011 = vmatprep.subr.mxu0 0.0
        %3012 = vmatpush1.msra.mxu0 0.0
        %3013 = vmatprep.subr.mxu0 0.0
        %3014 = vmatpush1.msra.mxu0 0.0
        %3015 = vmatprep.subr.mxu0 0.0
        %3016 = vmatpush1.msra.mxu0 0.0
        %3017 = vmatprep.subr.mxu0 0.0
        %3018 = vmatpush1.msra.mxu0 0.0
        %3019 = vmatprep.subr.mxu0 0.0
        %3020 = vmatpush1.msra.mxu0 0.0
        %3021 = vmatprep.subr.mxu0 0.0
        %3022 = vmatpush1.msra.mxu0 0.0
        %3023 = vmatprep.subr.mxu0 0.0
        %3024 = vmatpush1.msra.mxu0 0.0
        %3025 = vmatprep.subr.mxu0 0.0
        %3026 = vmatpush1.msra.mxu0 0.0
        %3027 = vmatprep.subr.mxu0 0.0
        %3028 = vmatpush1.msra.mxu0 0.0
        %3029 = vmatprep.mubr.f32.mxu0 0.0
        %3030 = vmatmul.mubr.f32.gmra.mrb[0].mxu0 %v1284
        %v3031 = vpop.f32.mrb[0].mxu0
        %v3032 = vadd.f32 0.0, %v3031
        %v3033 = vpop.f32.mrb[0].mxu0
        %3034 = vmatprep.mubr.f32.mxu0 0.0
        %3035 = vmatmul.mubr.f32.gmra.mrb[0].mxu0 %v1286
        %v3036 = vpop.f32.mrb[0].mxu0
        %v3037 = vadd.f32 0.0, %v3036
        %v3038 = vpop.f32.mrb[0].mxu0
        %3039 = vmatprep.mubr.f32.mxu0 0.0
        %3040 = vmatmul.mubr.f32.gmra.mrb[0].mxu0 %v1288
        %v3041 = vpop.f32.mrb[0].mxu0
        %v3042 = vadd.f32 0.0, %v3041
        %v3043 = vpop.f32.mrb[0].mxu0
        %3044 = vmatprep.mubr.f32.mxu0 0.0
        %3045 = vmatmul.mubr.f32.gmra.mrb[0].mxu0 %v1290
        %v3046 = vpop.f32.mrb[0].mxu0
        %v3047 = vadd.f32 0.0, %v3046
        %v3048 = vpop.f32.mrb[0].mxu0
        %3049 = vmatprep.mubr.f32.mxu0 0.0
        %3050 = vmatmul.mubr.f32.gmra.mrb[0].mxu0 %v1292
        %v3051 = vpop.f32.mrb[0].mxu0
        %v3052 = vadd.f32 0.0, %v3051
        %v3053 = vpop.f32.mrb[0].mxu0
        %3054 = vmatprep.mubr.f32.mxu0 0.0
        %3055 = vmatmul.mubr.f32.gmra.mrb[0].mxu0 %v1294
        %v3056 = vpop.f32.mrb[0].mxu0
        %v3057 = vadd.f32 0.0, %v3056
        %v3058 = vpop.f32.mrb[0].mxu0
        %3059 = vmatprep.mubr.f32.mxu0 0.0
        %3060 = vmatmul.mubr.f32.gmra.mrb[0].mxu0 %v1296
        %v3061 = vpop.f32.mrb[0].mxu0
        %v3062 = vadd.f32 0.0, %v3061
        %v3063 = vpop.f32.mrb[0].mxu0
        %3064 = vmatprep.mubr.f32.mxu0 0.0
        %3065 = vmatmul.mubr.f32.gmra.mrb[0].mxu0 %v1298
        %v3066 = vpop.f32.mrb[0].mxu0
        %v3067 = vadd.f32 0.0, %v3066
        %v3068 = vpop.f32.mrb[0].mxu0
        %3069 = vmatprep.mubr.f32.mxu0 0.0
        %3070 = vmatmul.mubr.f32.gmra.mrb[0].mxu0 %v1300
        %v3071 = vpop.f32.mrb[0].mxu0
        %v3072 = vadd.f32 0.0, %v3071
        %v3073 = vpop.f32.mrb[0].mxu0
        %3074 = vmatprep.mubr.f32.mxu0 0.0
        %3075 = vmatmul.mubr.f32.gmra.mrb[0].mxu0 %v1302
        %v3076 = vpop.f32.mrb[0].mxu0
        %v3077 = vadd.f32 0.0, %v3076
        %v3078 = vpop.f32.mrb[0].mxu0
        %3079 = vmatprep.mubr.f32.mxu0 0.0
        %3080 = vmatmul.mubr.f32.gmra.mrb[0].mxu0 %v1304
        %v3081 = vpop.f32.mrb[0].mxu0
        %v3082 = vadd.f32 0.0, %v3081
        %v3083 = vpop.f32.mrb[0].mxu0
        %3084 = vmatprep.mubr.f32.mxu0 0.0
        %3085 = vmatmul.mubr.f32.gmra.mrb[0].mxu0 %v1306
        %v3086 = vpop.f32.mrb[0].mxu0
        %v3087 = vadd.f32 0.0, %v3086
        %v3088 = vpop.f32.mrb[0].mxu0
        %3089 = vmatprep.mubr.f32.mxu0 0.0
        %3090 = vmatmul.mubr.f32.gmra.mrb[0].mxu0 %v1308
        %v3091 = vpop.f32.mrb[0].mxu0
        %v3092 = vadd.f32 0.0, %v3091
        %v3093 = vpop.f32.mrb[0].mxu0
        %3094 = vmatprep.mubr.f32.mxu0 0.0
        %3095 = vmatmul.mubr.f32.gmra.mrb[0].mxu0 %v1310
        %v3096 = vpop.f32.mrb[0].mxu0
        %v3097 = vadd.f32 0.0, %v3096
        %v3098 = vpop.f32.mrb[0].mxu0
        %3099 = vmatprep.mubr.f32.mxu0 0.0
        %3100 = vmatmul.mubr.f32.gmra.mrb[0].mxu0 %v1312
        %v3101 = vpop.f32.mrb[0].mxu0
        %v3102 = vadd.f32 0.0, %v3101
        %v3103 = vpop.f32.mrb[0].mxu0
        %3104 = vmatprep.mubr.f32.mxu0 0.0
        %3105 = vmatmul.mubr.f32.gmra.mrb[0].mxu0 %v1314
        %v3106 = vpop.f32.mrb[0].mxu0
        %v3107 = vadd.f32 0.0, %v3106
        %v3108 = vpop.f32.mrb[0].mxu0
        %3109 = vmatprep.mubr.f32.mxu0 0.0
        %3110 = vmatmul.mubr.f32.gmra.mrb[0].mxu0 %v1316
        %v3111 = vpop.f32.mrb[0].mxu0
        %v3112 = vadd.f32 0.0, %v3111
        %v3113 = vpop.f32.mrb[0].mxu0
        %3114 = vmatprep.mubr.f32.mxu0 0.0
        %3115 = vmatmul.mubr.f32.gmra.mrb[0].mxu0 %v1318
        %v3116 = vpop.f32.mrb[0].mxu0
        %v3117 = vadd.f32 0.0, %v3116
        %v3118 = vpop.f32.mrb[0].mxu0
        %3119 = vmatprep.mubr.f32.mxu0 0.0
        %3120 = vmatmul.mubr.f32.gmra.mrb[0].mxu0 %v1320
        %v3121 = vpop.f32.mrb[0].mxu0
        %v3122 = vadd.f32 0.0, %v3121
        %v3123 = vpop.f32.mrb[0].mxu0
        %3124 = vmatprep.mubr.f32.mxu0 0.0
        %3125 = vmatmul.mubr.f32.gmra.mrb[0].mxu0 %v1322
        %v3126 = vpop.f32.mrb[0].mxu0
        %v3127 = vadd.f32 0.0, %v3126
        %v3128 = vpop.f32.mrb[0].mxu0
        %3129 = vmatprep.mubr.f32.mxu0 0.0
        %3130 = vmatmul.mubr.f32.gmra.mrb[0].mxu0 %v1324
        %v3131 = vpop.f32.mrb[0].mxu0
        %v3132 = vadd.f32 0.0, %v3131
        %v3133 = vpop.f32.mrb[0].mxu0
        %3134 = vmatprep.mubr.f32.mxu0 0.0
        %3135 = vmatmul.mubr.f32.gmra.mrb[0].mxu0 %v1326
        %v3136 = vpop.f32.mrb[0].mxu0
        %v3137 = vadd.f32 0.0, %v3136
        %v3138 = vpop.f32.mrb[0].mxu0
        %3139 = vmatprep.mubr.f32.mxu0 0.0
        %3140 = vmatmul.mubr.f32.gmra.mrb[0].mxu0 %v1328
        %v3141 = vpop.f32.mrb[0].mxu0
        %v3142 = vadd.f32 0.0, %v3141
        %v3143 = vpop.f32.mrb[0].mxu0
        %3144 = vmatprep.mubr.f32.mxu0 0.0
        %3145 = vmatmul.mubr.f32.gmra.mrb[0].mxu0 %v1330
        %v3146 = vpop.f32.mrb[0].mxu0
        %v3147 = vadd.f32 0.0, %v3146
        %v3148 = vpop.f32.mrb[0].mxu0
        %3149 = vmatprep.mubr.f32.mxu0 0.0
        %3150 = vmatmul.mubr.f32.gmra.mrb[0].mxu0 %v1332
        %v3151 = vpop.f32.mrb[0].mxu0
        %v3152 = vadd.f32 0.0, %v3151
        %v3153 = vpop.f32.mrb[0].mxu0
        %3154 = vmatprep.mubr.f32.mxu0 0.0
        %3155 = vmatmul.mubr.f32.gmra.mrb[0].mxu0 %v1334
        %v3156 = vpop.f32.mrb[0].mxu0
        %v3157 = vadd.f32 0.0, %v3156
        %v3158 = vpop.f32.mrb[0].mxu0
        %3159 = vmatprep.mubr.f32.mxu0 0.0
        %3160 = vmatmul.mubr.f32.gmra.mrb[0].mxu0 %v1336
        %v3161 = vpop.f32.mrb[0].mxu0
        %v3162 = vadd.f32 0.0, %v3161
        %v3163 = vpop.f32.mrb[0].mxu0
        %3164 = vmatprep.mubr.f32.mxu0 0.0
        %3165 = vmatmul.mubr.f32.gmra.mrb[0].mxu0 %v1338
        %v3166 = vpop.f32.mrb[0].mxu0
        %v3167 = vadd.f32 0.0, %v3166
        %v3168 = vpop.f32.mrb[0].mxu0
        %3169 = vmatprep.mubr.f32.mxu0 0.0
        %3170 = vmatmul.mubr.f32.gmra.mrb[0].mxu0 %v2147
        %v3171 = vpop.f32.mrb[0].mxu0
        %v3172 = vadd.f32 0.0, %v3171
        %v3173 = vpop.f32.mrb[0].mxu0
        %3174 = vmatprep.mubr.f32.mxu0 0.0
        %3175 = vmatmul.mubr.f32.gmra.mrb[0].mxu0 %v2149
        %v3176 = vpop.f32.mrb[0].mxu0
        %v3177 = vadd.f32 0.0, %v3176
        %v3178 = vpop.f32.mrb[0].mxu0
        %3179 = vmatprep.mubr.f32.mxu0 0.0
        %3180 = vmatmul.mubr.f32.gmra.mrb[0].mxu0 %v2958
        %v3181 = vpop.f32.mrb[0].mxu0
        %v3182 = vadd.f32 0.0, %v3181
        %v3183 = vpop.f32.mrb[0].mxu0
        %3184 = vmatprep.mubr.f32.mxu0 0.0
        %3185 = vmatmul.mubr.f32.gmra.mrb[0].mxu0 %v2960
        %v3186 = vpop.f32.mrb[0].mxu0
        %v3187 = vadd.f32 0.0, %v3186
        %v3188 = vpop.f32.mrb[0].mxu0
        %3189 = vdwg.mxu0
        %v3190 = vadd.f32 %v2919, %v3032
        %v3191 = vadd.f32 %v2920, %v3037
        %v3192 = vadd.f32 %v2921, %v3042
        %v3193 = vadd.f32 %v2922, %v3047
        %v3194 = vadd.f32 %v2923, %v3052
        %v3195 = vadd.f32 %v2924, %v3057
        %v3196 = vadd.f32 %v2925, %v3062
        %v3197 = vadd.f32 %v2926, %v3067
        %v3198 = vadd.f32 %v2927, %v3072
        %v3199 = vadd.f32 %v2928, %v3077
        %v3200 = vadd.f32 %v2929, %v3082
        %v3201 = vadd.f32 %v2930, %v3087
        %v3202 = vadd.f32 %v2931, %v3092
        %v3203 = vadd.f32 %v2932, %v3097
        %v3204 = vadd.f32 %v2933, %v3102
        %v3205 = vadd.f32 %v2934, %v3107
        %v3206 = vadd.f32 %v2935, %v3112
        %v3207 = vadd.f32 %v2936, %v3117
        %v3208 = vadd.f32 %v2937, %v3122
        %v3209 = vadd.f32 %v2938, %v3127
        %v3210 = vadd.f32 %v2939, %v3132
        %v3211 = vadd.f32 %v2940, %v3137
        %v3212 = vadd.f32 %v2941, %v3142
        %v3213 = vadd.f32 %v2942, %v3147
        %v3214 = vadd.f32 %v2943, %v3152
        %v3215 = vadd.f32 %v2944, %v3157
        %v3216 = vadd.f32 %v2945, %v3162
        %v3217 = vadd.f32 %v2946, %v3167
        %v3218 = vadd.f32 %v2947, %v3172
        %v3219 = vadd.f32 %v2948, %v3177
        %v3220 = vadd.f32 %v2949, %v3182
        %v3221 = vadd.f32 %v2950, %v3187
        %v3222 = vld [vmem:[%s2] sm:$0x1]
        %v3224 = vlaneseq
        %v3225 = vshrl.u32 %v3224, 7
        %v3226 = vsub.s32 0, %v3225
        %v3227 = vrot.slane %v3222, %v3226
        %v3229 = vadd.f32 %v3190, %v3227
        %v3230 = vadd.f32 %v3191, %v3227
        %v3231 = vadd.f32 %v3192, %v3227
        %v3232 = vadd.f32 %v3193, %v3227
        %v3233 = vadd.f32 %v3194, %v3227
        %v3234 = vadd.f32 %v3195, %v3227
        %v3235 = vadd.f32 %v3196, %v3227
        %v3236 = vadd.f32 %v3197, %v3227
        %v3237 = vadd.f32 %v3198, %v3227
        %v3238 = vadd.f32 %v3199, %v3227
        %v3239 = vadd.f32 %v3200, %v3227
        %v3240 = vadd.f32 %v3201, %v3227
        %v3241 = vadd.f32 %v3202, %v3227
        %v3242 = vadd.f32 %v3203, %v3227
        %v3243 = vadd.f32 %v3204, %v3227
        %v3244 = vadd.f32 %v3205, %v3227
        %v3245 = vadd.f32 %v3206, %v3227
        %v3246 = vadd.f32 %v3207, %v3227
        %v3247 = vadd.f32 %v3208, %v3227
        %v3248 = vadd.f32 %v3209, %v3227
        %v3249 = vadd.f32 %v3210, %v3227
        %v3250 = vadd.f32 %v3211, %v3227
        %v3251 = vadd.f32 %v3212, %v3227
        %v3252 = vadd.f32 %v3213, %v3227
        %v3253 = vadd.f32 %v3214, %v3227
        %v3254 = vadd.f32 %v3215, %v3227
        %v3255 = vadd.f32 %v3216, %v3227
        %v3256 = vadd.f32 %v3217, %v3227
        %v3257 = vadd.f32 %v3218, %v3227
        %v3258 = vadd.f32 %v3219, %v3227
        %v3259 = vadd.f32 %v3220, %v3227
        %v3260 = vadd.f32 %v3221, %v3227
        %v3261 = vmax.f32 %v3229, 0.0
        %v3262 = vmax.f32 %v3230, 0.0
        %v3263 = vmax.f32 %v3231, 0.0
        %v3264 = vmax.f32 %v3232, 0.0
        %v3265 = vmax.f32 %v3233, 0.0
        %v3266 = vmax.f32 %v3234, 0.0
        %v3267 = vmax.f32 %v3235, 0.0
        %v3268 = vmax.f32 %v3236, 0.0
        %v3269 = vmax.f32 %v3237, 0.0
        %v3270 = vmax.f32 %v3238, 0.0
        %v3271 = vmax.f32 %v3239, 0.0
        %v3272 = vmax.f32 %v3240, 0.0
        %v3273 = vmax.f32 %v3241, 0.0
        %v3274 = vmax.f32 %v3242, 0.0
        %v3275 = vmax.f32 %v3243, 0.0
        %v3276 = vmax.f32 %v3244, 0.0
        %v3277 = vmax.f32 %v3245, 0.0
        %v3278 = vmax.f32 %v3246, 0.0
        %v3279 = vmax.f32 %v3247, 0.0
        %v3280 = vmax.f32 %v3248, 0.0
        %v3281 = vmax.f32 %v3249, 0.0
        %v3282 = vmax.f32 %v3250, 0.0
        %v3283 = vmax.f32 %v3251, 0.0
        %v3284 = vmax.f32 %v3252, 0.0
        %v3285 = vmax.f32 %v3253, 0.0
        %v3286 = vmax.f32 %v3254, 0.0
        %v3287 = vmax.f32 %v3255, 0.0
        %v3288 = vmax.f32 %v3256, 0.0
        %v3289 = vmax.f32 %v3257, 0.0
        %v3290 = vmax.f32 %v3258, 0.0
        %v3291 = vmax.f32 %v3259, 0.0
        %v3292 = vmax.f32 %v3260, 0.0
        %vm3293 = vcmask 261120
        %v3294 = vsel %vm3293, %v3261, 0.0
        %v3295 = vsel %vm3293, %v3262, 0.0
        %v3296 = vadd.f32 %v3294, %v3295
        %v3297 = vsel %vm3293, %v3263, 0.0
        %v3298 = vadd.f32 %v3296, %v3297
        %v3299 = vsel %vm3293, %v3264, 0.0
        %v3300 = vadd.f32 %v3298, %v3299
        %v3301 = vsel %vm3293, %v3265, 0.0
        %v3302 = vadd.f32 %v3300, %v3301
        %v3303 = vsel %vm3293, %v3266, 0.0
        %v3304 = vadd.f32 %v3302, %v3303
        %v3305 = vsel %vm3293, %v3267, 0.0
        %v3306 = vadd.f32 %v3304, %v3305
        %v3307 = vsel %vm3293, %v3268, 0.0
        %v3308 = vadd.f32 %v3306, %v3307
        %v3309 = vsel %vm3293, %v3269, 0.0
        %v3310 = vadd.f32 %v3308, %v3309
        %v3311 = vsel %vm3293, %v3270, 0.0
        %v3312 = vadd.f32 %v3310, %v3311
        %v3313 = vsel %vm3293, %v3271, 0.0
        %v3314 = vadd.f32 %v3312, %v3313
        %v3315 = vsel %vm3293, %v3272, 0.0
        %v3316 = vadd.f32 %v3314, %v3315
        %v3317 = vsel %vm3293, %v3273, 0.0
        %v3318 = vadd.f32 %v3316, %v3317
        %v3319 = vsel %vm3293, %v3274, 0.0
        %v3320 = vadd.f32 %v3318, %v3319
        %v3321 = vsel %vm3293, %v3275, 0.0
        %v3322 = vadd.f32 %v3320, %v3321
        %v3323 = vsel %vm3293, %v3276, 0.0
        %v3324 = vadd.f32 %v3322, %v3323
        %v3325 = vsel %vm3293, %v3277, 0.0
        %v3326 = vadd.f32 %v3324, %v3325
        %v3327 = vsel %vm3293, %v3278, 0.0
        %v3328 = vadd.f32 %v3326, %v3327
        %v3329 = vsel %vm3293, %v3279, 0.0
        %v3330 = vadd.f32 %v3328, %v3329
        %v3331 = vsel %vm3293, %v3280, 0.0
        %v3332 = vadd.f32 %v3330, %v3331
        %v3333 = vsel %vm3293, %v3281, 0.0
        %v3334 = vadd.f32 %v3332, %v3333
        %v3335 = vsel %vm3293, %v3282, 0.0
        %v3336 = vadd.f32 %v3334, %v3335
        %v3337 = vsel %vm3293, %v3283, 0.0
        %v3338 = vadd.f32 %v3336, %v3337
        %v3339 = vsel %vm3293, %v3284, 0.0
        %v3340 = vadd.f32 %v3338, %v3339
        %v3341 = vsel %vm3293, %v3285, 0.0
        %v3342 = vadd.f32 %v3340, %v3341
        %v3343 = vsel %vm3293, %v3286, 0.0
        %v3344 = vadd.f32 %v3342, %v3343
        %v3345 = vsel %vm3293, %v3287, 0.0
        %v3346 = vadd.f32 %v3344, %v3345
        %v3347 = vsel %vm3293, %v3288, 0.0
        %v3348 = vadd.f32 %v3346, %v3347
        %v3349 = vsel %vm3293, %v3289, 0.0
        %v3350 = vadd.f32 %v3348, %v3349
        %v3351 = vsel %vm3293, %v3290, 0.0
        %v3352 = vadd.f32 %v3350, %v3351
        %v3353 = vsel %vm3293, %v3291, 0.0
        %v3354 = vadd.f32 %v3352, %v3353
        %v3355 = vsel %vm3293, %v3292, 0.0
        %v3356 = vadd.f32 %v3354, %v3355
        %v3357 = vrot.slane %v3356, 4
        %v3358 = vadd.f32 %v3356, %v3357
        %v3359 = vrot.slane %v3358, 2
        %v3360 = vadd.f32 %v3358, %v3359
        %v3361 = vrot.slane %v3360, 1
        %v3362 = vadd.f32 %v3360, %v3361
        %v3363 = vmul.f32 %v3362, 0.00390625
        %v3364 = vld [vmem:[%s3] sm:$0xff]
        %v3365 = vld [vmem:[%s3 + $0x8] sm:$0xff]
        %v3366 = vld [vmem:[%s3 + $0x10] sm:$0xff]
        %v3367 = vld [vmem:[%s3 + $0x18] sm:$0xff]
        %v3368 = vld [vmem:[%s4] sm:$0x1]
        %v3370 = vsel %vm3293, %v3363, 0
        %3372 = vmatprep.subr.mxu0 0.0
        %3373 = vmatpush1.msra.mxu0 %v3364
        %3374 = vmatprep.subr.mxu0 0.0
        %3375 = vmatpush1.msra.mxu0 %v3365
        %3376 = vmatprep.subr.mxu0 0.0
        %3377 = vmatpush1.msra.mxu0 %v3366
        %3378 = vmatprep.subr.mxu0 0.0
        %3379 = vmatpush1.msra.mxu0 %v3367
        %3380 = vmatprep.subr.mxu0 0.0
        %3381 = vmatpush1.msra.mxu0 0.0
        %3382 = vmatprep.subr.mxu0 0.0
        %3383 = vmatpush1.msra.mxu0 0.0
        %3384 = vmatprep.subr.mxu0 0.0
        %3385 = vmatpush1.msra.mxu0 0.0
        %3386 = vmatprep.subr.mxu0 0.0
        %3387 = vmatpush1.msra.mxu0 0.0
        %3388 = vmatprep.subr.mxu0 0.0
        %3389 = vmatpush1.msra.mxu0 0.0
        %3390 = vmatprep.subr.mxu0 0.0
        %3391 = vmatpush1.msra.mxu0 0.0
        %3392 = vmatprep.subr.mxu0 0.0
        %3393 = vmatpush1.msra.mxu0 0.0
        %3394 = vmatprep.subr.mxu0 0.0
        %3395 = vmatpush1.msra.mxu0 0.0
        %3396 = vmatprep.subr.mxu0 0.0
        %3397 = vmatpush1.msra.mxu0 0.0
        %3398 = vmatprep.subr.mxu0 0.0
        %3399 = vmatpush1.msra.mxu0 0.0
        %3400 = vmatprep.subr.mxu0 0.0
        %3401 = vmatpush1.msra.mxu0 0.0
        %3402 = vmatprep.subr.mxu0 0.0
        %3403 = vmatpush1.msra.mxu0 0.0
        %3404 = vmatprep.subr.mxu0 0.0
        %3405 = vmatpush1.msra.mxu0 0.0
        %3406 = vmatprep.subr.mxu0 0.0
        %3407 = vmatpush1.msra.mxu0 0.0
        %3408 = vmatprep.subr.mxu0 0.0
        %3409 = vmatpush1.msra.mxu0 0.0
        %3410 = vmatprep.subr.mxu0 0.0
        %3411 = vmatpush1.msra.mxu0 0.0
        %3412 = vmatprep.subr.mxu0 0.0
        %3413 = vmatpush1.msra.mxu0 0.0
        %3414 = vmatprep.subr.mxu0 0.0
        %3415 = vmatpush1.msra.mxu0 0.0
        %3416 = vmatprep.subr.mxu0 0.0
        %3417 = vmatpush1.msra.mxu0 0.0
        %3418 = vmatprep.subr.mxu0 0.0
        %3419 = vmatpush1.msra.mxu0 0.0
        %3420 = vmatprep.subr.mxu0 0.0
        %3421 = vmatpush1.msra.mxu0 0.0
        %3422 = vmatprep.subr.mxu0 0.0
        %3423 = vmatpush1.msra.mxu0 0.0
        %3424 = vmatprep.subr.mxu0 0.0
        %3425 = vmatpush1.msra.mxu0 0.0
        %3426 = vmatprep.subr.mxu0 0.0
        %3427 = vmatpush1.msra.mxu0 0.0
        %3428 = vmatprep.subr.mxu0 0.0
        %3429 = vmatpush1.msra.mxu0 0.0
        %3430 = vmatprep.subr.mxu0 0.0
        %3431 = vmatpush1.msra.mxu0 0.0
        %3432 = vmatprep.subr.mxu0 0.0
        %3433 = vmatpush1.msra.mxu0 0.0
        %3434 = vmatprep.subr.mxu0 0.0
        %3435 = vmatpush1.msra.mxu0 0.0
        %3436 = vmatprep.mubr.f32.mxu0 0.0
        %3437 = vmatmul.mubr.f32.gmra.mrb[0].mxu0 %v3370
        %v3438 = vpop.f32.mrb[0].mxu0
        %v3439 = vadd.f32 %v3368, %v3438
        %v3440 = vpop.f32.mrb[0].mxu0
        %3441 = vdwg.mxu0
        %v3442 = vand.u32 2147483647, %v3439
        %v3443 = vsub.f32 0.0, %v3442
        %v3444 = vmul.f32 %v3443, 1.442695
        %v3445 = vpow.pop %v3444
        %v3446 = vadd.f32 %v3445, 1.0
        %v3447 = vrcp.pop %v3446
        %vm3448 = vcmp.ge.f32.partialorder %v3439, 0.0
        %v3449 = vmul.f32 %v3445, %v3447
        %v3450 = vsel %vm3448, %v3447, %v3449
        %vm3451 = vcmask 57344
        %3452 = vst.msk [vmem:[%s409] sm:$0x1] %vm3451, %v3450
        %v3453 = vld [vmem:[%s5] sm:$0xff]
        %v3454 = vld [vmem:[%s5 + $0x8] sm:$0xff]
        %v3455 = vld [vmem:[%s5 + $0x10] sm:$0xff]
        %v3456 = vld [vmem:[%s5 + $0x18] sm:$0xff]
        %v3457 = vld [vmem:[%s6] sm:$0x1]
        %3458 = vmatprep.subr.mxu0 0.0
        %3459 = vmatpush1.msra.mxu0 %v3453
        %3460 = vmatprep.subr.mxu0 0.0
        %3461 = vmatpush1.msra.mxu0 %v3454
        %3462 = vmatprep.subr.mxu0 0.0
        %3463 = vmatpush1.msra.mxu0 %v3455
        %3464 = vmatprep.subr.mxu0 0.0
        %3465 = vmatpush1.msra.mxu0 %v3456
        %3466 = vmatprep.subr.mxu0 0.0
        %3467 = vmatpush1.msra.mxu0 0.0
        %3468 = vmatprep.subr.mxu0 0.0
        %3469 = vmatpush1.msra.mxu0 0.0
        %3470 = vmatprep.subr.mxu0 0.0
        %3471 = vmatpush1.msra.mxu0 0.0
        %3472 = vmatprep.subr.mxu0 0.0
        %3473 = vmatpush1.msra.mxu0 0.0
        %3474 = vmatprep.subr.mxu0 0.0
        %3475 = vmatpush1.msra.mxu0 0.0
        %3476 = vmatprep.subr.mxu0 0.0
        %3477 = vmatpush1.msra.mxu0 0.0
        %3478 = vmatprep.subr.mxu0 0.0
        %3479 = vmatpush1.msra.mxu0 0.0
        %3480 = vmatprep.subr.mxu0 0.0
        %3481 = vmatpush1.msra.mxu0 0.0
        %3482 = vmatprep.subr.mxu0 0.0
        %3483 = vmatpush1.msra.mxu0 0.0
        %3484 = vmatprep.subr.mxu0 0.0
        %3485 = vmatpush1.msra.mxu0 0.0
        %3486 = vmatprep.subr.mxu0 0.0
        %3487 = vmatpush1.msra.mxu0 0.0
        %3488 = vmatprep.subr.mxu0 0.0
        %3489 = vmatpush1.msra.mxu0 0.0
        %3490 = vmatprep.subr.mxu0 0.0
        %3491 = vmatpush1.msra.mxu0 0.0
        %3492 = vmatprep.subr.mxu0 0.0
        %3493 = vmatpush1.msra.mxu0 0.0
        %3494 = vmatprep.subr.mxu0 0.0
        %3495 = vmatpush1.msra.mxu0 0.0
        %3496 = vmatprep.subr.mxu0 0.0
        %3497 = vmatpush1.msra.mxu0 0.0
        %3498 = vmatprep.subr.mxu0 0.0
        %3499 = vmatpush1.msra.mxu0 0.0
        %3500 = vmatprep.subr.mxu0 0.0
        %3501 = vmatpush1.msra.mxu0 0.0
        %3502 = vmatprep.subr.mxu0 0.0
        %3503 = vmatpush1.msra.mxu0 0.0
        %3504 = vmatprep.subr.mxu0 0.0
        %3505 = vmatpush1.msra.mxu0 0.0
        %3506 = vmatprep.subr.mxu0 0.0
        %3507 = vmatpush1.msra.mxu0 0.0
        %3508 = vmatprep.subr.mxu0 0.0
        %3509 = vmatpush1.msra.mxu0 0.0
        %3510 = vmatprep.subr.mxu0 0.0
        %3511 = vmatpush1.msra.mxu0 0.0
        %3512 = vmatprep.subr.mxu0 0.0
        %3513 = vmatpush1.msra.mxu0 0.0
        %3514 = vmatprep.subr.mxu0 0.0
        %3515 = vmatpush1.msra.mxu0 0.0
        %3516 = vmatprep.subr.mxu0 0.0
        %3517 = vmatpush1.msra.mxu0 0.0
        %3518 = vmatprep.subr.mxu0 0.0
        %3519 = vmatpush1.msra.mxu0 0.0
        %3520 = vmatprep.subr.mxu0 0.0
        %3521 = vmatpush1.msra.mxu0 0.0
        %3522 = vmatprep.mubr.f32.mxu0 0.0
        %3523 = vmatmul.mubr.f32.gmra.mrb[0].mxu0 %v3370
        %v3524 = vpop.f32.mrb[0].mxu0
        %v3525 = vadd.f32 %v3457, %v3524
        %v3526 = vpop.f32.mrb[0].mxu0
        %3527 = vdwg.mxu0
        %v3528 = vmax.f32 %v3525, 0.0
        %v3529 = vld [vmem:[%s7] sm:$0xff]
        %v3530 = vld [vmem:[%s7 + $0x8] sm:$0xff]
        %v3531 = vld [vmem:[%s7 + $0x10] sm:$0xff]
        %v3532 = vld [vmem:[%s7 + $0x18] sm:$0xff]
        %v3533 = vld [vmem:[%s8] sm:$0x1]
        %v3535 = vsel %vm3293, %v3528, 0
        %3537 = vmatprep.subr.mxu0 0.0
        %3538 = vmatpush1.msra.mxu0 %v3529
        %3539 = vmatprep.subr.mxu0 0.0
        %3540 = vmatpush1.msra.mxu0 %v3530
        %3541 = vmatprep.subr.mxu0 0.0
        %3542 = vmatpush1.msra.mxu0 %v3531
        %3543 = vmatprep.subr.mxu0 0.0
        %3544 = vmatpush1.msra.mxu0 %v3532
        %3545 = vmatprep.subr.mxu0 0.0
        %3546 = vmatpush1.msra.mxu0 0.0
        %3547 = vmatprep.subr.mxu0 0.0
        %3548 = vmatpush1.msra.mxu0 0.0
        %3549 = vmatprep.subr.mxu0 0.0
        %3550 = vmatpush1.msra.mxu0 0.0
        %3551 = vmatprep.subr.mxu0 0.0
        %3552 = vmatpush1.msra.mxu0 0.0
        %3553 = vmatprep.subr.mxu0 0.0
        %3554 = vmatpush1.msra.mxu0 0.0
        %3555 = vmatprep.subr.mxu0 0.0
        %3556 = vmatpush1.msra.mxu0 0.0
        %3557 = vmatprep.subr.mxu0 0.0
        %3558 = vmatpush1.msra.mxu0 0.0
        %3559 = vmatprep.subr.mxu0 0.0
        %3560 = vmatpush1.msra.mxu0 0.0
        %3561 = vmatprep.subr.mxu0 0.0
        %3562 = vmatpush1.msra.mxu0 0.0
        %3563 = vmatprep.subr.mxu0 0.0
        %3564 = vmatpush1.msra.mxu0 0.0
        %3565 = vmatprep.subr.mxu0 0.0
        %3566 = vmatpush1.msra.mxu0 0.0
        %3567 = vmatprep.subr.mxu0 0.0
        %3568 = vmatpush1.msra.mxu0 0.0
        %3569 = vmatprep.subr.mxu0 0.0
        %3570 = vmatpush1.msra.mxu0 0.0
        %3571 = vmatprep.subr.mxu0 0.0
        %3572 = vmatpush1.msra.mxu0 0.0
        %3573 = vmatprep.subr.mxu0 0.0
        %3574 = vmatpush1.msra.mxu0 0.0
        %3575 = vmatprep.subr.mxu0 0.0
        %3576 = vmatpush1.msra.mxu0 0.0
        %3577 = vmatprep.subr.mxu0 0.0
        %3578 = vmatpush1.msra.mxu0 0.0
        %3579 = vmatprep.subr.mxu0 0.0
        %3580 = vmatpush1.msra.mxu0 0.0
        %3581 = vmatprep.subr.mxu0 0.0
        %3582 = vmatpush1.msra.mxu0 0.0
        %3583 = vmatprep.subr.mxu0 0.0
        %3584 = vmatpush1.msra.mxu0 0.0
        %3585 = vmatprep.subr.mxu0 0.0
        %3586 = vmatpush1.msra.mxu0 0.0
        %3587 = vmatprep.subr.mxu0 0.0
        %3588 = vmatpush1.msra.mxu0 0.0
        %3589 = vmatprep.subr.mxu0 0.0
        %3590 = vmatpush1.msra.mxu0 0.0
        %3591 = vmatprep.subr.mxu0 0.0
        %3592 = vmatpush1.msra.mxu0 0.0
        %3593 = vmatprep.subr.mxu0 0.0
        %3594 = vmatpush1.msra.mxu0 0.0
        %3595 = vmatprep.subr.mxu0 0.0
        %3596 = vmatpush1.msra.mxu0 0.0
        %3597 = vmatprep.subr.mxu0 0.0
        %3598 = vmatpush1.msra.mxu0 0.0
        %3599 = vmatprep.subr.mxu0 0.0
        %3600 = vmatpush1.msra.mxu0 0.0
        %3601 = vmatprep.mubr.f32.mxu0 0.0
        %3602 = vmatmul.mubr.f32.gmra.mrb[0].mxu0 %v3535
        %v3603 = vpop.f32.mrb[0].mxu0
        %v3604 = vadd.f32 %v3533, %v3603
        %v3605 = vpop.f32.mrb[0].mxu0
        %3606 = vdwg.mxu0
        %v3607 = vmax.f32 %v3604, 0.0
        %v3608 = vld [vmem:[%s9] sm:$0xff]
        %v3609 = vld [vmem:[%s9 + $0x8] sm:$0xff]
        %v3610 = vld [vmem:[%s9 + $0x10] sm:$0xff]
        %v3611 = vld [vmem:[%s9 + $0x18] sm:$0xff]
        %v3612 = vld [vmem:[%s10] sm:$0x1]
        %v3614 = vsel %vm3293, %v3607, 0
        %3616 = vmatprep.subr.mxu0 0.0
        %3617 = vmatpush1.msra.mxu0 %v3608
        %3618 = vmatprep.subr.mxu0 0.0
        %3619 = vmatpush1.msra.mxu0 %v3609
        %3620 = vmatprep.subr.mxu0 0.0
        %3621 = vmatpush1.msra.mxu0 %v3610
        %3622 = vmatprep.subr.mxu0 0.0
        %3623 = vmatpush1.msra.mxu0 %v3611
        %3624 = vmatprep.subr.mxu0 0.0
        %3625 = vmatpush1.msra.mxu0 0.0
        %3626 = vmatprep.subr.mxu0 0.0
        %3627 = vmatpush1.msra.mxu0 0.0
        %3628 = vmatprep.subr.mxu0 0.0
        %3629 = vmatpush1.msra.mxu0 0.0
        %3630 = vmatprep.subr.mxu0 0.0
        %3631 = vmatpush1.msra.mxu0 0.0
        %3632 = vmatprep.subr.mxu0 0.0
        %3633 = vmatpush1.msra.mxu0 0.0
        %3634 = vmatprep.subr.mxu0 0.0
        %3635 = vmatpush1.msra.mxu0 0.0
        %3636 = vmatprep.subr.mxu0 0.0
        %3637 = vmatpush1.msra.mxu0 0.0
        %3638 = vmatprep.subr.mxu0 0.0
        %3639 = vmatpush1.msra.mxu0 0.0
        %3640 = vmatprep.subr.mxu0 0.0
        %3641 = vmatpush1.msra.mxu0 0.0
        %3642 = vmatprep.subr.mxu0 0.0
        %3643 = vmatpush1.msra.mxu0 0.0
        %3644 = vmatprep.subr.mxu0 0.0
        %3645 = vmatpush1.msra.mxu0 0.0
        %3646 = vmatprep.subr.mxu0 0.0
        %3647 = vmatpush1.msra.mxu0 0.0
        %3648 = vmatprep.subr.mxu0 0.0
        %3649 = vmatpush1.msra.mxu0 0.0
        %3650 = vmatprep.subr.mxu0 0.0
        %3651 = vmatpush1.msra.mxu0 0.0
        %3652 = vmatprep.subr.mxu0 0.0
        %3653 = vmatpush1.msra.mxu0 0.0
        %3654 = vmatprep.subr.mxu0 0.0
        %3655 = vmatpush1.msra.mxu0 0.0
        %3656 = vmatprep.subr.mxu0 0.0
        %3657 = vmatpush1.msra.mxu0 0.0
        %3658 = vmatprep.subr.mxu0 0.0
        %3659 = vmatpush1.msra.mxu0 0.0
        %3660 = vmatprep.subr.mxu0 0.0
        %3661 = vmatpush1.msra.mxu0 0.0
        %3662 = vmatprep.subr.mxu0 0.0
        %3663 = vmatpush1.msra.mxu0 0.0
        %3664 = vmatprep.subr.mxu0 0.0
        %3665 = vmatpush1.msra.mxu0 0.0
        %3666 = vmatprep.subr.mxu0 0.0
        %3667 = vmatpush1.msra.mxu0 0.0
        %3668 = vmatprep.subr.mxu0 0.0
        %3669 = vmatpush1.msra.mxu0 0.0
        %3670 = vmatprep.subr.mxu0 0.0
        %3671 = vmatpush1.msra.mxu0 0.0
        %3672 = vmatprep.subr.mxu0 0.0
        %3673 = vmatpush1.msra.mxu0 0.0
        %3674 = vmatprep.subr.mxu0 0.0
        %3675 = vmatpush1.msra.mxu0 0.0
        %3676 = vmatprep.subr.mxu0 0.0
        %3677 = vmatpush1.msra.mxu0 0.0
        %3678 = vmatprep.subr.mxu0 0.0
        %3679 = vmatpush1.msra.mxu0 0.0
        %3680 = vmatprep.mubr.f32.mxu0 0.0
        %3681 = vmatmul.mubr.f32.gmra.mrb[0].mxu0 %v3614
        %v3682 = vpop.f32.mrb[0].mxu0
        %v3683 = vadd.f32 %v3612, %v3682
        %v3684 = vpop.f32.mrb[0].mxu0
        %3685 = vdwg.mxu0
        %v3686 = vsel %vm3451, %v3683, -inf
        %3687 = vmax.xlane.f32.xlu0 %v3686
        %v3688 = vpop.xlane.xlu0 %3687
        %v3689 = vsub.f32 %v3683, %v3688
        %v3690 = vmul.f32 %v3689, 1.442695
        %v3691 = vpow.pop %v3690
        %v3692 = vsel %vm3451, %v3691, 0.0
        %3693 = vadd.xlane.f32.xlu0 %v3692
        %v3694 = vpop.xlane.xlu0 %3693
        %v3695 = vrcp.pop %v3694
        %v3696 = vmul.f32 %v3691, %v3695
        %3697 = vst.msk [vmem:[%s415] sm:$0x1] %vm3451, %v3696
        %s3698 = sand.u32 %s274, 1
        %s3699 = scalar_lea.sflag [#allocation3], %s3698
        %s3700 = sand.u32 %s274, 1
        %s3701 = scalar_lea.vmem [#allocation2], %s3700
        %s3702 = sand.u32 %s300, 1
        %s3703 = scalar_lea.sflag [#allocation5], %s3702
        %s3704 = sand.u32 %s300, 1
        %s3705 = scalar_lea.vmem [#allocation4], %s3704
        // Predicated region
        $region65: #{dense_rank_head.1} parent=63 // pred_check
          %p3706 = pneg %p284
        $region66: #{dense_rank_head.1} parent=63 // pred_check_branch
          %3708 = sbr.rel (%p3706) target = $region68
        $region67: #{dense_rank_head.1} parent=63 // pred_region
          %s3710 = ssub.s32 16, 16
          %3711 = vsyncadd %s3699, %s3710
          %s3712 = smul.addr %s30, 16
          %s3713 = scalar_lea.hbm %s11, %s3712
          %s3715 = sshll.u32 %s3701, 4
          %s3716 = int_to_ptr.vmem [resolvable:$true] %s3715
          %3718 = dma.vmem_to_hbm [thread:$0]  %s3716, 16, %s3713, %s3699
        $region68: #{dense_rank_head.1} parent=63 // pred_fallthru
          _
        // Predicated region
        $region69: #{dense_rank_head.1} parent=63 // pred_check
          %p3719 = pneg %p310
        $region70: #{dense_rank_head.1} parent=63 // pred_check_branch
          %3721 = sbr.rel (%p3719) target = $region72
        $region71: #{dense_rank_head.1} parent=63 // pred_region
          %s3723 = ssub.s32 16, 16
          %3724 = vsyncadd %s3703, %s3723
          %s3725 = smul.addr %s30, 16
          %s3726 = scalar_lea.hbm %s12, %s3725
          %s3728 = sshll.u32 %s3705, 4
          %s3729 = int_to_ptr.vmem [resolvable:$true] %s3728
          %3731 = dma.vmem_to_hbm [thread:$0]  %s3729, 16, %s3726, %s3703
        $region72: #{dense_rank_head.1} parent=63 // pred_fallthru
          _
      $region64: #{dense_rank_head.1} parent=5 // pred_fallthru
        _
      %p3732 = scmp.le.s32.totalorder 2, %s25
      // Predicated region
      $region73: #{dense_rank_head.1} parent=5 // pred_check
        %p3733 = pneg %p3732
      $region74: #{dense_rank_head.1} parent=5 // pred_check_branch
        %3735 = sbr.rel (%p3733) target = $region76
      $region75: #{dense_rank_head.1} parent=5 // pred_region
        %s3736 = ssub.s32 %s25, 2
        // Predicated region
        $region77: #{dense_rank_head.1} parent=75 // pred_check
          %p3737 = pneg %p290
        $region78: #{dense_rank_head.1} parent=75 // pred_check_branch
          %3739 = sbr.rel (%p3737) target = $region80
        $region79: #{dense_rank_head.1} parent=75 // pred_region
          %s3740 = sand.u32 %s275, 1
          %s3741 = scalar_lea.sflag [#allocation3], %s3740
          %s3742 = sand.u32 %s275, 1
          %s3743 = scalar_lea.vmem [#allocation2], %s3742
          %3744 = dma.done %s3741, 16
        $region80: #{dense_rank_head.1} parent=75 // pred_fallthru
          _
        // Predicated region
        $region81: #{dense_rank_head.1} parent=75 // pred_check
          %p3745 = pneg %p316
        $region82: #{dense_rank_head.1} parent=75 // pred_check_branch
          %3747 = sbr.rel (%p3745) target = $region84
        $region83: #{dense_rank_head.1} parent=75 // pred_region
          %s3748 = sand.u32 %s301, 1
          %s3749 = scalar_lea.sflag [#allocation5], %s3748
          %s3750 = sand.u32 %s301, 1
          %s3751 = scalar_lea.vmem [#allocation4], %s3750
          %3752 = dma.done %s3749, 16
        $region84: #{dense_rank_head.1} parent=75 // pred_fallthru
          _
      $region76: #{dense_rank_head.1} parent=5 // pred_fallthru
        _
    $region6: #{dense_rank_head.1} parent=1 // loop_footer
      %s29 = sadd.s32 1, %s25
    $region7: #{dense_rank_head.1} parent=1 // loop_footer_branch
      %24 = sbr.rel target = $region3
    $region8: #{dense_rank_head.1} parent=1 // loop_exit
      _
    %3753 = vsyncpa [#allocation3], 1
    %s3754 = scalar_lea.sflag [#allocation3], 1
    %3755 = vsyncpa %s3754, 1
    %3756 = vsyncpa [#allocation5], 1
    %s3757 = scalar_lea.sflag [#allocation5], 1
    %3758 = vsyncpa %s3757, 1

</llo_original>
